<compile_context>
chip_gen: v6e
topology: v6e:2x2x1
jax: 0.10.0
libtpu: 0.0.40
codegen_flags: <defaults>
</compile_context>

<pallas_src>
import jax
import jax.numpy as jnp
from jax import lax
from jax.experimental import pallas as pl
from jax.experimental.pallas import tpu as pltpu


def ibasic_block_kernel(x_ref, w1_ref, w2_ref, pp_ref, o_ref, im_ref):
    """One batch element per grid step; everything resident in VMEM.

    pp_ref rows: 0 bn1.scale, 1 bn1.shift, 2 bn2.scale, 3 bn2.shift,
                 4 prelu.alpha, 5 bn3.scale, 6 bn3.shift   (all f32, length C)
    im_ref: (H*W, 9*C) bf16 im2col scratch, fully overwritten by each conv.
    """
    H, W, C = x_ref.shape[1], x_ref.shape[2], x_ref.shape[3]
    HW = H * W

    img = x_ref[0].astype(jnp.float32).reshape(HW, C)      # (HW, C), f32
    pp = pp_ref[...]                                        # (7, C),  f32

    # Per-pixel (row, col) coordinates for the conv edge masks (computed once).
    py = lax.broadcasted_iota(jnp.int32, (H, W, 1), 0).reshape(HW, 1)
    px = lax.broadcasted_iota(jnp.int32, (H, W, 1), 1).reshape(HW, 1)

    def conv3x3(inp, w_ref):
        # Build the aligned im2col buffer: tap t = (dy, dx) is a sublane roll of the
        # flattened image by dy*W + dx, with out-of-image positions masked to zero
        # (this exactly reproduces zero padding=1).  Then one K=9*C bf16 matmul.
        for t in range(9):
            dy, dx = t // 3 - 1, t % 3 - 1
            off = dy * W + dx
            tap = pltpu.roll(inp, shift=(-off) % HW, axis=0) if off != 0 else inp
            valid = ((py + dy >= 0) & (py + dy < H) &
                     (px + dx >= 0) & (px + dx < W))
            im_ref[:, t * C:(t + 1) * C] = jnp.where(valid, tap, 0.0).astype(jnp.bfloat16)
        return jnp.dot(im_ref[...], w_ref[...],             # (HW, 9C) x (9C, P) on MXU
                       preferred_element_type=jnp.float32)

    # ---- bn1 (inference affine) ----
    h = img * pp[0:1, :] + pp[1:2, :]
    # ---- conv1: 3x3, stride 1, pad 1 ----
    h = conv3x3(h, w1_ref)
    # ---- bn2 + PReLU (per-channel alpha) ----
    h = h * pp[2:3, :] + pp[3:4, :]
    h = jnp.where(h >= 0, h, pp[4:5, :] * h)
    # ---- conv2: 3x3, stride 1, pad 1 ----
    h = conv3x3(h, w2_ref)
    # ---- bn3 + residual add (downsample is None => identity = x) ----
    h = h * pp[5:6, :] + pp[6:7, :] + img
    o_ref[...] = h.reshape(1, H, W, C).astype(o_ref.dtype)


def ibasic_block_pallas_nhwc(x_nhwc, params):
    """Preferred entry point: NHWC in / NHWC out (no layout transposes)."""
    w1, w2, s1, b1, s2, b2, alpha, s3, b3 = params
    N, H, W, C = x_nhwc.shape
    P = w1.shape[-1]
    assert C == P, "downsample=None residual add requires inplanes == planes"
    assert w1.shape == (3, 3, C, P) and w2.shape == (3, 3, P, P)

    # bf16 weights: MXU-native, half the VMEM footprint of f32.
    w1f = w1.reshape(9 * C, P).astype(jnp.bfloat16)
    w2f = w2.reshape(9 * P, P).astype(jnp.bfloat16)
    # All per-channel affine/PReLU vectors packed into one small f32 block.
    pp = jnp.stack([s1, b1, s2, b2, alpha, s3, b3]).astype(jnp.float32)   # (7, C)

    return pl.pallas_call(
        ibasic_block_kernel,
        out_shape=jax.ShapeDtypeStruct((N, H, W, P), x_nhwc.dtype),
        grid_spec=pltpu.PrefetchScalarGridSpec(
            num_scalar_prefetch=0,
            grid=(N,),
            in_specs=[
                pl.BlockSpec((1, H, W, C), lambda n: (n, 0, 0, 0)),   # x
                pl.BlockSpec((9 * C, P), lambda n: (0, 0)),           # conv1 weights (bf16)
                pl.BlockSpec((9 * P, P), lambda n: (0, 0)),           # conv2 weights (bf16)
                pl.BlockSpec((7, C), lambda n: (0, 0)),               # bn/prelu params
            ],
            out_specs=pl.BlockSpec((1, H, W, P), lambda n: (n, 0, 0, 0)),
            scratch_shapes=[
                pltpu.VMEM((H * W, 9 * C), jnp.bfloat16),             # im2col buffer
            ],
        ),
        compiler_params=pltpu.CompilerParams(
            dimension_semantics=("parallel",),
            # Explicit VMEM budget (default scoped limit is 32 MiB); fits v5e/v6e/v7x
            # at demo scale.  Re-derive together with spatial tiling for production
            # IResNet shapes on v7x (64 MiB physical per TC).
            vmem_limit_bytes=64 * 1024 * 1024,
        ),
    )(x_nhwc, w1f, w2f, pp)


def ibasic_block_pallas(x_nchw, params):
    """NCHW compatibility shim (PyTorch layout).  Each transpose is a full HBM
    read+write of the activation tensor — keep the surrounding network NHWC and
    call ibasic_block_pallas_nhwc directly to avoid it."""
    x = jnp.transpose(x_nchw, (0, 2, 3, 1))                 # NCHW -> NHWC
    out = ibasic_block_pallas_nhwc(x, params)
    return jnp.transpose(out, (0, 3, 1, 2))                 # NHWC -> NCHW


def ibasic_block_ref(x_nchw, params, matmul_dtype=jnp.float32):
    """Pure-JAX reference.  matmul_dtype=bf16 emulates the kernel's MXU precision
    (bf16 operands, f32 accumulation); float32 gives the exact module semantics."""
    w1, w2, s1, b1, s2, b2, alpha, s3, b3 = params
    x = jnp.transpose(x_nchw, (0, 2, 3, 1)).astype(jnp.float32)
    dn = ('NHWC', 'HWIO', 'NHWC')

    def conv(y, w):
        return lax.conv_general_dilated(
            y.astype(matmul_dtype), w.astype(matmul_dtype), (1, 1), ((1, 1), (1, 1)),
            dimension_numbers=dn, preferred_element_type=jnp.float32)

    y = x * s1 + b1
    y = conv(y, w1)
    y = y * s2 + b2
    y = jnp.where(y >= 0, y, alpha * y)
    y = conv(y, w2)
    y = y * s3 + b3 + x
    return jnp.transpose(y, (0, 3, 1, 2))


def make_params(key, inplanes, planes, eps=1e-5):
    ks = jax.random.split(key, 10)
    # conv weights (HWIO)
    w1 = jax.random.normal(ks[0], (3, 3, inplanes, planes), jnp.float32) * 0.1
    w2 = jax.random.normal(ks[1], (3, 3, planes, planes), jnp.float32) * 0.1

    def bn(kg, kb, km, kv, c):
        gamma = jax.random.uniform(kg, (c,), jnp.float32, 0.5, 1.5)
        beta = jax.random.normal(kb, (c,), jnp.float32) * 0.1
        mean = jax.random.normal(km, (c,), jnp.float32) * 0.1
        var = jax.random.uniform(kv, (c,), jnp.float32, 0.5, 1.5)
        scale = gamma / jnp.sqrt(var + eps)
        shift = beta - mean * scale
        return scale, shift

    s1, b1 = bn(ks[2], ks[3], ks[4], ks[5], inplanes)
    s2, b2 = bn(ks[6], ks[7], ks[8], ks[9], planes)
    k2 = jax.random.split(ks[0], 4)
    s3, b3 = bn(k2[0], k2[1], k2[2], k2[3], planes)
    alpha = jnp.full((planes,), 0.25, jnp.float32)          # PReLU default init
    return (w1, w2, s1, b1, s2, b2, alpha, s3, b3)


if __name__ == "__main__":
    # NOTE: this is a correctness-oriented toy shape.  For performance tuning use
    # production IResNet shapes (56x56x64 ... 7x7x512) and re-identify the binding
    # unit per shape; at 16x16x4 the kernel is per-grid-step-overhead bound.
    key = jax.random.PRNGKey(0)
    kx, kp = jax.random.split(key)

    N, C, H, W = 2, 4, 16, 16          # inplanes = planes = 4, stride = 1, downsample = None
    x = jax.random.normal(kx, (N, C, H, W), jnp.float32)
    params = make_params(kp, C, C)

    out = jax.block_until_ready(ibasic_block_pallas(x, params))
    ref_bf16 = ibasic_block_ref(x, params, matmul_dtype=jnp.bfloat16)   # kernel-precision ref
    ref_f32 = ibasic_block_ref(x, params, matmul_dtype=jnp.float32)     # exact module semantics

    assert out.shape == (N, C, H, W)
    err_b = float(jnp.max(jnp.abs(out - ref_bf16)))
    err_f = float(jnp.max(jnp.abs(out - ref_f32)))
    assert err_b < 2e-3, f"bf16-matched reference: max abs err {err_b}"
    assert err_f < 5e-2, f"f32 reference: max abs err {err_f}"
    print("KERNEL_OK")
</pallas_src>

<mosaic_0001>
module attributes {stable_mosaic.version = 11 : i64} {
  func.func @ibasic_block_kernel(%arg0: i32, %arg1: memref<1x16x16x4xf32, #tpu.memory_space<vmem>>, %arg2: memref<36x4xbf16, #tpu.memory_space<vmem>>, %arg3: memref<36x4xbf16, #tpu.memory_space<vmem>>, %arg4: memref<7x4xf32, #tpu.memory_space<vmem>>, %arg5: memref<1x16x16x4xf32, #tpu.memory_space<vmem>>, %arg6: memref<256x36xbf16, #tpu.memory_space<vmem>>) attributes {dimension_semantics = [#tpu.dimension_semantics<parallel>], iteration_bounds = array<i64: 2>, scalar_prefetch = 0 : i64, scratch_operands = 1 : i64, tpu.core_type = #tpu.core_type<tc>, window_params = [{transform_indices = @transform_0, window_bounds = array<i64: 1, 16, 16, 4>}, {pipeline_mode = #tpu.pipeline_mode<synchronous>, transform_indices = @transform_1, window_bounds = array<i64: 36, 4>}, {pipeline_mode = #tpu.pipeline_mode<synchronous>, transform_indices = @transform_2, window_bounds = array<i64: 36, 4>}, {pipeline_mode = #tpu.pipeline_mode<synchronous>, transform_indices = @transform_3, window_bounds = array<i64: 7, 4>}, {transform_indices = @transform_4, window_bounds = array<i64: 1, 16, 16, 4>}]} {
    %c0 = arith.constant 0 : index
    %c0_0 = arith.constant 0 : index
    %c0_1 = arith.constant 0 : index
    %c0_2 = arith.constant 0 : index
    %0 = vector.load %arg1[%c0, %c0_0, %c0_1, %c0_2] : memref<1x16x16x4xf32, #tpu.memory_space<vmem>>, vector<1x16x16x4xf32>
    %1 = vector.shape_cast %0 : vector<1x16x16x4xf32> to vector<16x16x4xf32>
    %2 = vector.shape_cast %1 : vector<16x16x4xf32> to vector<256x4xf32>
    %c0_3 = arith.constant 0 : index
    %c0_4 = arith.constant 0 : index
    %3 = vector.load %arg4[%c0_3, %c0_4] : memref<7x4xf32, #tpu.memory_space<vmem>>, vector<7x4xf32>
    %4 = tpu.iota {dimensions = array<i32: 0>} : vector<16x16x1xi32>
    %5 = vector.shape_cast %4 : vector<16x16x1xi32> to vector<256x1xi32>
    %6 = tpu.iota {dimensions = array<i32: 1>} : vector<16x16x1xi32>
    %7 = vector.shape_cast %6 : vector<16x16x1xi32> to vector<256x1xi32>
    %8 = vector.extract_strided_slice %3 {offsets = [0, 0], sizes = [1, 4], strides = [1, 1]} : vector<7x4xf32> to vector<1x4xf32>
    %9 = vector.broadcast %8 : vector<1x4xf32> to vector<256x4xf32>
    %10 = arith.mulf %2, %9 : vector<256x4xf32>
    %11 = vector.extract_strided_slice %3 {offsets = [1, 0], sizes = [1, 4], strides = [1, 1]} : vector<7x4xf32> to vector<1x4xf32>
    %12 = vector.broadcast %11 : vector<1x4xf32> to vector<256x4xf32>
    %13 = arith.addf %10, %12 : vector<256x4xf32>
    %c17_i32 = arith.constant 17 : i32
    %14 = tpu.dynamic_rotate %13 by %c17_i32 dim 0 : vector<256x4xf32>, i32 -> vector<256x4xf32>
    %c-1_i32 = arith.constant -1 : i32
    %15 = vector.broadcast %c-1_i32 : i32 to vector<256x1xi32>
    %16 = arith.addi %5, %15 : vector<256x1xi32>
    %c0_i32 = arith.constant 0 : i32
    %17 = vector.broadcast %c0_i32 : i32 to vector<256x1xi32>
    %18 = arith.cmpi sge, %16, %17 : vector<256x1xi32>
    %c-1_i32_5 = arith.constant -1 : i32
    %19 = vector.broadcast %c-1_i32_5 : i32 to vector<256x1xi32>
    %20 = arith.addi %5, %19 : vector<256x1xi32>
    %c16_i32 = arith.constant 16 : i32
    %21 = vector.broadcast %c16_i32 : i32 to vector<256x1xi32>
    %22 = arith.cmpi slt, %20, %21 : vector<256x1xi32>
    %23 = arith.andi %18, %22 : vector<256x1xi1>
    %c-1_i32_6 = arith.constant -1 : i32
    %24 = vector.broadcast %c-1_i32_6 : i32 to vector<256x1xi32>
    %25 = arith.addi %7, %24 : vector<256x1xi32>
    %c0_i32_7 = arith.constant 0 : i32
    %26 = vector.broadcast %c0_i32_7 : i32 to vector<256x1xi32>
    %27 = arith.cmpi sge, %25, %26 : vector<256x1xi32>
    %28 = arith.andi %23, %27 : vector<256x1xi1>
    %c-1_i32_8 = arith.constant -1 : i32
    %29 = vector.broadcast %c-1_i32_8 : i32 to vector<256x1xi32>
    %30 = arith.addi %7, %29 : vector<256x1xi32>
    %c16_i32_9 = arith.constant 16 : i32
    %31 = vector.broadcast %c16_i32_9 : i32 to vector<256x1xi32>
    %32 = arith.cmpi slt, %30, %31 : vector<256x1xi32>
    %33 = arith.andi %28, %32 : vector<256x1xi1>
    %cst = arith.constant 0.000000e+00 : f32
    %34 = vector.shape_cast %33 : vector<256x1xi1> to vector<256x1xi1>
    %35 = vector.broadcast %34 : vector<256x1xi1> to vector<256x4xi1>
    %36 = vector.broadcast %cst : f32 to vector<256x4xf32>
    %37 = arith.select %35, %14, %36 : vector<256x4xi1>, vector<256x4xf32>
    %38 = arith.truncf %37 : vector<256x4xf32> to vector<256x4xbf16>
    %c0_10 = arith.constant 0 : index
    %c0_11 = arith.constant 0 : index
    %39 = vector.load %arg6[%c0_10, %c0_11] : memref<256x36xbf16, #tpu.memory_space<vmem>>, vector<256x4xbf16>
    tpu.vector_store %arg6[%c0_10, %c0_11], %38 {strides = array<i32>} : memref<256x36xbf16, #tpu.memory_space<vmem>>, vector<256x4xbf16>,
    %c16_i32_12 = arith.constant 16 : i32
    %40 = tpu.dynamic_rotate %13 by %c16_i32_12 dim 0 : vector<256x4xf32>, i32 -> vector<256x4xf32>
    %c-1_i32_13 = arith.constant -1 : i32
    %41 = vector.broadcast %c-1_i32_13 : i32 to vector<256x1xi32>
    %42 = arith.addi %5, %41 : vector<256x1xi32>
    %c0_i32_14 = arith.constant 0 : i32
    %43 = vector.broadcast %c0_i32_14 : i32 to vector<256x1xi32>
    %44 = arith.cmpi sge, %42, %43 : vector<256x1xi32>
    %c-1_i32_15 = arith.constant -1 : i32
    %45 = vector.broadcast %c-1_i32_15 : i32 to vector<256x1xi32>
    %46 = arith.addi %5, %45 : vector<256x1xi32>
    %c16_i32_16 = arith.constant 16 : i32
    %47 = vector.broadcast %c16_i32_16 : i32 to vector<256x1xi32>
    %48 = arith.cmpi slt, %46, %47 : vector<256x1xi32>
    %49 = arith.andi %44, %48 : vector<256x1xi1>
    %c0_i32_17 = arith.constant 0 : i32
    %50 = vector.broadcast %c0_i32_17 : i32 to vector<256x1xi32>
    %51 = arith.addi %7, %50 : vector<256x1xi32>
    %c0_i32_18 = arith.constant 0 : i32
    %52 = vector.broadcast %c0_i32_18 : i32 to vector<256x1xi32>
    %53 = arith.cmpi sge, %51, %52 : vector<256x1xi32>
    %54 = arith.andi %49, %53 : vector<256x1xi1>
    %c0_i32_19 = arith.constant 0 : i32
    %55 = vector.broadcast %c0_i32_19 : i32 to vector<256x1xi32>
    %56 = arith.addi %7, %55 : vector<256x1xi32>
    %c16_i32_20 = arith.constant 16 : i32
    %57 = vector.broadcast %c16_i32_20 : i32 to vector<256x1xi32>
    %58 = arith.cmpi slt, %56, %57 : vector<256x1xi32>
    %59 = arith.andi %54, %58 : vector<256x1xi1>
    %cst_21 = arith.constant 0.000000e+00 : f32
    %60 = vector.shape_cast %59 : vector<256x1xi1> to vector<256x1xi1>
    %61 = vector.broadcast %60 : vector<256x1xi1> to vector<256x4xi1>
    %62 = vector.broadcast %cst_21 : f32 to vector<256x4xf32>
    %63 = arith.select %61, %40, %62 : vector<256x4xi1>, vector<256x4xf32>
    %64 = arith.truncf %63 : vector<256x4xf32> to vector<256x4xbf16>
    %c0_22 = arith.constant 0 : index
    %c4 = arith.constant 4 : index
    %65 = vector.load %arg6[%c0_22, %c4] : memref<256x36xbf16, #tpu.memory_space<vmem>>, vector<256x4xbf16>
    tpu.vector_store %arg6[%c0_22, %c4], %64 {strides = array<i32>} : memref<256x36xbf16, #tpu.memory_space<vmem>>, vector<256x4xbf16>,
    %c15_i32 = arith.constant 15 : i32
    %66 = tpu.dynamic_rotate %13 by %c15_i32 dim 0 : vector<256x4xf32>, i32 -> vector<256x4xf32>
    %c-1_i32_23 = arith.constant -1 : i32
    %67 = vector.broadcast %c-1_i32_23 : i32 to vector<256x1xi32>
    %68 = arith.addi %5, %67 : vector<256x1xi32>
    %c0_i32_24 = arith.constant 0 : i32
    %69 = vector.broadcast %c0_i32_24 : i32 to vector<256x1xi32>
    %70 = arith.cmpi sge, %68, %69 : vector<256x1xi32>
    %c-1_i32_25 = arith.constant -1 : i32
    %71 = vector.broadcast %c-1_i32_25 : i32 to vector<256x1xi32>
    %72 = arith.addi %5, %71 : vector<256x1xi32>
    %c16_i32_26 = arith.constant 16 : i32
    %73 = vector.broadcast %c16_i32_26 : i32 to vector<256x1xi32>
    %74 = arith.cmpi slt, %72, %73 : vector<256x1xi32>
    %75 = arith.andi %70, %74 : vector<256x1xi1>
    %c1_i32 = arith.constant 1 : i32
    %76 = vector.broadcast %c1_i32 : i32 to vector<256x1xi32>
    %77 = arith.addi %7, %76 : vector<256x1xi32>
    %c0_i32_27 = arith.constant 0 : i32
    %78 = vector.broadcast %c0_i32_27 : i32 to vector<256x1xi32>
    %79 = arith.cmpi sge, %77, %78 : vector<256x1xi32>
    %80 = arith.andi %75, %79 : vector<256x1xi1>
    %c1_i32_28 = arith.constant 1 : i32
    %81 = vector.broadcast %c1_i32_28 : i32 to vector<256x1xi32>
    %82 = arith.addi %7, %81 : vector<256x1xi32>
    %c16_i32_29 = arith.constant 16 : i32
    %83 = vector.broadcast %c16_i32_29 : i32 to vector<256x1xi32>
    %84 = arith.cmpi slt, %82, %83 : vector<256x1xi32>
    %85 = arith.andi %80, %84 : vector<256x1xi1>
    %cst_30 = arith.constant 0.000000e+00 : f32
    %86 = vector.shape_cast %85 : vector<256x1xi1> to vector<256x1xi1>
    %87 = vector.broadcast %86 : vector<256x1xi1> to vector<256x4xi1>
    %88 = vector.broadcast %cst_30 : f32 to vector<256x4xf32>
    %89 = arith.select %87, %66, %88 : vector<256x4xi1>, vector<256x4xf32>
    %90 = arith.truncf %89 : vector<256x4xf32> to vector<256x4xbf16>
    %c0_31 = arith.constant 0 : index
    %c8 = arith.constant 8 : index
    %91 = vector.load %arg6[%c0_31, %c8] : memref<256x36xbf16, #tpu.memory_space<vmem>>, vector<256x4xbf16>
    tpu.vector_store %arg6[%c0_31, %c8], %90 {strides = array<i32>} : memref<256x36xbf16, #tpu.memory_space<vmem>>, vector<256x4xbf16>,
    %c1_i32_32 = arith.constant 1 : i32
    %92 = tpu.dynamic_rotate %13 by %c1_i32_32 dim 0 : vector<256x4xf32>, i32 -> vector<256x4xf32>
    %c0_i32_33 = arith.constant 0 : i32
    %93 = vector.broadcast %c0_i32_33 : i32 to vector<256x1xi32>
    %94 = arith.addi %5, %93 : vector<256x1xi32>
    %c0_i32_34 = arith.constant 0 : i32
    %95 = vector.broadcast %c0_i32_34 : i32 to vector<256x1xi32>
    %96 = arith.cmpi sge, %94, %95 : vector<256x1xi32>
    %c0_i32_35 = arith.constant 0 : i32
    %97 = vector.broadcast %c0_i32_35 : i32 to vector<256x1xi32>
    %98 = arith.addi %5, %97 : vector<256x1xi32>
    %c16_i32_36 = arith.constant 16 : i32
    %99 = vector.broadcast %c16_i32_36 : i32 to vector<256x1xi32>
    %100 = arith.cmpi slt, %98, %99 : vector<256x1xi32>
    %101 = arith.andi %96, %100 : vector<256x1xi1>
    %c-1_i32_37 = arith.constant -1 : i32
    %102 = vector.broadcast %c-1_i32_37 : i32 to vector<256x1xi32>
    %103 = arith.addi %7, %102 : vector<256x1xi32>
    %c0_i32_38 = arith.constant 0 : i32
    %104 = vector.broadcast %c0_i32_38 : i32 to vector<256x1xi32>
    %105 = arith.cmpi sge, %103, %104 : vector<256x1xi32>
    %106 = arith.andi %101, %105 : vector<256x1xi1>
    %c-1_i32_39 = arith.constant -1 : i32
    %107 = vector.broadcast %c-1_i32_39 : i32 to vector<256x1xi32>
    %108 = arith.addi %7, %107 : vector<256x1xi32>
    %c16_i32_40 = arith.constant 16 : i32
    %109 = vector.broadcast %c16_i32_40 : i32 to vector<256x1xi32>
    %110 = arith.cmpi slt, %108, %109 : vector<256x1xi32>
    %111 = arith.andi %106, %110 : vector<256x1xi1>
    %cst_41 = arith.constant 0.000000e+00 : f32
    %112 = vector.shape_cast %111 : vector<256x1xi1> to vector<256x1xi1>
    %113 = vector.broadcast %112 : vector<256x1xi1> to vector<256x4xi1>
    %114 = vector.broadcast %cst_41 : f32 to vector<256x4xf32>
    %115 = arith.select %113, %92, %114 : vector<256x4xi1>, vector<256x4xf32>
    %116 = arith.truncf %115 : vector<256x4xf32> to vector<256x4xbf16>
    %c0_42 = arith.constant 0 : index
    %c12 = arith.constant 12 : index
    %117 = vector.load %arg6[%c0_42, %c12] : memref<256x36xbf16, #tpu.memory_space<vmem>>, vector<256x4xbf16>
    tpu.vector_store %arg6[%c0_42, %c12], %116 {strides = array<i32>} : memref<256x36xbf16, #tpu.memory_space<vmem>>, vector<256x4xbf16>,
    %c0_i32_43 = arith.constant 0 : i32
    %118 = vector.broadcast %c0_i32_43 : i32 to vector<256x1xi32>
    %119 = arith.addi %5, %118 : vector<256x1xi32>
    %c0_i32_44 = arith.constant 0 : i32
    %120 = vector.broadcast %c0_i32_44 : i32 to vector<256x1xi32>
    %121 = arith.cmpi sge, %119, %120 : vector<256x1xi32>
    %c0_i32_45 = arith.constant 0 : i32
    %122 = vector.broadcast %c0_i32_45 : i32 to vector<256x1xi32>
    %123 = arith.addi %5, %122 : vector<256x1xi32>
    %c16_i32_46 = arith.constant 16 : i32
    %124 = vector.broadcast %c16_i32_46 : i32 to vector<256x1xi32>
    %125 = arith.cmpi slt, %123, %124 : vector<256x1xi32>
    %126 = arith.andi %121, %125 : vector<256x1xi1>
    %c0_i32_47 = arith.constant 0 : i32
    %127 = vector.broadcast %c0_i32_47 : i32 to vector<256x1xi32>
    %128 = arith.addi %7, %127 : vector<256x1xi32>
    %c0_i32_48 = arith.constant 0 : i32
    %129 = vector.broadcast %c0_i32_48 : i32 to vector<256x1xi32>
    %130 = arith.cmpi sge, %128, %129 : vector<256x1xi32>
    %131 = arith.andi %126, %130 : vector<256x1xi1>
    %c0_i32_49 = arith.constant 0 : i32
    %132 = vector.broadcast %c0_i32_49 : i32 to vector<256x1xi32>
    %133 = arith.addi %7, %132 : vector<256x1xi32>
    %c16_i32_50 = arith.constant 16 : i32
    %134 = vector.broadcast %c16_i32_50 : i32 to vector<256x1xi32>
    %135 = arith.cmpi slt, %133, %134 : vector<256x1xi32>
    %136 = arith.andi %131, %135 : vector<256x1xi1>
    %cst_51 = arith.constant 0.000000e+00 : f32
    %137 = vector.shape_cast %136 : vector<256x1xi1> to vector<256x1xi1>
    %138 = vector.broadcast %137 : vector<256x1xi1> to vector<256x4xi1>
    %139 = vector.broadcast %cst_51 : f32 to vector<256x4xf32>
    %140 = arith.select %138, %13, %139 : vector<256x4xi1>, vector<256x4xf32>
    %141 = arith.truncf %140 : vector<256x4xf32> to vector<256x4xbf16>
    %c0_52 = arith.constant 0 : index
    %c16 = arith.constant 16 : index
    %142 = vector.load %arg6[%c0_52, %c16] : memref<256x36xbf16, #tpu.memory_space<vmem>>, vector<256x4xbf16>
    tpu.vector_store %arg6[%c0_52, %c16], %141 {strides = array<i32>} : memref<256x36xbf16, #tpu.memory_space<vmem>>, vector<256x4xbf16>,
    %c255_i32 = arith.constant 255 : i32
    %143 = tpu.dynamic_rotate %13 by %c255_i32 dim 0 : vector<256x4xf32>, i32 -> vector<256x4xf32>
    %c0_i32_53 = arith.constant 0 : i32
    %144 = vector.broadcast %c0_i32_53 : i32 to vector<256x1xi32>
    %145 = arith.addi %5, %144 : vector<256x1xi32>
    %c0_i32_54 = arith.constant 0 : i32
    %146 = vector.broadcast %c0_i32_54 : i32 to vector<256x1xi32>
    %147 = arith.cmpi sge, %145, %146 : vector<256x1xi32>
    %c0_i32_55 = arith.constant 0 : i32
    %148 = vector.broadcast %c0_i32_55 : i32 to vector<256x1xi32>
    %149 = arith.addi %5, %148 : vector<256x1xi32>
    %c16_i32_56 = arith.constant 16 : i32
    %150 = vector.broadcast %c16_i32_56 : i32 to vector<256x1xi32>
    %151 = arith.cmpi slt, %149, %150 : vector<256x1xi32>
    %152 = arith.andi %147, %151 : vector<256x1xi1>
    %c1_i32_57 = arith.constant 1 : i32
    %153 = vector.broadcast %c1_i32_57 : i32 to vector<256x1xi32>
    %154 = arith.addi %7, %153 : vector<256x1xi32>
    %c0_i32_58 = arith.constant 0 : i32
    %155 = vector.broadcast %c0_i32_58 : i32 to vector<256x1xi32>
    %156 = arith.cmpi sge, %154, %155 : vector<256x1xi32>
    %157 = arith.andi %152, %156 : vector<256x1xi1>
    %c1_i32_59 = arith.constant 1 : i32
    %158 = vector.broadcast %c1_i32_59 : i32 to vector<256x1xi32>
    %159 = arith.addi %7, %158 : vector<256x1xi32>
    %c16_i32_60 = arith.constant 16 : i32
    %160 = vector.broadcast %c16_i32_60 : i32 to vector<256x1xi32>
    %161 = arith.cmpi slt, %159, %160 : vector<256x1xi32>
    %162 = arith.andi %157, %161 : vector<256x1xi1>
    %cst_61 = arith.constant 0.000000e+00 : f32
    %163 = vector.shape_cast %162 : vector<256x1xi1> to vector<256x1xi1>
    %164 = vector.broadcast %163 : vector<256x1xi1> to vector<256x4xi1>
    %165 = vector.broadcast %cst_61 : f32 to vector<256x4xf32>
    %166 = arith.select %164, %143, %165 : vector<256x4xi1>, vector<256x4xf32>
    %167 = arith.truncf %166 : vector<256x4xf32> to vector<256x4xbf16>
    %c0_62 = arith.constant 0 : index
    %c20 = arith.constant 20 : index
    %168 = vector.load %arg6[%c0_62, %c20] : memref<256x36xbf16, #tpu.memory_space<vmem>>, vector<256x4xbf16>
    tpu.vector_store %arg6[%c0_62, %c20], %167 {strides = array<i32>} : memref<256x36xbf16, #tpu.memory_space<vmem>>, vector<256x4xbf16>,
    %c241_i32 = arith.constant 241 : i32
    %169 = tpu.dynamic_rotate %13 by %c241_i32 dim 0 : vector<256x4xf32>, i32 -> vector<256x4xf32>
    %c1_i32_63 = arith.constant 1 : i32
    %170 = vector.broadcast %c1_i32_63 : i32 to vector<256x1xi32>
    %171 = arith.addi %5, %170 : vector<256x1xi32>
    %c0_i32_64 = arith.constant 0 : i32
    %172 = vector.broadcast %c0_i32_64 : i32 to vector<256x1xi32>
    %173 = arith.cmpi sge, %171, %172 : vector<256x1xi32>
    %c1_i32_65 = arith.constant 1 : i32
    %174 = vector.broadcast %c1_i32_65 : i32 to vector<256x1xi32>
    %175 = arith.addi %5, %174 : vector<256x1xi32>
    %c16_i32_66 = arith.constant 16 : i32
    %176 = vector.broadcast %c16_i32_66 : i32 to vector<256x1xi32>
    %177 = arith.cmpi slt, %175, %176 : vector<256x1xi32>
    %178 = arith.andi %173, %177 : vector<256x1xi1>
    %c-1_i32_67 = arith.constant -1 : i32
    %179 = vector.broadcast %c-1_i32_67 : i32 to vector<256x1xi32>
    %180 = arith.addi %7, %179 : vector<256x1xi32>
    %c0_i32_68 = arith.constant 0 : i32
    %181 = vector.broadcast %c0_i32_68 : i32 to vector<256x1xi32>
    %182 = arith.cmpi sge, %180, %181 : vector<256x1xi32>
    %183 = arith.andi %178, %182 : vector<256x1xi1>
    %c-1_i32_69 = arith.constant -1 : i32
    %184 = vector.broadcast %c-1_i32_69 : i32 to vector<256x1xi32>
    %185 = arith.addi %7, %184 : vector<256x1xi32>
    %c16_i32_70 = arith.constant 16 : i32
    %186 = vector.broadcast %c16_i32_70 : i32 to vector<256x1xi32>
    %187 = arith.cmpi slt, %185, %186 : vector<256x1xi32>
    %188 = arith.andi %183, %187 : vector<256x1xi1>
    %cst_71 = arith.constant 0.000000e+00 : f32
    %189 = vector.shape_cast %188 : vector<256x1xi1> to vector<256x1xi1>
    %190 = vector.broadcast %189 : vector<256x1xi1> to vector<256x4xi1>
    %191 = vector.broadcast %cst_71 : f32 to vector<256x4xf32>
    %192 = arith.select %190, %169, %191 : vector<256x4xi1>, vector<256x4xf32>
    %193 = arith.truncf %192 : vector<256x4xf32> to vector<256x4xbf16>
    %c0_72 = arith.constant 0 : index
    %c24 = arith.constant 24 : index
    %194 = vector.load %arg6[%c0_72, %c24] : memref<256x36xbf16, #tpu.memory_space<vmem>>, vector<256x4xbf16>
    tpu.vector_store %arg6[%c0_72, %c24], %193 {strides = array<i32>} : memref<256x36xbf16, #tpu.memory_space<vmem>>, vector<256x4xbf16>,
    %c240_i32 = arith.constant 240 : i32
    %195 = tpu.dynamic_rotate %13 by %c240_i32 dim 0 : vector<256x4xf32>, i32 -> vector<256x4xf32>
    %c1_i32_73 = arith.constant 1 : i32
    %196 = vector.broadcast %c1_i32_73 : i32 to vector<256x1xi32>
    %197 = arith.addi %5, %196 : vector<256x1xi32>
    %c0_i32_74 = arith.constant 0 : i32
    %198 = vector.broadcast %c0_i32_74 : i32 to vector<256x1xi32>
    %199 = arith.cmpi sge, %197, %198 : vector<256x1xi32>
    %c1_i32_75 = arith.constant 1 : i32
    %200 = vector.broadcast %c1_i32_75 : i32 to vector<256x1xi32>
    %201 = arith.addi %5, %200 : vector<256x1xi32>
    %c16_i32_76 = arith.constant 16 : i32
    %202 = vector.broadcast %c16_i32_76 : i32 to vector<256x1xi32>
    %203 = arith.cmpi slt, %201, %202 : vector<256x1xi32>
    %204 = arith.andi %199, %203 : vector<256x1xi1>
    %c0_i32_77 = arith.constant 0 : i32
    %205 = vector.broadcast %c0_i32_77 : i32 to vector<256x1xi32>
    %206 = arith.addi %7, %205 : vector<256x1xi32>
    %c0_i32_78 = arith.constant 0 : i32
    %207 = vector.broadcast %c0_i32_78 : i32 to vector<256x1xi32>
    %208 = arith.cmpi sge, %206, %207 : vector<256x1xi32>
    %209 = arith.andi %204, %208 : vector<256x1xi1>
    %c0_i32_79 = arith.constant 0 : i32
    %210 = vector.broadcast %c0_i32_79 : i32 to vector<256x1xi32>
    %211 = arith.addi %7, %210 : vector<256x1xi32>
    %c16_i32_80 = arith.constant 16 : i32
    %212 = vector.broadcast %c16_i32_80 : i32 to vector<256x1xi32>
    %213 = arith.cmpi slt, %211, %212 : vector<256x1xi32>
    %214 = arith.andi %209, %213 : vector<256x1xi1>
    %cst_81 = arith.constant 0.000000e+00 : f32
    %215 = vector.shape_cast %214 : vector<256x1xi1> to vector<256x1xi1>
    %216 = vector.broadcast %215 : vector<256x1xi1> to vector<256x4xi1>
    %217 = vector.broadcast %cst_81 : f32 to vector<256x4xf32>
    %218 = arith.select %216, %195, %217 : vector<256x4xi1>, vector<256x4xf32>
    %219 = arith.truncf %218 : vector<256x4xf32> to vector<256x4xbf16>
    %c0_82 = arith.constant 0 : index
    %c28 = arith.constant 28 : index
    %220 = vector.load %arg6[%c0_82, %c28] : memref<256x36xbf16, #tpu.memory_space<vmem>>, vector<256x4xbf16>
    tpu.vector_store %arg6[%c0_82, %c28], %219 {strides = array<i32>} : memref<256x36xbf16, #tpu.memory_space<vmem>>, vector<256x4xbf16>,
    %c239_i32 = arith.constant 239 : i32
    %221 = tpu.dynamic_rotate %13 by %c239_i32 dim 0 : vector<256x4xf32>, i32 -> vector<256x4xf32>
    %c1_i32_83 = arith.constant 1 : i32
    %222 = vector.broadcast %c1_i32_83 : i32 to vector<256x1xi32>
    %223 = arith.addi %5, %222 : vector<256x1xi32>
    %c0_i32_84 = arith.constant 0 : i32
    %224 = vector.broadcast %c0_i32_84 : i32 to vector<256x1xi32>
    %225 = arith.cmpi sge, %223, %224 : vector<256x1xi32>
    %c1_i32_85 = arith.constant 1 : i32
    %226 = vector.broadcast %c1_i32_85 : i32 to vector<256x1xi32>
    %227 = arith.addi %5, %226 : vector<256x1xi32>
    %c16_i32_86 = arith.constant 16 : i32
    %228 = vector.broadcast %c16_i32_86 : i32 to vector<256x1xi32>
    %229 = arith.cmpi slt, %227, %228 : vector<256x1xi32>
    %230 = arith.andi %225, %229 : vector<256x1xi1>
    %c1_i32_87 = arith.constant 1 : i32
    %231 = vector.broadcast %c1_i32_87 : i32 to vector<256x1xi32>
    %232 = arith.addi %7, %231 : vector<256x1xi32>
    %c0_i32_88 = arith.constant 0 : i32
    %233 = vector.broadcast %c0_i32_88 : i32 to vector<256x1xi32>
    %234 = arith.cmpi sge, %232, %233 : vector<256x1xi32>
    %235 = arith.andi %230, %234 : vector<256x1xi1>
    %c1_i32_89 = arith.constant 1 : i32
    %236 = vector.broadcast %c1_i32_89 : i32 to vector<256x1xi32>
    %237 = arith.addi %7, %236 : vector<256x1xi32>
    %c16_i32_90 = arith.constant 16 : i32
    %238 = vector.broadcast %c16_i32_90 : i32 to vector<256x1xi32>
    %239 = arith.cmpi slt, %237, %238 : vector<256x1xi32>
    %240 = arith.andi %235, %239 : vector<256x1xi1>
    %cst_91 = arith.constant 0.000000e+00 : f32
    %241 = vector.shape_cast %240 : vector<256x1xi1> to vector<256x1xi1>
    %242 = vector.broadcast %241 : vector<256x1xi1> to vector<256x4xi1>
    %243 = vector.broadcast %cst_91 : f32 to vector<256x4xf32>
    %244 = arith.select %242, %221, %243 : vector<256x4xi1>, vector<256x4xf32>
    %245 = arith.truncf %244 : vector<256x4xf32> to vector<256x4xbf16>
    %c0_92 = arith.constant 0 : index
    %c32 = arith.constant 32 : index
    %246 = vector.load %arg6[%c0_92, %c32] : memref<256x36xbf16, #tpu.memory_space<vmem>>, vector<256x4xbf16>
    tpu.vector_store %arg6[%c0_92, %c32], %245 {strides = array<i32>} : memref<256x36xbf16, #tpu.memory_space<vmem>>, vector<256x4xbf16>,
    %c0_93 = arith.constant 0 : index
    %c0_94 = arith.constant 0 : index
    %247 = vector.load %arg6[%c0_93, %c0_94] : memref<256x36xbf16, #tpu.memory_space<vmem>>, vector<256x36xbf16>
    %c0_95 = arith.constant 0 : index
    %c0_96 = arith.constant 0 : index
    %248 = vector.load %arg2[%c0_95, %c0_96] : memref<36x4xbf16, #tpu.memory_space<vmem>>, vector<36x4xbf16>
    %cst_97 = arith.constant dense<0.000000e+00> : vector<256x4xf32>
    %249 = tpu.matmul %247, %248, %cst_97 {dimension_numbers = #tpu.dot_dimension_numbers<[1], [0], [0], [1], [0, 0, 1, 1], [], []>} : vector<256x36xbf16>, vector<36x4xbf16>, vector<256x4xf32> -> vector<256x4xf32>
    %250 = vector.extract_strided_slice %3 {offsets = [2, 0], sizes = [1, 4], strides = [1, 1]} : vector<7x4xf32> to vector<1x4xf32>
    %251 = vector.broadcast %250 : vector<1x4xf32> to vector<256x4xf32>
    %252 = arith.mulf %249, %251 : vector<256x4xf32>
    %253 = vector.extract_strided_slice %3 {offsets = [3, 0], sizes = [1, 4], strides = [1, 1]} : vector<7x4xf32> to vector<1x4xf32>
    %254 = vector.broadcast %253 : vector<1x4xf32> to vector<256x4xf32>
    %255 = arith.addf %252, %254 : vector<256x4xf32>
    %cst_98 = arith.constant 0.000000e+00 : f32
    %256 = vector.broadcast %cst_98 : f32 to vector<256x4xf32>
    %257 = arith.cmpf oge, %255, %256 : vector<256x4xf32>
    %258 = vector.extract_strided_slice %3 {offsets = [4, 0], sizes = [1, 4], strides = [1, 1]} : vector<7x4xf32> to vector<1x4xf32>
    %259 = vector.broadcast %258 : vector<1x4xf32> to vector<256x4xf32>
    %260 = arith.mulf %259, %255 : vector<256x4xf32>
    %261 = arith.select %257, %255, %260 : vector<256x4xi1>, vector<256x4xf32>
    %c17_i32_99 = arith.constant 17 : i32
    %262 = tpu.dynamic_rotate %261 by %c17_i32_99 dim 0 : vector<256x4xf32>, i32 -> vector<256x4xf32>
    %c-1_i32_100 = arith.constant -1 : i32
    %263 = vector.broadcast %c-1_i32_100 : i32 to vector<256x1xi32>
    %264 = arith.addi %5, %263 : vector<256x1xi32>
    %c0_i32_101 = arith.constant 0 : i32
    %265 = vector.broadcast %c0_i32_101 : i32 to vector<256x1xi32>
    %266 = arith.cmpi sge, %264, %265 : vector<256x1xi32>
    %c-1_i32_102 = arith.constant -1 : i32
    %267 = vector.broadcast %c-1_i32_102 : i32 to vector<256x1xi32>
    %268 = arith.addi %5, %267 : vector<256x1xi32>
    %c16_i32_103 = arith.constant 16 : i32
    %269 = vector.broadcast %c16_i32_103 : i32 to vector<256x1xi32>
    %270 = arith.cmpi slt, %268, %269 : vector<256x1xi32>
    %271 = arith.andi %266, %270 : vector<256x1xi1>
    %c-1_i32_104 = arith.constant -1 : i32
    %272 = vector.broadcast %c-1_i32_104 : i32 to vector<256x1xi32>
    %273 = arith.addi %7, %272 : vector<256x1xi32>
    %c0_i32_105 = arith.constant 0 : i32
    %274 = vector.broadcast %c0_i32_105 : i32 to vector<256x1xi32>
    %275 = arith.cmpi sge, %273, %274 : vector<256x1xi32>
    %276 = arith.andi %271, %275 : vector<256x1xi1>
    %c-1_i32_106 = arith.constant -1 : i32
    %277 = vector.broadcast %c-1_i32_106 : i32 to vector<256x1xi32>
    %278 = arith.addi %7, %277 : vector<256x1xi32>
    %c16_i32_107 = arith.constant 16 : i32
    %279 = vector.broadcast %c16_i32_107 : i32 to vector<256x1xi32>
    %280 = arith.cmpi slt, %278, %279 : vector<256x1xi32>
    %281 = arith.andi %276, %280 : vector<256x1xi1>
    %cst_108 = arith.constant 0.000000e+00 : f32
    %282 = vector.shape_cast %281 : vector<256x1xi1> to vector<256x1xi1>
    %283 = vector.broadcast %282 : vector<256x1xi1> to vector<256x4xi1>
    %284 = vector.broadcast %cst_108 : f32 to vector<256x4xf32>
    %285 = arith.select %283, %262, %284 : vector<256x4xi1>, vector<256x4xf32>
    %286 = arith.truncf %285 : vector<256x4xf32> to vector<256x4xbf16>
    %c0_109 = arith.constant 0 : index
    %c0_110 = arith.constant 0 : index
    %287 = vector.load %arg6[%c0_109, %c0_110] : memref<256x36xbf16, #tpu.memory_space<vmem>>, vector<256x4xbf16>
    tpu.vector_store %arg6[%c0_109, %c0_110], %286 {strides = array<i32>} : memref<256x36xbf16, #tpu.memory_space<vmem>>, vector<256x4xbf16>,
    %c16_i32_111 = arith.constant 16 : i32
    %288 = tpu.dynamic_rotate %261 by %c16_i32_111 dim 0 : vector<256x4xf32>, i32 -> vector<256x4xf32>
    %c-1_i32_112 = arith.constant -1 : i32
    %289 = vector.broadcast %c-1_i32_112 : i32 to vector<256x1xi32>
    %290 = arith.addi %5, %289 : vector<256x1xi32>
    %c0_i32_113 = arith.constant 0 : i32
    %291 = vector.broadcast %c0_i32_113 : i32 to vector<256x1xi32>
    %292 = arith.cmpi sge, %290, %291 : vector<256x1xi32>
    %c-1_i32_114 = arith.constant -1 : i32
    %293 = vector.broadcast %c-1_i32_114 : i32 to vector<256x1xi32>
    %294 = arith.addi %5, %293 : vector<256x1xi32>
    %c16_i32_115 = arith.constant 16 : i32
    %295 = vector.broadcast %c16_i32_115 : i32 to vector<256x1xi32>
    %296 = arith.cmpi slt, %294, %295 : vector<256x1xi32>
    %297 = arith.andi %292, %296 : vector<256x1xi1>
    %c0_i32_116 = arith.constant 0 : i32
    %298 = vector.broadcast %c0_i32_116 : i32 to vector<256x1xi32>
    %299 = arith.addi %7, %298 : vector<256x1xi32>
    %c0_i32_117 = arith.constant 0 : i32
    %300 = vector.broadcast %c0_i32_117 : i32 to vector<256x1xi32>
    %301 = arith.cmpi sge, %299, %300 : vector<256x1xi32>
    %302 = arith.andi %297, %301 : vector<256x1xi1>
    %c0_i32_118 = arith.constant 0 : i32
    %303 = vector.broadcast %c0_i32_118 : i32 to vector<256x1xi32>
    %304 = arith.addi %7, %303 : vector<256x1xi32>
    %c16_i32_119 = arith.constant 16 : i32
    %305 = vector.broadcast %c16_i32_119 : i32 to vector<256x1xi32>
    %306 = arith.cmpi slt, %304, %305 : vector<256x1xi32>
    %307 = arith.andi %302, %306 : vector<256x1xi1>
    %cst_120 = arith.constant 0.000000e+00 : f32
    %308 = vector.shape_cast %307 : vector<256x1xi1> to vector<256x1xi1>
    %309 = vector.broadcast %308 : vector<256x1xi1> to vector<256x4xi1>
    %310 = vector.broadcast %cst_120 : f32 to vector<256x4xf32>
    %311 = arith.select %309, %288, %310 : vector<256x4xi1>, vector<256x4xf32>
    %312 = arith.truncf %311 : vector<256x4xf32> to vector<256x4xbf16>
    %c0_121 = arith.constant 0 : index
    %c4_122 = arith.constant 4 : index
    %313 = vector.load %arg6[%c0_121, %c4_122] : memref<256x36xbf16, #tpu.memory_space<vmem>>, vector<256x4xbf16>
    tpu.vector_store %arg6[%c0_121, %c4_122], %312 {strides = array<i32>} : memref<256x36xbf16, #tpu.memory_space<vmem>>, vector<256x4xbf16>,
    %c15_i32_123 = arith.constant 15 : i32
    %314 = tpu.dynamic_rotate %261 by %c15_i32_123 dim 0 : vector<256x4xf32>, i32 -> vector<256x4xf32>
    %c-1_i32_124 = arith.constant -1 : i32
    %315 = vector.broadcast %c-1_i32_124 : i32 to vector<256x1xi32>
    %316 = arith.addi %5, %315 : vector<256x1xi32>
    %c0_i32_125 = arith.constant 0 : i32
    %317 = vector.broadcast %c0_i32_125 : i32 to vector<256x1xi32>
    %318 = arith.cmpi sge, %316, %317 : vector<256x1xi32>
    %c-1_i32_126 = arith.constant -1 : i32
    %319 = vector.broadcast %c-1_i32_126 : i32 to vector<256x1xi32>
    %320 = arith.addi %5, %319 : vector<256x1xi32>
    %c16_i32_127 = arith.constant 16 : i32
    %321 = vector.broadcast %c16_i32_127 : i32 to vector<256x1xi32>
    %322 = arith.cmpi slt, %320, %321 : vector<256x1xi32>
    %323 = arith.andi %318, %322 : vector<256x1xi1>
    %c1_i32_128 = arith.constant 1 : i32
    %324 = vector.broadcast %c1_i32_128 : i32 to vector<256x1xi32>
    %325 = arith.addi %7, %324 : vector<256x1xi32>
    %c0_i32_129 = arith.constant 0 : i32
    %326 = vector.broadcast %c0_i32_129 : i32 to vector<256x1xi32>
    %327 = arith.cmpi sge, %325, %326 : vector<256x1xi32>
    %328 = arith.andi %323, %327 : vector<256x1xi1>
    %c1_i32_130 = arith.constant 1 : i32
    %329 = vector.broadcast %c1_i32_130 : i32 to vector<256x1xi32>
    %330 = arith.addi %7, %329 : vector<256x1xi32>
    %c16_i32_131 = arith.constant 16 : i32
    %331 = vector.broadcast %c16_i32_131 : i32 to vector<256x1xi32>
    %332 = arith.cmpi slt, %330, %331 : vector<256x1xi32>
    %333 = arith.andi %328, %332 : vector<256x1xi1>
    %cst_132 = arith.constant 0.000000e+00 : f32
    %334 = vector.shape_cast %333 : vector<256x1xi1> to vector<256x1xi1>
    %335 = vector.broadcast %334 : vector<256x1xi1> to vector<256x4xi1>
    %336 = vector.broadcast %cst_132 : f32 to vector<256x4xf32>
    %337 = arith.select %335, %314, %336 : vector<256x4xi1>, vector<256x4xf32>
    %338 = arith.truncf %337 : vector<256x4xf32> to vector<256x4xbf16>
    %c0_133 = arith.constant 0 : index
    %c8_134 = arith.constant 8 : index
    %339 = vector.load %arg6[%c0_133, %c8_134] : memref<256x36xbf16, #tpu.memory_space<vmem>>, vector<256x4xbf16>
    tpu.vector_store %arg6[%c0_133, %c8_134], %338 {strides = array<i32>} : memref<256x36xbf16, #tpu.memory_space<vmem>>, vector<256x4xbf16>,
    %c1_i32_135 = arith.constant 1 : i32
    %340 = tpu.dynamic_rotate %261 by %c1_i32_135 dim 0 : vector<256x4xf32>, i32 -> vector<256x4xf32>
    %c0_i32_136 = arith.constant 0 : i32
    %341 = vector.broadcast %c0_i32_136 : i32 to vector<256x1xi32>
    %342 = arith.addi %5, %341 : vector<256x1xi32>
    %c0_i32_137 = arith.constant 0 : i32
    %343 = vector.broadcast %c0_i32_137 : i32 to vector<256x1xi32>
    %344 = arith.cmpi sge, %342, %343 : vector<256x1xi32>
    %c0_i32_138 = arith.constant 0 : i32
    %345 = vector.broadcast %c0_i32_138 : i32 to vector<256x1xi32>
    %346 = arith.addi %5, %345 : vector<256x1xi32>
    %c16_i32_139 = arith.constant 16 : i32
    %347 = vector.broadcast %c16_i32_139 : i32 to vector<256x1xi32>
    %348 = arith.cmpi slt, %346, %347 : vector<256x1xi32>
    %349 = arith.andi %344, %348 : vector<256x1xi1>
    %c-1_i32_140 = arith.constant -1 : i32
    %350 = vector.broadcast %c-1_i32_140 : i32 to vector<256x1xi32>
    %351 = arith.addi %7, %350 : vector<256x1xi32>
    %c0_i32_141 = arith.constant 0 : i32
    %352 = vector.broadcast %c0_i32_141 : i32 to vector<256x1xi32>
    %353 = arith.cmpi sge, %351, %352 : vector<256x1xi32>
    %354 = arith.andi %349, %353 : vector<256x1xi1>
    %c-1_i32_142 = arith.constant -1 : i32
    %355 = vector.broadcast %c-1_i32_142 : i32 to vector<256x1xi32>
    %356 = arith.addi %7, %355 : vector<256x1xi32>
    %c16_i32_143 = arith.constant 16 : i32
    %357 = vector.broadcast %c16_i32_143 : i32 to vector<256x1xi32>
    %358 = arith.cmpi slt, %356, %357 : vector<256x1xi32>
    %359 = arith.andi %354, %358 : vector<256x1xi1>
    %cst_144 = arith.constant 0.000000e+00 : f32
    %360 = vector.shape_cast %359 : vector<256x1xi1> to vector<256x1xi1>
    %361 = vector.broadcast %360 : vector<256x1xi1> to vector<256x4xi1>
    %362 = vector.broadcast %cst_144 : f32 to vector<256x4xf32>
    %363 = arith.select %361, %340, %362 : vector<256x4xi1>, vector<256x4xf32>
    %364 = arith.truncf %363 : vector<256x4xf32> to vector<256x4xbf16>
    %c0_145 = arith.constant 0 : index
    %c12_146 = arith.constant 12 : index
    %365 = vector.load %arg6[%c0_145, %c12_146] : memref<256x36xbf16, #tpu.memory_space<vmem>>, vector<256x4xbf16>
    tpu.vector_store %arg6[%c0_145, %c12_146], %364 {strides = array<i32>} : memref<256x36xbf16, #tpu.memory_space<vmem>>, vector<256x4xbf16>,
    %c0_i32_147 = arith.constant 0 : i32
    %366 = vector.broadcast %c0_i32_147 : i32 to vector<256x1xi32>
    %367 = arith.addi %5, %366 : vector<256x1xi32>
    %c0_i32_148 = arith.constant 0 : i32
    %368 = vector.broadcast %c0_i32_148 : i32 to vector<256x1xi32>
    %369 = arith.cmpi sge, %367, %368 : vector<256x1xi32>
    %c0_i32_149 = arith.constant 0 : i32
    %370 = vector.broadcast %c0_i32_149 : i32 to vector<256x1xi32>
    %371 = arith.addi %5, %370 : vector<256x1xi32>
    %c16_i32_150 = arith.constant 16 : i32
    %372 = vector.broadcast %c16_i32_150 : i32 to vector<256x1xi32>
    %373 = arith.cmpi slt, %371, %372 : vector<256x1xi32>
    %374 = arith.andi %369, %373 : vector<256x1xi1>
    %c0_i32_151 = arith.constant 0 : i32
    %375 = vector.broadcast %c0_i32_151 : i32 to vector<256x1xi32>
    %376 = arith.addi %7, %375 : vector<256x1xi32>
    %c0_i32_152 = arith.constant 0 : i32
    %377 = vector.broadcast %c0_i32_152 : i32 to vector<256x1xi32>
    %378 = arith.cmpi sge, %376, %377 : vector<256x1xi32>
    %379 = arith.andi %374, %378 : vector<256x1xi1>
    %c0_i32_153 = arith.constant 0 : i32
    %380 = vector.broadcast %c0_i32_153 : i32 to vector<256x1xi32>
    %381 = arith.addi %7, %380 : vector<256x1xi32>
    %c16_i32_154 = arith.constant 16 : i32
    %382 = vector.broadcast %c16_i32_154 : i32 to vector<256x1xi32>
    %383 = arith.cmpi slt, %381, %382 : vector<256x1xi32>
    %384 = arith.andi %379, %383 : vector<256x1xi1>
    %cst_155 = arith.constant 0.000000e+00 : f32
    %385 = vector.shape_cast %384 : vector<256x1xi1> to vector<256x1xi1>
    %386 = vector.broadcast %385 : vector<256x1xi1> to vector<256x4xi1>
    %387 = vector.broadcast %cst_155 : f32 to vector<256x4xf32>
    %388 = arith.select %386, %261, %387 : vector<256x4xi1>, vector<256x4xf32>
    %389 = arith.truncf %388 : vector<256x4xf32> to vector<256x4xbf16>
    %c0_156 = arith.constant 0 : index
    %c16_157 = arith.constant 16 : index
    %390 = vector.load %arg6[%c0_156, %c16_157] : memref<256x36xbf16, #tpu.memory_space<vmem>>, vector<256x4xbf16>
    tpu.vector_store %arg6[%c0_156, %c16_157], %389 {strides = array<i32>} : memref<256x36xbf16, #tpu.memory_space<vmem>>, vector<256x4xbf16>,
    %c255_i32_158 = arith.constant 255 : i32
    %391 = tpu.dynamic_rotate %261 by %c255_i32_158 dim 0 : vector<256x4xf32>, i32 -> vector<256x4xf32>
    %c0_i32_159 = arith.constant 0 : i32
    %392 = vector.broadcast %c0_i32_159 : i32 to vector<256x1xi32>
    %393 = arith.addi %5, %392 : vector<256x1xi32>
    %c0_i32_160 = arith.constant 0 : i32
    %394 = vector.broadcast %c0_i32_160 : i32 to vector<256x1xi32>
    %395 = arith.cmpi sge, %393, %394 : vector<256x1xi32>
    %c0_i32_161 = arith.constant 0 : i32
    %396 = vector.broadcast %c0_i32_161 : i32 to vector<256x1xi32>
    %397 = arith.addi %5, %396 : vector<256x1xi32>
    %c16_i32_162 = arith.constant 16 : i32
    %398 = vector.broadcast %c16_i32_162 : i32 to vector<256x1xi32>
    %399 = arith.cmpi slt, %397, %398 : vector<256x1xi32>
    %400 = arith.andi %395, %399 : vector<256x1xi1>
    %c1_i32_163 = arith.constant 1 : i32
    %401 = vector.broadcast %c1_i32_163 : i32 to vector<256x1xi32>
    %402 = arith.addi %7, %401 : vector<256x1xi32>
    %c0_i32_164 = arith.constant 0 : i32
    %403 = vector.broadcast %c0_i32_164 : i32 to vector<256x1xi32>
    %404 = arith.cmpi sge, %402, %403 : vector<256x1xi32>
    %405 = arith.andi %400, %404 : vector<256x1xi1>
    %c1_i32_165 = arith.constant 1 : i32
    %406 = vector.broadcast %c1_i32_165 : i32 to vector<256x1xi32>
    %407 = arith.addi %7, %406 : vector<256x1xi32>
    %c16_i32_166 = arith.constant 16 : i32
    %408 = vector.broadcast %c16_i32_166 : i32 to vector<256x1xi32>
    %409 = arith.cmpi slt, %407, %408 : vector<256x1xi32>
    %410 = arith.andi %405, %409 : vector<256x1xi1>
    %cst_167 = arith.constant 0.000000e+00 : f32
    %411 = vector.shape_cast %410 : vector<256x1xi1> to vector<256x1xi1>
    %412 = vector.broadcast %411 : vector<256x1xi1> to vector<256x4xi1>
    %413 = vector.broadcast %cst_167 : f32 to vector<256x4xf32>
    %414 = arith.select %412, %391, %413 : vector<256x4xi1>, vector<256x4xf32>
    %415 = arith.truncf %414 : vector<256x4xf32> to vector<256x4xbf16>
    %c0_168 = arith.constant 0 : index
    %c20_169 = arith.constant 20 : index
    %416 = vector.load %arg6[%c0_168, %c20_169] : memref<256x36xbf16, #tpu.memory_space<vmem>>, vector<256x4xbf16>
    tpu.vector_store %arg6[%c0_168, %c20_169], %415 {strides = array<i32>} : memref<256x36xbf16, #tpu.memory_space<vmem>>, vector<256x4xbf16>,
    %c241_i32_170 = arith.constant 241 : i32
    %417 = tpu.dynamic_rotate %261 by %c241_i32_170 dim 0 : vector<256x4xf32>, i32 -> vector<256x4xf32>
    %c1_i32_171 = arith.constant 1 : i32
    %418 = vector.broadcast %c1_i32_171 : i32 to vector<256x1xi32>
    %419 = arith.addi %5, %418 : vector<256x1xi32>
    %c0_i32_172 = arith.constant 0 : i32
    %420 = vector.broadcast %c0_i32_172 : i32 to vector<256x1xi32>
    %421 = arith.cmpi sge, %419, %420 : vector<256x1xi32>
    %c1_i32_173 = arith.constant 1 : i32
    %422 = vector.broadcast %c1_i32_173 : i32 to vector<256x1xi32>
    %423 = arith.addi %5, %422 : vector<256x1xi32>
    %c16_i32_174 = arith.constant 16 : i32
    %424 = vector.broadcast %c16_i32_174 : i32 to vector<256x1xi32>
    %425 = arith.cmpi slt, %423, %424 : vector<256x1xi32>
    %426 = arith.andi %421, %425 : vector<256x1xi1>
    %c-1_i32_175 = arith.constant -1 : i32
    %427 = vector.broadcast %c-1_i32_175 : i32 to vector<256x1xi32>
    %428 = arith.addi %7, %427 : vector<256x1xi32>
    %c0_i32_176 = arith.constant 0 : i32
    %429 = vector.broadcast %c0_i32_176 : i32 to vector<256x1xi32>
    %430 = arith.cmpi sge, %428, %429 : vector<256x1xi32>
    %431 = arith.andi %426, %430 : vector<256x1xi1>
    %c-1_i32_177 = arith.constant -1 : i32
    %432 = vector.broadcast %c-1_i32_177 : i32 to vector<256x1xi32>
    %433 = arith.addi %7, %432 : vector<256x1xi32>
    %c16_i32_178 = arith.constant 16 : i32
    %434 = vector.broadcast %c16_i32_178 : i32 to vector<256x1xi32>
    %435 = arith.cmpi slt, %433, %434 : vector<256x1xi32>
    %436 = arith.andi %431, %435 : vector<256x1xi1>
    %cst_179 = arith.constant 0.000000e+00 : f32
    %437 = vector.shape_cast %436 : vector<256x1xi1> to vector<256x1xi1>
    %438 = vector.broadcast %437 : vector<256x1xi1> to vector<256x4xi1>
    %439 = vector.broadcast %cst_179 : f32 to vector<256x4xf32>
    %440 = arith.select %438, %417, %439 : vector<256x4xi1>, vector<256x4xf32>
    %441 = arith.truncf %440 : vector<256x4xf32> to vector<256x4xbf16>
    %c0_180 = arith.constant 0 : index
    %c24_181 = arith.constant 24 : index
    %442 = vector.load %arg6[%c0_180, %c24_181] : memref<256x36xbf16, #tpu.memory_space<vmem>>, vector<256x4xbf16>
    tpu.vector_store %arg6[%c0_180, %c24_181], %441 {strides = array<i32>} : memref<256x36xbf16, #tpu.memory_space<vmem>>, vector<256x4xbf16>,
    %c240_i32_182 = arith.constant 240 : i32
    %443 = tpu.dynamic_rotate %261 by %c240_i32_182 dim 0 : vector<256x4xf32>, i32 -> vector<256x4xf32>
    %c1_i32_183 = arith.constant 1 : i32
    %444 = vector.broadcast %c1_i32_183 : i32 to vector<256x1xi32>
    %445 = arith.addi %5, %444 : vector<256x1xi32>
    %c0_i32_184 = arith.constant 0 : i32
    %446 = vector.broadcast %c0_i32_184 : i32 to vector<256x1xi32>
    %447 = arith.cmpi sge, %445, %446 : vector<256x1xi32>
    %c1_i32_185 = arith.constant 1 : i32
    %448 = vector.broadcast %c1_i32_185 : i32 to vector<256x1xi32>
    %449 = arith.addi %5, %448 : vector<256x1xi32>
    %c16_i32_186 = arith.constant 16 : i32
    %450 = vector.broadcast %c16_i32_186 : i32 to vector<256x1xi32>
    %451 = arith.cmpi slt, %449, %450 : vector<256x1xi32>
    %452 = arith.andi %447, %451 : vector<256x1xi1>
    %c0_i32_187 = arith.constant 0 : i32
    %453 = vector.broadcast %c0_i32_187 : i32 to vector<256x1xi32>
    %454 = arith.addi %7, %453 : vector<256x1xi32>
    %c0_i32_188 = arith.constant 0 : i32
    %455 = vector.broadcast %c0_i32_188 : i32 to vector<256x1xi32>
    %456 = arith.cmpi sge, %454, %455 : vector<256x1xi32>
    %457 = arith.andi %452, %456 : vector<256x1xi1>
    %c0_i32_189 = arith.constant 0 : i32
    %458 = vector.broadcast %c0_i32_189 : i32 to vector<256x1xi32>
    %459 = arith.addi %7, %458 : vector<256x1xi32>
    %c16_i32_190 = arith.constant 16 : i32
    %460 = vector.broadcast %c16_i32_190 : i32 to vector<256x1xi32>
    %461 = arith.cmpi slt, %459, %460 : vector<256x1xi32>
    %462 = arith.andi %457, %461 : vector<256x1xi1>
    %cst_191 = arith.constant 0.000000e+00 : f32
    %463 = vector.shape_cast %462 : vector<256x1xi1> to vector<256x1xi1>
    %464 = vector.broadcast %463 : vector<256x1xi1> to vector<256x4xi1>
    %465 = vector.broadcast %cst_191 : f32 to vector<256x4xf32>
    %466 = arith.select %464, %443, %465 : vector<256x4xi1>, vector<256x4xf32>
    %467 = arith.truncf %466 : vector<256x4xf32> to vector<256x4xbf16>
    %c0_192 = arith.constant 0 : index
    %c28_193 = arith.constant 28 : index
    %468 = vector.load %arg6[%c0_192, %c28_193] : memref<256x36xbf16, #tpu.memory_space<vmem>>, vector<256x4xbf16>
    tpu.vector_store %arg6[%c0_192, %c28_193], %467 {strides = array<i32>} : memref<256x36xbf16, #tpu.memory_space<vmem>>, vector<256x4xbf16>,
    %c239_i32_194 = arith.constant 239 : i32
    %469 = tpu.dynamic_rotate %261 by %c239_i32_194 dim 0 : vector<256x4xf32>, i32 -> vector<256x4xf32>
    %c1_i32_195 = arith.constant 1 : i32
    %470 = vector.broadcast %c1_i32_195 : i32 to vector<256x1xi32>
    %471 = arith.addi %5, %470 : vector<256x1xi32>
    %c0_i32_196 = arith.constant 0 : i32
    %472 = vector.broadcast %c0_i32_196 : i32 to vector<256x1xi32>
    %473 = arith.cmpi sge, %471, %472 : vector<256x1xi32>
    %c1_i32_197 = arith.constant 1 : i32
    %474 = vector.broadcast %c1_i32_197 : i32 to vector<256x1xi32>
    %475 = arith.addi %5, %474 : vector<256x1xi32>
    %c16_i32_198 = arith.constant 16 : i32
    %476 = vector.broadcast %c16_i32_198 : i32 to vector<256x1xi32>
    %477 = arith.cmpi slt, %475, %476 : vector<256x1xi32>
    %478 = arith.andi %473, %477 : vector<256x1xi1>
    %c1_i32_199 = arith.constant 1 : i32
    %479 = vector.broadcast %c1_i32_199 : i32 to vector<256x1xi32>
    %480 = arith.addi %7, %479 : vector<256x1xi32>
    %c0_i32_200 = arith.constant 0 : i32
    %481 = vector.broadcast %c0_i32_200 : i32 to vector<256x1xi32>
    %482 = arith.cmpi sge, %480, %481 : vector<256x1xi32>
    %483 = arith.andi %478, %482 : vector<256x1xi1>
    %c1_i32_201 = arith.constant 1 : i32
    %484 = vector.broadcast %c1_i32_201 : i32 to vector<256x1xi32>
    %485 = arith.addi %7, %484 : vector<256x1xi32>
    %c16_i32_202 = arith.constant 16 : i32
    %486 = vector.broadcast %c16_i32_202 : i32 to vector<256x1xi32>
    %487 = arith.cmpi slt, %485, %486 : vector<256x1xi32>
    %488 = arith.andi %483, %487 : vector<256x1xi1>
    %cst_203 = arith.constant 0.000000e+00 : f32
    %489 = vector.shape_cast %488 : vector<256x1xi1> to vector<256x1xi1>
    %490 = vector.broadcast %489 : vector<256x1xi1> to vector<256x4xi1>
    %491 = vector.broadcast %cst_203 : f32 to vector<256x4xf32>
    %492 = arith.select %490, %469, %491 : vector<256x4xi1>, vector<256x4xf32>
    %493 = arith.truncf %492 : vector<256x4xf32> to vector<256x4xbf16>
    %c0_204 = arith.constant 0 : index
    %c32_205 = arith.constant 32 : index
    %494 = vector.load %arg6[%c0_204, %c32_205] : memref<256x36xbf16, #tpu.memory_space<vmem>>, vector<256x4xbf16>
    tpu.vector_store %arg6[%c0_204, %c32_205], %493 {strides = array<i32>} : memref<256x36xbf16, #tpu.memory_space<vmem>>, vector<256x4xbf16>,
    %c0_206 = arith.constant 0 : index
    %c0_207 = arith.constant 0 : index
    %495 = vector.load %arg6[%c0_206, %c0_207] : memref<256x36xbf16, #tpu.memory_space<vmem>>, vector<256x36xbf16>
    %c0_208 = arith.constant 0 : index
    %c0_209 = arith.constant 0 : index
    %496 = vector.load %arg3[%c0_208, %c0_209] : memref<36x4xbf16, #tpu.memory_space<vmem>>, vector<36x4xbf16>
    %cst_210 = arith.constant dense<0.000000e+00> : vector<256x4xf32>
    %497 = tpu.matmul %495, %496, %cst_210 {dimension_numbers = #tpu.dot_dimension_numbers<[1], [0], [0], [1], [0, 0, 1, 1], [], []>} : vector<256x36xbf16>, vector<36x4xbf16>, vector<256x4xf32> -> vector<256x4xf32>
    %498 = vector.extract_strided_slice %3 {offsets = [5, 0], sizes = [1, 4], strides = [1, 1]} : vector<7x4xf32> to vector<1x4xf32>
    %499 = vector.broadcast %498 : vector<1x4xf32> to vector<256x4xf32>
    %500 = arith.mulf %497, %499 : vector<256x4xf32>
    %501 = vector.extract_strided_slice %3 {offsets = [6, 0], sizes = [1, 4], strides = [1, 1]} : vector<7x4xf32> to vector<1x4xf32>
    %502 = vector.broadcast %501 : vector<1x4xf32> to vector<256x4xf32>
    %503 = arith.addf %500, %502 : vector<256x4xf32>
    %504 = arith.addf %503, %2 : vector<256x4xf32>
    %505 = vector.shape_cast %504 : vector<256x4xf32> to vector<1x16x16x4xf32>
    %c0_211 = arith.constant 0 : index
    %c0_212 = arith.constant 0 : index
    %c0_213 = arith.constant 0 : index
    %c0_214 = arith.constant 0 : index
    %506 = vector.load %arg5[%c0_211, %c0_212, %c0_213, %c0_214] : memref<1x16x16x4xf32, #tpu.memory_space<vmem>>, vector<1x16x16x4xf32>
    tpu.vector_store %arg5[%c0_211, %c0_212, %c0_213, %c0_214], %505 {strides = array<i32>} : memref<1x16x16x4xf32, #tpu.memory_space<vmem>>, vector<1x16x16x4xf32>,
    return
  }
  func.func @transform_0(%arg0: i32) -> (i32, i32, i32, i32) {
    %c0_i32 = arith.constant 0 : i32
    %c0_i32_0 = arith.constant 0 : i32
    %c0_i32_1 = arith.constant 0 : i32
    %c0_i32_2 = arith.constant 0 : i32
    return %arg0, %c0_i32, %c0_i32_0, %c0_i32_1 : i32, i32, i32, i32
  }
  func.func @transform_1(%arg0: i32) -> (i32, i32) {
    %c0_i32 = arith.constant 0 : i32
    %c0_i32_0 = arith.constant 0 : i32
    %c0_i32_1 = arith.constant 0 : i32
    return %c0_i32, %c0_i32_0 : i32, i32
  }
  func.func @transform_2(%arg0: i32) -> (i32, i32) {
    %c0_i32 = arith.constant 0 : i32
    %c0_i32_0 = arith.constant 0 : i32
    %c0_i32_1 = arith.constant 0 : i32
    return %c0_i32, %c0_i32_0 : i32, i32
  }
  func.func @transform_3(%arg0: i32) -> (i32, i32) {
    %c0_i32 = arith.constant 0 : i32
    %c0_i32_0 = arith.constant 0 : i32
    %c0_i32_1 = arith.constant 0 : i32
    return %c0_i32, %c0_i32_0 : i32, i32
  }
  func.func @transform_4(%arg0: i32) -> (i32, i32, i32, i32) {
    %c0_i32 = arith.constant 0 : i32
    %c0_i32_0 = arith.constant 0 : i32
    %c0_i32_1 = arith.constant 0 : i32
    %c0_i32_2 = arith.constant 0 : i32
    return %arg0, %c0_i32, %c0_i32_0, %c0_i32_1 : i32, i32, i32, i32
  }
}

</mosaic_0001>

<llo_original>
// kernel: tpu_custom_call.1
$region0: #{tpu_custom_call.1}
  #allocation0 [shape = 'u32[]', space=smem, size = 0x4, offset = 0x4, fixed_abs, tag = 'smem constant byte address 0x4 - core index']
  #allocation1 [shape = 'u32[144,128]{1,0:T(1,128)}', space=vmem, size = 0x12000, scoped, tag = 'internal scratch']
  #allocation2 [shape = 'bf16[256,36]{1,0:T(8,128)(2,1)}', space=vmem, size = 0x10000, scoped, tag = 'scratch operand']
  %s0 = inlined_call_operand.vmem [shape: f32[2,16,16,4], index: 0, kind: input, shape index: {}]
  %s1 = inlined_call_operand.vmem [shape: bf16[36,4], index: 1, kind: input, shape index: {}]
  %s2 = inlined_call_operand.vmem [shape: bf16[36,4], index: 2, kind: input, shape index: {}]
  %s3 = inlined_call_operand.vmem [shape: f32[7,4], index: 3, kind: input, shape index: {}]
  %s4 = inlined_call_operand.vmem [shape: f32[2,16,16,4], index: 4, kind: output, shape index: {}]
  %s5 = sld [smem:[#allocation0]]
  $region49: #{tpu_custom_call.1} parent=0
    _
  %s7 = ssub.s32 1, %s5
  %s8 = scalar_select 0, %s7, %s5
  loop: start=0, step=1, limit=4
  $region2: #{tpu_custom_call.1} parent=0 // loop_pre_header
    _
  $region3: #{tpu_custom_call.1} parent=0 // loop_header
    %s10 = sphi 0, %s14
    %p11 = scmp.ge.s32.totalorder %s10, 4
    %s20 = sphi 0, %s22
    %s23 = sphi 0, %s20
    %s24 = sphi 0, %s23
    %s40 = sphi 0, %s24
    %s44 = sphi 0, %s44
    %s46 = sphi 0, %s44
    %s47 = sphi 0, %s46
    %s61 = sphi 0, %s47
    %s65 = sphi 0, %s65
    %s67 = sphi 0, %s65
    %s68 = sphi 0, %s67
    %s82 = sphi 0, %s68
    %s86 = sphi 0, %s86
    %s88 = sphi 0, %s86
    %s89 = sphi 0, %s88
    %s103 = sphi 0, %s89
    %s109 = sphi 0, %s111
    %s112 = sphi 0, %s109
    %s113 = sphi 0, %s112
    %s129 = sphi 0, %s113
  $region4: #{tpu_custom_call.1} parent=0 // loop_header_branch
    %13 = sbr.rel (%p11) target = $region8
  $region5: #{tpu_custom_call.1} parent=0 // loop_body
    %s15 = ssub.s32 %s10, 1
    %s16 = ssub.s32 %s10, 2
    %s17 = sadd.s32 %s10, 1
    %s18 = ssub.s32 %s10, %s17
    %p19 = scmp.eq.s32.totalorder %s18, 0
    %s21 = sadd.s32 %s20, 1
    %s22 = scalar_select %p19, %s20, %s21
    %p25 = pneg %p19
    %p26 = scmp.eq.s32.totalorder %s10, 1
    %p27 = por %p25, %p26
    %p28 = scmp.ne.s32.totalorder %s20, %s23
    %p29 = scmp.eq.s32.totalorder %s10, 0
    %p30 = por %p28, %p29
    %p31 = scmp.ne.s32.totalorder %s20, %s23
    %p32 = scmp.eq.s32.totalorder %s15, 1
    %p33 = por %p31, %p32
    %p34 = scmp.ne.s32.totalorder %s23, %s24
    %p35 = scmp.eq.s32.totalorder %s15, 0
    %p36 = por %p34, %p35
    %p37 = scmp.ne.s32.totalorder %s23, %s24
    %p38 = scmp.eq.s32.totalorder %s16, 1
    %p39 = por %p37, %p38
    %p41 = scmp.ne.s32.totalorder %s24, %s40
    %p42 = scmp.eq.s32.totalorder %s16, 0
    %p43 = por %p41, %p42
    %s45 = sadd.s32 %s44, 1
    %p48 = scmp.eq.s32.totalorder %s10, 1
    %p49 = scmp.ne.s32.totalorder %s44, %s46
    %p50 = scmp.eq.s32.totalorder %s10, 0
    %p51 = por %p49, %p50
    %p52 = scmp.ne.s32.totalorder %s44, %s46
    %p53 = scmp.eq.s32.totalorder %s15, 1
    %p54 = por %p52, %p53
    %p55 = scmp.ne.s32.totalorder %s46, %s47
    %p56 = scmp.eq.s32.totalorder %s15, 0
    %p57 = por %p55, %p56
    %p58 = scmp.ne.s32.totalorder %s46, %s47
    %p59 = scmp.eq.s32.totalorder %s16, 1
    %p60 = por %p58, %p59
    %p62 = scmp.ne.s32.totalorder %s47, %s61
    %p63 = scmp.eq.s32.totalorder %s16, 0
    %p64 = por %p62, %p63
    %s66 = sadd.s32 %s65, 1
    %p69 = scmp.eq.s32.totalorder %s10, 1
    %p70 = scmp.ne.s32.totalorder %s65, %s67
    %p71 = scmp.eq.s32.totalorder %s10, 0
    %p72 = por %p70, %p71
    %p73 = scmp.ne.s32.totalorder %s65, %s67
    %p74 = scmp.eq.s32.totalorder %s15, 1
    %p75 = por %p73, %p74
    %p76 = scmp.ne.s32.totalorder %s67, %s68
    %p77 = scmp.eq.s32.totalorder %s15, 0
    %p78 = por %p76, %p77
    %p79 = scmp.ne.s32.totalorder %s67, %s68
    %p80 = scmp.eq.s32.totalorder %s16, 1
    %p81 = por %p79, %p80
    %p83 = scmp.ne.s32.totalorder %s68, %s82
    %p84 = scmp.eq.s32.totalorder %s16, 0
    %p85 = por %p83, %p84
    %s87 = sadd.s32 %s86, 1
    %p90 = scmp.eq.s32.totalorder %s10, 1
    %p91 = scmp.ne.s32.totalorder %s86, %s88
    %p92 = scmp.eq.s32.totalorder %s10, 0
    %p93 = por %p91, %p92
    %p94 = scmp.ne.s32.totalorder %s86, %s88
    %p95 = scmp.eq.s32.totalorder %s15, 1
    %p96 = por %p94, %p95
    %p97 = scmp.ne.s32.totalorder %s88, %s89
    %p98 = scmp.eq.s32.totalorder %s15, 0
    %p99 = por %p97, %p98
    %p100 = scmp.ne.s32.totalorder %s88, %s89
    %p101 = scmp.eq.s32.totalorder %s16, 1
    %p102 = por %p100, %p101
    %p104 = scmp.ne.s32.totalorder %s89, %s103
    %p105 = scmp.eq.s32.totalorder %s16, 0
    %p106 = por %p104, %p105
    %s107 = ssub.s32 %s10, %s17
    %p108 = scmp.eq.s32.totalorder %s107, 0
    %s110 = sadd.s32 %s109, 1
    %s111 = scalar_select %p108, %s109, %s110
    %p114 = pneg %p108
    %p115 = scmp.eq.s32.totalorder %s10, 1
    %p116 = por %p114, %p115
    %p117 = scmp.ne.s32.totalorder %s109, %s112
    %p118 = scmp.eq.s32.totalorder %s10, 0
    %p119 = por %p117, %p118
    %p120 = scmp.ne.s32.totalorder %s109, %s112
    %p121 = scmp.eq.s32.totalorder %s15, 1
    %p122 = por %p120, %p121
    %p123 = scmp.ne.s32.totalorder %s112, %s113
    %p124 = scmp.eq.s32.totalorder %s15, 0
    %p125 = por %p123, %p124
    %p126 = scmp.ne.s32.totalorder %s112, %s113
    %p127 = scmp.eq.s32.totalorder %s16, 1
    %p128 = por %p126, %p127
    %p130 = scmp.ne.s32.totalorder %s113, %s129
    %p131 = scmp.eq.s32.totalorder %s16, 0
    %p132 = por %p130, %p131
    %p133 = scmp.le.s32.totalorder 1, %s10
    %p134 = scmp.lt.s32.totalorder %s10, 3
    %p135 = pnand %p133, %p134
    %p136 = pneg %p135
    // Predicated region
    $region9: #{tpu_custom_call.1} parent=5 // pred_check
      _
    $region10: #{tpu_custom_call.1} parent=5 // pred_check_branch
      %138 = sbr.rel (%p135) target = $region12
    $region11: #{tpu_custom_call.1} parent=5 // pred_region
      %s139 = ssub.s32 %s10, 1
      // Predicated region
      $region13: #{tpu_custom_call.1} parent=11 // pred_check
        %p140 = pneg %p57
      $region14: #{tpu_custom_call.1} parent=11 // pred_check_branch
        %142 = sbr.rel (%p140) target = $region16
      $region15: #{tpu_custom_call.1} parent=11 // pred_region
        _
      $region16: #{tpu_custom_call.1} parent=11 // pred_fallthru
        _
      // Predicated region
      $region17: #{tpu_custom_call.1} parent=11 // pred_check
        %p143 = pneg %p78
      $region18: #{tpu_custom_call.1} parent=11 // pred_check_branch
        %145 = sbr.rel (%p143) target = $region20
      $region19: #{tpu_custom_call.1} parent=11 // pred_region
        _
      $region20: #{tpu_custom_call.1} parent=11 // pred_fallthru
        _
      // Predicated region
      $region21: #{tpu_custom_call.1} parent=11 // pred_check
        %p146 = pneg %p99
      $region22: #{tpu_custom_call.1} parent=11 // pred_check_branch
        %148 = sbr.rel (%p146) target = $region24
      $region23: #{tpu_custom_call.1} parent=11 // pred_region
        _
      $region24: #{tpu_custom_call.1} parent=11 // pred_fallthru
        _
    $region12: #{tpu_custom_call.1} parent=5 // pred_fallthru
      _
    %p149 = scmp.lt.s32.totalorder %s10, 2
    // Predicated region
    $region25: #{tpu_custom_call.1} parent=5 // pred_check
      %p150 = pneg %p149
    $region26: #{tpu_custom_call.1} parent=5 // pred_check_branch
      %152 = sbr.rel (%p150) target = $region28
    $region27: #{tpu_custom_call.1} parent=5 // pred_region
      // Predicated region
      $region29: #{tpu_custom_call.1} parent=27 // pred_check
        %p153 = pneg %p30
      $region30: #{tpu_custom_call.1} parent=27 // pred_check_branch
        %155 = sbr.rel (%p153) target = $region32
      $region31: #{tpu_custom_call.1} parent=27 // pred_region
        %p156 = scmp.lt.s32.totalorder %s10, 1
        %s157 = scalar_select %p156, %s10, 1
        %s158 = smul.addr %s157, 32
        %s159 = smul.addr %s158, 8
        %s160 = scalar_lea.vmem %s0, %s159
      $region32: #{tpu_custom_call.1} parent=27 // pred_fallthru
        _
    $region28: #{tpu_custom_call.1} parent=5 // pred_fallthru
      _
    %p161 = scmp.le.s32.totalorder 1, %s10
    %p162 = scmp.lt.s32.totalorder %s10, 3
    %p163 = pnand %p161, %p162
    %p164 = pneg %p163
    // Predicated region
    $region33: #{tpu_custom_call.1} parent=5 // pred_check
      _
    $region34: #{tpu_custom_call.1} parent=5 // pred_check_branch
      %166 = sbr.rel (%p163) target = $region36
    $region35: #{tpu_custom_call.1} parent=5 // pred_region
      %s167 = ssub.s32 %s10, 1
      %p168 = scmp.lt.s32.totalorder %s15, 1
      %s169 = scalar_select %p168, %s15, 1
      %s170 = smul.addr %s169, 32
      %s171 = smul.addr %s170, 8
      %s172 = scalar_lea.vmem %s0, %s171
      %p173 = pneg %p36
      %p174 = pneg %p33
      %p175 = pneg %p57
      %p176 = pneg %p54
      %p177 = pneg %p78
      %p178 = pneg %p75
      %p179 = pneg %p99
      %p180 = pneg %p96
      %p181 = pneg %p125
      %p182 = pneg %p122
      %p183 = scmp.lt.s32.totalorder %s15, 1
      %s184 = scalar_select %p183, %s15, 1
      %s185 = smul.addr %s184, 32
      %s186 = smul.addr %s185, 8
      %s187 = scalar_lea.vmem %s4, %s186
      %p188 = scmp.lt.s32.totalorder %s15, 1
      %s189 = scalar_select %p188, %s15, 1
      %s190 = smul.addr %s189, 32
      %s191 = smul.addr %s190, 8
      %s192 = scalar_lea.vmem %s0, %s191
      %p193 = scmp.lt.s32.totalorder %s15, 1
      %s194 = scalar_select %p193, %s15, 1
      %s195 = smul.addr %s194, 32
      %s196 = smul.addr %s195, 8
      %s197 = scalar_lea.vmem %s4, %s196
      %v199 = vld [vmem:[%s192] sm:$0xff]
      %v200 = vld [vmem:[%s192 + $0x8] sm:$0xff]
      %v201 = vld [vmem:[%s192 + $0x10] sm:$0xff]
      %v202 = vld [vmem:[%s192 + $0x18] sm:$0xff]
      %v203 = vld [vmem:[%s192 + $0x20] sm:$0xff]
      %v204 = vld [vmem:[%s192 + $0x28] sm:$0xff]
      %v205 = vld [vmem:[%s192 + $0x30] sm:$0xff]
      %v206 = vld [vmem:[%s192 + $0x38] sm:$0xff]
      %v207 = vld [vmem:[%s192 + $0x40] sm:$0xff]
      %v208 = vld [vmem:[%s192 + $0x48] sm:$0xff]
      %v209 = vld [vmem:[%s192 + $0x50] sm:$0xff]
      %v210 = vld [vmem:[%s192 + $0x58] sm:$0xff]
      %v211 = vld [vmem:[%s192 + $0x60] sm:$0xff]
      %v212 = vld [vmem:[%s192 + $0x68] sm:$0xff]
      %v213 = vld [vmem:[%s192 + $0x70] sm:$0xff]
      %v214 = vld [vmem:[%s192 + $0x78] sm:$0xff]
      %v215 = vld [vmem:[%s192 + $0x80] sm:$0xff]
      %v216 = vld [vmem:[%s192 + $0x88] sm:$0xff]
      %v217 = vld [vmem:[%s192 + $0x90] sm:$0xff]
      %v218 = vld [vmem:[%s192 + $0x98] sm:$0xff]
      %v219 = vld [vmem:[%s192 + $0xa0] sm:$0xff]
      %v220 = vld [vmem:[%s192 + $0xa8] sm:$0xff]
      %v221 = vld [vmem:[%s192 + $0xb0] sm:$0xff]
      %v222 = vld [vmem:[%s192 + $0xb8] sm:$0xff]
      %v223 = vld [vmem:[%s192 + $0xc0] sm:$0xff]
      %v224 = vld [vmem:[%s192 + $0xc8] sm:$0xff]
      %v225 = vld [vmem:[%s192 + $0xd0] sm:$0xff]
      %v226 = vld [vmem:[%s192 + $0xd8] sm:$0xff]
      %v227 = vld [vmem:[%s192 + $0xe0] sm:$0xff]
      %v228 = vld [vmem:[%s192 + $0xe8] sm:$0xff]
      %v229 = vld [vmem:[%s192 + $0xf0] sm:$0xff]
      %v230 = vld [vmem:[%s192 + $0xf8] sm:$0xff]
      %v231 = vld [vmem:[%s3] sm:$0x7f]
      %v232 = vlaneseq
      %v233 = vshrl.u32 %v232, 7
      %v234 = vadd.s32 %v233, 8
      %v235 = vlaneseq
      %v236 = vshrl.u32 %v235, 7
      %v237 = vsub.s32 0, %v236
      %v238 = vrot.slane %v231, %v237
      %v239 = vmul.f32 %v199, %v238
      %v240 = vmul.f32 %v200, %v238
      %v241 = vmul.f32 %v201, %v238
      %v242 = vmul.f32 %v202, %v238
      %v243 = vmul.f32 %v203, %v238
      %v244 = vmul.f32 %v204, %v238
      %v245 = vmul.f32 %v205, %v238
      %v246 = vmul.f32 %v206, %v238
      %v247 = vmul.f32 %v207, %v238
      %v248 = vmul.f32 %v208, %v238
      %v249 = vmul.f32 %v209, %v238
      %v250 = vmul.f32 %v210, %v238
      %v251 = vmul.f32 %v211, %v238
      %v252 = vmul.f32 %v212, %v238
      %v253 = vmul.f32 %v213, %v238
      %v254 = vmul.f32 %v214, %v238
      %v255 = vmul.f32 %v215, %v238
      %v256 = vmul.f32 %v216, %v238
      %v257 = vmul.f32 %v217, %v238
      %v258 = vmul.f32 %v218, %v238
      %v259 = vmul.f32 %v219, %v238
      %v260 = vmul.f32 %v220, %v238
      %v261 = vmul.f32 %v221, %v238
      %v262 = vmul.f32 %v222, %v238
      %v263 = vmul.f32 %v223, %v238
      %v264 = vmul.f32 %v224, %v238
      %v265 = vmul.f32 %v225, %v238
      %v266 = vmul.f32 %v226, %v238
      %v267 = vmul.f32 %v227, %v238
      %v268 = vmul.f32 %v228, %v238
      %v269 = vmul.f32 %v229, %v238
      %v270 = vmul.f32 %v230, %v238
      %v271 = vlaneseq
      %v272 = vshrl.u32 %v271, 7
      %v273 = vsub.s32 1, %v272
      %v274 = vrot.slane %v231, %v273
      %v275 = vadd.f32 %v239, %v274
      %v276 = vadd.f32 %v240, %v274
      %v277 = vadd.f32 %v241, %v274
      %v278 = vadd.f32 %v242, %v274
      %v279 = vadd.f32 %v243, %v274
      %v280 = vadd.f32 %v244, %v274
      %v281 = vadd.f32 %v245, %v274
      %v282 = vadd.f32 %v246, %v274
      %v283 = vadd.f32 %v247, %v274
      %v284 = vadd.f32 %v248, %v274
      %v285 = vadd.f32 %v249, %v274
      %v286 = vadd.f32 %v250, %v274
      %v287 = vadd.f32 %v251, %v274
      %v288 = vadd.f32 %v252, %v274
      %v289 = vadd.f32 %v253, %v274
      %v290 = vadd.f32 %v254, %v274
      %v291 = vadd.f32 %v255, %v274
      %v292 = vadd.f32 %v256, %v274
      %v293 = vadd.f32 %v257, %v274
      %v294 = vadd.f32 %v258, %v274
      %v295 = vadd.f32 %v259, %v274
      %v296 = vadd.f32 %v260, %v274
      %v297 = vadd.f32 %v261, %v274
      %v298 = vadd.f32 %v262, %v274
      %v299 = vadd.f32 %v263, %v274
      %v300 = vadd.f32 %v264, %v274
      %v301 = vadd.f32 %v265, %v274
      %v302 = vadd.f32 %v266, %v274
      %v303 = vadd.f32 %v267, %v274
      %v304 = vadd.f32 %v268, %v274
      %v305 = vadd.f32 %v269, %v274
      %v306 = vadd.f32 %v270, %v274
      %v307 = vrot.slane %v275, 7
      %v308 = vrot.slane %v276, 7
      %v309 = vrot.slane %v277, 7
      %v310 = vrot.slane %v278, 7
      %v311 = vrot.slane %v279, 7
      %v312 = vrot.slane %v280, 7
      %v313 = vrot.slane %v281, 7
      %v314 = vrot.slane %v282, 7
      %v315 = vrot.slane %v283, 7
      %v316 = vrot.slane %v284, 7
      %v317 = vrot.slane %v285, 7
      %v318 = vrot.slane %v286, 7
      %v319 = vrot.slane %v287, 7
      %v320 = vrot.slane %v288, 7
      %v321 = vrot.slane %v289, 7
      %v322 = vrot.slane %v290, 7
      %v323 = vrot.slane %v291, 7
      %v324 = vrot.slane %v292, 7
      %v325 = vrot.slane %v293, 7
      %v326 = vrot.slane %v294, 7
      %v327 = vrot.slane %v295, 7
      %v328 = vrot.slane %v296, 7
      %v329 = vrot.slane %v297, 7
      %v330 = vrot.slane %v298, 7
      %v331 = vrot.slane %v299, 7
      %v332 = vrot.slane %v300, 7
      %v333 = vrot.slane %v301, 7
      %v334 = vrot.slane %v302, 7
      %v335 = vrot.slane %v303, 7
      %v336 = vrot.slane %v304, 7
      %v337 = vrot.slane %v306, 7
      %vm338 = vcmp.lt.s32.totalorder %v233, 1
      %v339 = vsel %vm338, %v335, %v336
      %v340 = vsel %vm338, %v334, %v335
      %v341 = vsel %vm338, %v333, %v334
      %v342 = vsel %vm338, %v332, %v333
      %v343 = vsel %vm338, %v331, %v332
      %v344 = vsel %vm338, %v330, %v331
      %v345 = vsel %vm338, %v329, %v330
      %v346 = vsel %vm338, %v328, %v329
      %v347 = vsel %vm338, %v327, %v328
      %v348 = vsel %vm338, %v326, %v327
      %v349 = vsel %vm338, %v325, %v326
      %v350 = vsel %vm338, %v324, %v325
      %v351 = vsel %vm338, %v323, %v324
      %v352 = vsel %vm338, %v322, %v323
      %v353 = vsel %vm338, %v321, %v322
      %v354 = vsel %vm338, %v320, %v321
      %v355 = vsel %vm338, %v319, %v320
      %v356 = vsel %vm338, %v318, %v319
      %v357 = vsel %vm338, %v317, %v318
      %v358 = vsel %vm338, %v316, %v317
      %v359 = vsel %vm338, %v315, %v316
      %v360 = vsel %vm338, %v314, %v315
      %v361 = vsel %vm338, %v313, %v314
      %v362 = vsel %vm338, %v312, %v313
      %v363 = vsel %vm338, %v311, %v312
      %v364 = vsel %vm338, %v310, %v311
      %v365 = vsel %vm338, %v309, %v310
      %v366 = vsel %vm338, %v308, %v309
      %v367 = vsel %vm338, %v307, %v308
      %v368 = vsel %vm338, %v337, %v307
      %v369 = vadd.s32 %v233, 4294967295
      %v370 = vadd.s32 %v234, 4294967295
      %vm371 = vcmp.ge.s32.totalorder %v369, 0
      %vm372 = vcmp.ge.s32.totalorder %v370, 0
      %vm373 = vcmp.lt.s32.totalorder %v369, 16
      %vm374 = vcmp.lt.s32.totalorder %v370, 16
      %vm375 = vmand %vm371, %vm373
      %vm376 = vmand %vm372, %vm374
      %v377 = vsel %vm375, 1, 0
      %v378 = vsel %vm376, 1, 0
      %vm379 = vcmp.eq.s32.totalorder %v377, 1
      %vm380 = vcmp.eq.s32.totalorder %v378, 1
      %v381 = vsel %vm379, %v368, 0.0
      %v382 = vsel %vm380, %v367, 0.0
      %v383 = vsel %vm379, %v366, 0.0
      %v384 = vsel %vm380, %v365, 0.0
      %v385 = vsel %vm379, %v364, 0.0
      %v386 = vsel %vm380, %v363, 0.0
      %v387 = vsel %vm379, %v362, 0.0
      %v388 = vsel %vm380, %v361, 0.0
      %v389 = vsel %vm379, %v360, 0.0
      %v390 = vsel %vm380, %v359, 0.0
      %v391 = vsel %vm379, %v358, 0.0
      %v392 = vsel %vm380, %v357, 0.0
      %v393 = vsel %vm379, %v356, 0.0
      %v394 = vsel %vm380, %v355, 0.0
      %v395 = vsel %vm379, %v354, 0.0
      %v396 = vsel %vm380, %v353, 0.0
      %v397 = vsel %vm379, %v352, 0.0
      %v398 = vsel %vm380, %v351, 0.0
      %v399 = vsel %vm379, %v350, 0.0
      %v400 = vsel %vm380, %v349, 0.0
      %v401 = vsel %vm379, %v348, 0.0
      %v402 = vsel %vm380, %v347, 0.0
      %v403 = vsel %vm379, %v346, 0.0
      %v404 = vsel %vm380, %v345, 0.0
      %v405 = vsel %vm379, %v344, 0.0
      %v406 = vsel %vm380, %v343, 0.0
      %v407 = vsel %vm379, %v342, 0.0
      %v408 = vsel %vm380, %v341, 0.0
      %v409 = vsel %vm379, %v340, 0.0
      %v410 = vsel %vm380, %v339, 0.0
      %v411 = vpack.c.bf16 0.0, 0.0
      %v412 = vpack.c.bf16 %v382, %v381
      %v413 = vpack.c.bf16 %v384, %v383
      %v414 = vpack.c.bf16 %v386, %v385
      %v415 = vpack.c.bf16 %v388, %v387
      %v416 = vpack.c.bf16 %v390, %v389
      %v417 = vpack.c.bf16 %v392, %v391
      %v418 = vpack.c.bf16 %v394, %v393
      %v419 = vpack.c.bf16 %v396, %v395
      %v420 = vpack.c.bf16 %v398, %v397
      %v421 = vpack.c.bf16 %v400, %v399
      %v422 = vpack.c.bf16 %v402, %v401
      %v423 = vpack.c.bf16 %v404, %v403
      %v424 = vpack.c.bf16 %v406, %v405
      %v425 = vpack.c.bf16 %v408, %v407
      %v426 = vpack.c.bf16 %v410, %v409
      %v443 = vunpack.c.l.b16 %v411
      %v444 = vunpack.c.h.b16 %v411
      %v445 = vunpack.c.l.b16 %v412
      %v446 = vunpack.c.h.b16 %v412
      %v447 = vunpack.c.l.b16 %v413
      %v448 = vunpack.c.h.b16 %v413
      %v449 = vunpack.c.l.b16 %v414
      %v450 = vunpack.c.h.b16 %v414
      %v451 = vunpack.c.l.b16 %v415
      %v452 = vunpack.c.h.b16 %v415
      %v453 = vunpack.c.l.b16 %v416
      %v454 = vunpack.c.h.b16 %v416
      %v455 = vunpack.c.l.b16 %v417
      %v456 = vunpack.c.h.b16 %v417
      %v457 = vunpack.c.l.b16 %v418
      %v458 = vunpack.c.h.b16 %v418
      %v459 = vunpack.c.l.b16 %v419
      %v460 = vunpack.c.h.b16 %v419
      %v461 = vunpack.c.l.b16 %v420
      %v462 = vunpack.c.h.b16 %v420
      %v463 = vunpack.c.l.b16 %v421
      %v464 = vunpack.c.h.b16 %v421
      %v465 = vunpack.c.l.b16 %v422
      %v466 = vunpack.c.h.b16 %v422
      %v467 = vunpack.c.l.b16 %v423
      %v468 = vunpack.c.h.b16 %v423
      %v469 = vunpack.c.l.b16 %v424
      %v470 = vunpack.c.h.b16 %v424
      %v471 = vunpack.c.l.b16 %v425
      %v472 = vunpack.c.h.b16 %v425
      %v473 = vunpack.c.l.b16 %v426
      %v474 = vunpack.c.h.b16 %v426
      %v475 = vpack.c.b16 %v443, %v443
      %v476 = vpack.c.b16 %v444, %v444
      %v477 = vpack.c.b16 %v445, %v445
      %v478 = vpack.c.b16 %v446, %v446
      %v479 = vpack.c.b16 %v447, %v447
      %v480 = vpack.c.b16 %v448, %v448
      %v481 = vpack.c.b16 %v449, %v449
      %v482 = vpack.c.b16 %v450, %v450
      %v483 = vpack.c.b16 %v451, %v451
      %v484 = vpack.c.b16 %v452, %v452
      %v485 = vpack.c.b16 %v453, %v453
      %v486 = vpack.c.b16 %v454, %v454
      %v487 = vpack.c.b16 %v455, %v455
      %v488 = vpack.c.b16 %v456, %v456
      %v489 = vpack.c.b16 %v457, %v457
      %v490 = vpack.c.b16 %v458, %v458
      %v491 = vpack.c.b16 %v459, %v459
      %v492 = vpack.c.b16 %v460, %v460
      %v493 = vpack.c.b16 %v461, %v461
      %v494 = vpack.c.b16 %v462, %v462
      %v495 = vpack.c.b16 %v463, %v463
      %v496 = vpack.c.b16 %v464, %v464
      %v497 = vpack.c.b16 %v465, %v465
      %v498 = vpack.c.b16 %v466, %v466
      %v499 = vpack.c.b16 %v467, %v467
      %v500 = vpack.c.b16 %v468, %v468
      %v501 = vpack.c.b16 %v469, %v469
      %v502 = vpack.c.b16 %v470, %v470
      %v503 = vpack.c.b16 %v471, %v471
      %v504 = vpack.c.b16 %v472, %v472
      %v505 = vpack.c.b16 %v473, %v473
      %v506 = vpack.c.b16 %v474, %v474
      %vm539 = vcmask 27648
      %540 = vst.msk [vmem:[#allocation2] sm:$0xf] %vm539, %v475
      %541 = vst.msk [vmem:[#allocation2 + $0x4] sm:$0xf] %vm539, %v476
      %542 = vst.msk [vmem:[#allocation2 + $0x8] sm:$0xf] %vm539, %v477
      %543 = vst.msk [vmem:[#allocation2 + $0xc] sm:$0xf] %vm539, %v478
      %544 = vst.msk [vmem:[#allocation2 + $0x10] sm:$0xf] %vm539, %v479
      %545 = vst.msk [vmem:[#allocation2 + $0x14] sm:$0xf] %vm539, %v480
      %546 = vst.msk [vmem:[#allocation2 + $0x18] sm:$0xf] %vm539, %v481
      %547 = vst.msk [vmem:[#allocation2 + $0x1c] sm:$0xf] %vm539, %v482
      %548 = vst.msk [vmem:[#allocation2 + $0x20] sm:$0xf] %vm539, %v483
      %549 = vst.msk [vmem:[#allocation2 + $0x24] sm:$0xf] %vm539, %v484
      %550 = vst.msk [vmem:[#allocation2 + $0x28] sm:$0xf] %vm539, %v485
      %551 = vst.msk [vmem:[#allocation2 + $0x2c] sm:$0xf] %vm539, %v486
      %552 = vst.msk [vmem:[#allocation2 + $0x30] sm:$0xf] %vm539, %v487
      %553 = vst.msk [vmem:[#allocation2 + $0x34] sm:$0xf] %vm539, %v488
      %554 = vst.msk [vmem:[#allocation2 + $0x38] sm:$0xf] %vm539, %v489
      %555 = vst.msk [vmem:[#allocation2 + $0x3c] sm:$0xf] %vm539, %v490
      %556 = vst.msk [vmem:[#allocation2 + $0x40] sm:$0xf] %vm539, %v491
      %557 = vst.msk [vmem:[#allocation2 + $0x44] sm:$0xf] %vm539, %v492
      %558 = vst.msk [vmem:[#allocation2 + $0x48] sm:$0xf] %vm539, %v493
      %559 = vst.msk [vmem:[#allocation2 + $0x4c] sm:$0xf] %vm539, %v494
      %560 = vst.msk [vmem:[#allocation2 + $0x50] sm:$0xf] %vm539, %v495
      %561 = vst.msk [vmem:[#allocation2 + $0x54] sm:$0xf] %vm539, %v496
      %562 = vst.msk [vmem:[#allocation2 + $0x58] sm:$0xf] %vm539, %v497
      %563 = vst.msk [vmem:[#allocation2 + $0x5c] sm:$0xf] %vm539, %v498
      %564 = vst.msk [vmem:[#allocation2 + $0x60] sm:$0xf] %vm539, %v499
      %565 = vst.msk [vmem:[#allocation2 + $0x64] sm:$0xf] %vm539, %v500
      %566 = vst.msk [vmem:[#allocation2 + $0x68] sm:$0xf] %vm539, %v501
      %567 = vst.msk [vmem:[#allocation2 + $0x6c] sm:$0xf] %vm539, %v502
      %568 = vst.msk [vmem:[#allocation2 + $0x70] sm:$0xf] %vm539, %v503
      %569 = vst.msk [vmem:[#allocation2 + $0x74] sm:$0xf] %vm539, %v504
      %570 = vst.msk [vmem:[#allocation2 + $0x78] sm:$0xf] %vm539, %v505
      %571 = vst.msk [vmem:[#allocation2 + $0x7c] sm:$0xf] %vm539, %v506
      %vm572 = vcmp.ge.s32.totalorder %v233, 0
      %vm573 = vcmp.ge.s32.totalorder %v234, 0
      %vm574 = vcmp.lt.s32.totalorder %v233, 16
      %vm575 = vcmp.lt.s32.totalorder %v234, 16
      %vm576 = vmand %vm572, %vm574
      %vm577 = vmand %vm573, %vm575
      %v578 = vsel %vm576, 1, 0
      %v579 = vsel %vm577, 1, 0
      %vm580 = vcmp.eq.s32.totalorder %v578, 1
      %vm581 = vcmp.eq.s32.totalorder %v579, 1
      %v582 = vsel %vm580, %v275, 0.0
      %v583 = vsel %vm581, %v276, 0.0
      %v584 = vsel %vm580, %v277, 0.0
      %v585 = vsel %vm581, %v278, 0.0
      %v586 = vsel %vm580, %v279, 0.0
      %v587 = vsel %vm581, %v280, 0.0
      %v588 = vsel %vm580, %v281, 0.0
      %v589 = vsel %vm581, %v282, 0.0
      %v590 = vsel %vm580, %v283, 0.0
      %v591 = vsel %vm581, %v284, 0.0
      %v592 = vsel %vm580, %v285, 0.0
      %v593 = vsel %vm581, %v286, 0.0
      %v594 = vsel %vm580, %v287, 0.0
      %v595 = vsel %vm581, %v288, 0.0
      %v596 = vsel %vm580, %v289, 0.0
      %v597 = vsel %vm581, %v290, 0.0
      %v598 = vsel %vm580, %v291, 0.0
      %v599 = vsel %vm581, %v292, 0.0
      %v600 = vsel %vm580, %v293, 0.0
      %v601 = vsel %vm581, %v294, 0.0
      %v602 = vsel %vm580, %v295, 0.0
      %v603 = vsel %vm581, %v296, 0.0
      %v604 = vsel %vm580, %v297, 0.0
      %v605 = vsel %vm581, %v298, 0.0
      %v606 = vsel %vm580, %v299, 0.0
      %v607 = vsel %vm581, %v300, 0.0
      %v608 = vsel %vm580, %v301, 0.0
      %v609 = vsel %vm581, %v302, 0.0
      %v610 = vsel %vm580, %v303, 0.0
      %v611 = vsel %vm581, %v304, 0.0
      %v612 = vpack.c.bf16 %v583, %v582
      %v613 = vpack.c.bf16 %v585, %v584
      %v614 = vpack.c.bf16 %v587, %v586
      %v615 = vpack.c.bf16 %v589, %v588
      %v616 = vpack.c.bf16 %v591, %v590
      %v617 = vpack.c.bf16 %v593, %v592
      %v618 = vpack.c.bf16 %v595, %v594
      %v619 = vpack.c.bf16 %v597, %v596
      %v620 = vpack.c.bf16 %v599, %v598
      %v621 = vpack.c.bf16 %v601, %v600
      %v622 = vpack.c.bf16 %v603, %v602
      %v623 = vpack.c.bf16 %v605, %v604
      %v624 = vpack.c.bf16 %v607, %v606
      %v625 = vpack.c.bf16 %v609, %v608
      %v626 = vpack.c.bf16 %v611, %v610
      %v642 = vunpack.c.l.b16 %v612
      %v643 = vunpack.c.h.b16 %v612
      %v644 = vunpack.c.l.b16 %v613
      %v645 = vunpack.c.h.b16 %v613
      %v646 = vunpack.c.l.b16 %v614
      %v647 = vunpack.c.h.b16 %v614
      %v648 = vunpack.c.l.b16 %v615
      %v649 = vunpack.c.h.b16 %v615
      %v650 = vunpack.c.l.b16 %v616
      %v651 = vunpack.c.h.b16 %v616
      %v652 = vunpack.c.l.b16 %v617
      %v653 = vunpack.c.h.b16 %v617
      %v654 = vunpack.c.l.b16 %v618
      %v655 = vunpack.c.h.b16 %v618
      %v656 = vunpack.c.l.b16 %v619
      %v657 = vunpack.c.h.b16 %v619
      %v658 = vunpack.c.l.b16 %v620
      %v659 = vunpack.c.h.b16 %v620
      %v660 = vunpack.c.l.b16 %v621
      %v661 = vunpack.c.h.b16 %v621
      %v662 = vunpack.c.l.b16 %v622
      %v663 = vunpack.c.h.b16 %v622
      %v664 = vunpack.c.l.b16 %v623
      %v665 = vunpack.c.h.b16 %v623
      %v666 = vunpack.c.l.b16 %v624
      %v667 = vunpack.c.h.b16 %v624
      %v668 = vunpack.c.l.b16 %v625
      %v669 = vunpack.c.h.b16 %v625
      %v670 = vunpack.c.l.b16 %v626
      %v671 = vunpack.c.h.b16 %v626
      %v672 = vpack.c.b16 %v642, %v642
      %v673 = vpack.c.b16 %v643, %v643
      %v674 = vpack.c.b16 %v644, %v644
      %v675 = vpack.c.b16 %v645, %v645
      %v676 = vpack.c.b16 %v646, %v646
      %v677 = vpack.c.b16 %v647, %v647
      %v678 = vpack.c.b16 %v648, %v648
      %v679 = vpack.c.b16 %v649, %v649
      %v680 = vpack.c.b16 %v650, %v650
      %v681 = vpack.c.b16 %v651, %v651
      %v682 = vpack.c.b16 %v652, %v652
      %v683 = vpack.c.b16 %v653, %v653
      %v684 = vpack.c.b16 %v654, %v654
      %v685 = vpack.c.b16 %v655, %v655
      %v686 = vpack.c.b16 %v656, %v656
      %v687 = vpack.c.b16 %v657, %v657
      %v688 = vpack.c.b16 %v658, %v658
      %v689 = vpack.c.b16 %v659, %v659
      %v690 = vpack.c.b16 %v660, %v660
      %v691 = vpack.c.b16 %v661, %v661
      %v692 = vpack.c.b16 %v662, %v662
      %v693 = vpack.c.b16 %v663, %v663
      %v694 = vpack.c.b16 %v664, %v664
      %v695 = vpack.c.b16 %v665, %v665
      %v696 = vpack.c.b16 %v666, %v666
      %v697 = vpack.c.b16 %v667, %v667
      %v698 = vpack.c.b16 %v668, %v668
      %v699 = vpack.c.b16 %v669, %v669
      %v700 = vpack.c.b16 %v670, %v670
      %v701 = vpack.c.b16 %v671, %v671
      %702 = vrot.lane.b32.xlu0 %v475, 4
      %v703 = vpop.permute.xlu0 %702
      %704 = vrot.lane.b32.xlu0 %v476, 4
      %v705 = vpop.permute.xlu0 %704
      %706 = vrot.lane.b32.xlu0 %v672, 4
      %v707 = vpop.permute.xlu0 %706
      %708 = vrot.lane.b32.xlu0 %v673, 4
      %v709 = vpop.permute.xlu0 %708
      %710 = vrot.lane.b32.xlu0 %v674, 4
      %v711 = vpop.permute.xlu0 %710
      %712 = vrot.lane.b32.xlu0 %v675, 4
      %v713 = vpop.permute.xlu0 %712
      %714 = vrot.lane.b32.xlu0 %v676, 4
      %v715 = vpop.permute.xlu0 %714
      %716 = vrot.lane.b32.xlu0 %v677, 4
      %v717 = vpop.permute.xlu0 %716
      %718 = vrot.lane.b32.xlu0 %v678, 4
      %v719 = vpop.permute.xlu0 %718
      %720 = vrot.lane.b32.xlu0 %v679, 4
      %v721 = vpop.permute.xlu0 %720
      %722 = vrot.lane.b32.xlu0 %v680, 4
      %v723 = vpop.permute.xlu0 %722
      %724 = vrot.lane.b32.xlu0 %v681, 4
      %v725 = vpop.permute.xlu0 %724
      %726 = vrot.lane.b32.xlu0 %v682, 4
      %v727 = vpop.permute.xlu0 %726
      %728 = vrot.lane.b32.xlu0 %v683, 4
      %v729 = vpop.permute.xlu0 %728
      %730 = vrot.lane.b32.xlu0 %v684, 4
      %v731 = vpop.permute.xlu0 %730
      %732 = vrot.lane.b32.xlu0 %v685, 4
      %v733 = vpop.permute.xlu0 %732
      %734 = vrot.lane.b32.xlu0 %v686, 4
      %v735 = vpop.permute.xlu0 %734
      %736 = vrot.lane.b32.xlu0 %v687, 4
      %v737 = vpop.permute.xlu0 %736
      %738 = vrot.lane.b32.xlu0 %v688, 4
      %v739 = vpop.permute.xlu0 %738
      %740 = vrot.lane.b32.xlu0 %v689, 4
      %v741 = vpop.permute.xlu0 %740
      %742 = vrot.lane.b32.xlu0 %v690, 4
      %v743 = vpop.permute.xlu0 %742
      %744 = vrot.lane.b32.xlu0 %v691, 4
      %v745 = vpop.permute.xlu0 %744
      %746 = vrot.lane.b32.xlu0 %v692, 4
      %v747 = vpop.permute.xlu0 %746
      %748 = vrot.lane.b32.xlu0 %v693, 4
      %v749 = vpop.permute.xlu0 %748
      %750 = vrot.lane.b32.xlu0 %v694, 4
      %v751 = vpop.permute.xlu0 %750
      %752 = vrot.lane.b32.xlu0 %v695, 4
      %v753 = vpop.permute.xlu0 %752
      %754 = vrot.lane.b32.xlu0 %v696, 4
      %v755 = vpop.permute.xlu0 %754
      %756 = vrot.lane.b32.xlu0 %v697, 4
      %v757 = vpop.permute.xlu0 %756
      %758 = vrot.lane.b32.xlu0 %v698, 4
      %v759 = vpop.permute.xlu0 %758
      %760 = vrot.lane.b32.xlu0 %v699, 4
      %v761 = vpop.permute.xlu0 %760
      %762 = vrot.lane.b32.xlu0 %v700, 4
      %v763 = vpop.permute.xlu0 %762
      %764 = vrot.lane.b32.xlu0 %v701, 4
      %v765 = vpop.permute.xlu0 %764
      %vm798 = vcmask 60448
      %799 = vst.msk [vmem:[#allocation2] sm:$0xf] %vm798, %v703
      %800 = vst.msk [vmem:[#allocation2 + $0x4] sm:$0xf] %vm798, %v705
      %801 = vst.msk [vmem:[#allocation2 + $0x8] sm:$0xf] %vm798, %v707
      %802 = vst.msk [vmem:[#allocation2 + $0xc] sm:$0xf] %vm798, %v709
      %803 = vst.msk [vmem:[#allocation2 + $0x10] sm:$0xf] %vm798, %v711
      %804 = vst.msk [vmem:[#allocation2 + $0x14] sm:$0xf] %vm798, %v713
      %805 = vst.msk [vmem:[#allocation2 + $0x18] sm:$0xf] %vm798, %v715
      %806 = vst.msk [vmem:[#allocation2 + $0x1c] sm:$0xf] %vm798, %v717
      %807 = vst.msk [vmem:[#allocation2 + $0x20] sm:$0xf] %vm798, %v719
      %808 = vst.msk [vmem:[#allocation2 + $0x24] sm:$0xf] %vm798, %v721
      %809 = vst.msk [vmem:[#allocation2 + $0x28] sm:$0xf] %vm798, %v723
      %810 = vst.msk [vmem:[#allocation2 + $0x2c] sm:$0xf] %vm798, %v725
      %811 = vst.msk [vmem:[#allocation2 + $0x30] sm:$0xf] %vm798, %v727
      %812 = vst.msk [vmem:[#allocation2 + $0x34] sm:$0xf] %vm798, %v729
      %813 = vst.msk [vmem:[#allocation2 + $0x38] sm:$0xf] %vm798, %v731
      %814 = vst.msk [vmem:[#allocation2 + $0x3c] sm:$0xf] %vm798, %v733
      %815 = vst.msk [vmem:[#allocation2 + $0x40] sm:$0xf] %vm798, %v735
      %816 = vst.msk [vmem:[#allocation2 + $0x44] sm:$0xf] %vm798, %v737
      %817 = vst.msk [vmem:[#allocation2 + $0x48] sm:$0xf] %vm798, %v739
      %818 = vst.msk [vmem:[#allocation2 + $0x4c] sm:$0xf] %vm798, %v741
      %819 = vst.msk [vmem:[#allocation2 + $0x50] sm:$0xf] %vm798, %v743
      %820 = vst.msk [vmem:[#allocation2 + $0x54] sm:$0xf] %vm798, %v745
      %821 = vst.msk [vmem:[#allocation2 + $0x58] sm:$0xf] %vm798, %v747
      %822 = vst.msk [vmem:[#allocation2 + $0x5c] sm:$0xf] %vm798, %v749
      %823 = vst.msk [vmem:[#allocation2 + $0x60] sm:$0xf] %vm798, %v751
      %824 = vst.msk [vmem:[#allocation2 + $0x64] sm:$0xf] %vm798, %v753
      %825 = vst.msk [vmem:[#allocation2 + $0x68] sm:$0xf] %vm798, %v755
      %826 = vst.msk [vmem:[#allocation2 + $0x6c] sm:$0xf] %vm798, %v757
      %827 = vst.msk [vmem:[#allocation2 + $0x70] sm:$0xf] %vm798, %v759
      %828 = vst.msk [vmem:[#allocation2 + $0x74] sm:$0xf] %vm798, %v761
      %829 = vst.msk [vmem:[#allocation2 + $0x78] sm:$0xf] %vm798, %v763
      %830 = vst.msk [vmem:[#allocation2 + $0x7c] sm:$0xf] %vm798, %v765
      %v831 = vrot.slane %v275, 1
      %v832 = vrot.slane %v276, 1
      %v833 = vrot.slane %v277, 1
      %v834 = vrot.slane %v278, 1
      %v835 = vrot.slane %v279, 1
      %v836 = vrot.slane %v280, 1
      %v837 = vrot.slane %v281, 1
      %v838 = vrot.slane %v282, 1
      %v839 = vrot.slane %v283, 1
      %v840 = vrot.slane %v284, 1
      %v841 = vrot.slane %v285, 1
      %v842 = vrot.slane %v286, 1
      %v843 = vrot.slane %v287, 1
      %v844 = vrot.slane %v288, 1
      %v845 = vrot.slane %v289, 1
      %v846 = vrot.slane %v290, 1
      %v847 = vrot.slane %v291, 1
      %v848 = vrot.slane %v292, 1
      %v849 = vrot.slane %v293, 1
      %v850 = vrot.slane %v294, 1
      %v851 = vrot.slane %v295, 1
      %v852 = vrot.slane %v296, 1
      %v853 = vrot.slane %v297, 1
      %v854 = vrot.slane %v298, 1
      %v855 = vrot.slane %v299, 1
      %v856 = vrot.slane %v300, 1
      %v857 = vrot.slane %v301, 1
      %v858 = vrot.slane %v302, 1
      %v859 = vrot.slane %v303, 1
      %v860 = vrot.slane %v304, 1
      %v861 = vrot.slane %v305, 1
      %vm862 = vcmp.lt.s32.totalorder %v233, 7
      %v863 = vsel %vm862, %v860, %v861
      %v864 = vsel %vm862, %v859, %v860
      %v865 = vsel %vm862, %v858, %v859
      %v866 = vsel %vm862, %v857, %v858
      %v867 = vsel %vm862, %v856, %v857
      %v868 = vsel %vm862, %v855, %v856
      %v869 = vsel %vm862, %v854, %v855
      %v870 = vsel %vm862, %v853, %v854
      %v871 = vsel %vm862, %v852, %v853
      %v872 = vsel %vm862, %v851, %v852
      %v873 = vsel %vm862, %v850, %v851
      %v874 = vsel %vm862, %v849, %v850
      %v875 = vsel %vm862, %v848, %v849
      %v876 = vsel %vm862, %v847, %v848
      %v877 = vsel %vm862, %v846, %v847
      %v878 = vsel %vm862, %v845, %v846
      %v879 = vsel %vm862, %v844, %v845
      %v880 = vsel %vm862, %v843, %v844
      %v881 = vsel %vm862, %v842, %v843
      %v882 = vsel %vm862, %v841, %v842
      %v883 = vsel %vm862, %v840, %v841
      %v884 = vsel %vm862, %v839, %v840
      %v885 = vsel %vm862, %v838, %v839
      %v886 = vsel %vm862, %v837, %v838
      %v887 = vsel %vm862, %v836, %v837
      %v888 = vsel %vm862, %v835, %v836
      %v889 = vsel %vm862, %v834, %v835
      %v890 = vsel %vm862, %v833, %v834
      %v891 = vsel %vm862, %v832, %v833
      %v892 = vsel %vm862, %v831, %v832
      %v893 = vadd.s32 %v233, 1
      %v894 = vadd.s32 %v234, 1
      %vm895 = vcmp.ge.s32.totalorder %v893, 0
      %vm896 = vcmp.ge.s32.totalorder %v894, 0
      %vm897 = vcmp.lt.s32.totalorder %v893, 16
      %vm898 = vcmp.lt.s32.totalorder %v894, 16
      %vm899 = vmand %vm895, %vm897
      %vm900 = vmand %vm896, %vm898
      %v901 = vsel %vm899, 1, 0
      %v902 = vsel %vm900, 1, 0
      %vm903 = vcmp.eq.s32.totalorder %v901, 1
      %vm904 = vcmp.eq.s32.totalorder %v902, 1
      %v905 = vsel %vm903, %v892, 0.0
      %v906 = vsel %vm904, %v891, 0.0
      %v907 = vsel %vm903, %v890, 0.0
      %v908 = vsel %vm904, %v889, 0.0
      %v909 = vsel %vm903, %v888, 0.0
      %v910 = vsel %vm904, %v887, 0.0
      %v911 = vsel %vm903, %v886, 0.0
      %v912 = vsel %vm904, %v885, 0.0
      %v913 = vsel %vm903, %v884, 0.0
      %v914 = vsel %vm904, %v883, 0.0
      %v915 = vsel %vm903, %v882, 0.0
      %v916 = vsel %vm904, %v881, 0.0
      %v917 = vsel %vm903, %v880, 0.0
      %v918 = vsel %vm904, %v879, 0.0
      %v919 = vsel %vm903, %v878, 0.0
      %v920 = vsel %vm904, %v877, 0.0
      %v921 = vsel %vm903, %v876, 0.0
      %v922 = vsel %vm904, %v875, 0.0
      %v923 = vsel %vm903, %v874, 0.0
      %v924 = vsel %vm904, %v873, 0.0
      %v925 = vsel %vm903, %v872, 0.0
      %v926 = vsel %vm904, %v871, 0.0
      %v927 = vsel %vm903, %v870, 0.0
      %v928 = vsel %vm904, %v869, 0.0
      %v929 = vsel %vm903, %v868, 0.0
      %v930 = vsel %vm904, %v867, 0.0
      %v931 = vsel %vm903, %v866, 0.0
      %v932 = vsel %vm904, %v865, 0.0
      %v933 = vsel %vm903, %v864, 0.0
      %v934 = vsel %vm904, %v863, 0.0
      %v935 = vpack.c.bf16 %v906, %v905
      %v936 = vpack.c.bf16 %v908, %v907
      %v937 = vpack.c.bf16 %v910, %v909
      %v938 = vpack.c.bf16 %v912, %v911
      %v939 = vpack.c.bf16 %v914, %v913
      %v940 = vpack.c.bf16 %v916, %v915
      %v941 = vpack.c.bf16 %v918, %v917
      %v942 = vpack.c.bf16 %v920, %v919
      %v943 = vpack.c.bf16 %v922, %v921
      %v944 = vpack.c.bf16 %v924, %v923
      %v945 = vpack.c.bf16 %v926, %v925
      %v946 = vpack.c.bf16 %v928, %v927
      %v947 = vpack.c.bf16 %v930, %v929
      %v948 = vpack.c.bf16 %v932, %v931
      %v949 = vpack.c.bf16 %v934, %v933
      %v965 = vunpack.c.l.b16 %v935
      %v966 = vunpack.c.h.b16 %v935
      %v967 = vunpack.c.l.b16 %v936
      %v968 = vunpack.c.h.b16 %v936
      %v969 = vunpack.c.l.b16 %v937
      %v970 = vunpack.c.h.b16 %v937
      %v971 = vunpack.c.l.b16 %v938
      %v972 = vunpack.c.h.b16 %v938
      %v973 = vunpack.c.l.b16 %v939
      %v974 = vunpack.c.h.b16 %v939
      %v975 = vunpack.c.l.b16 %v940
      %v976 = vunpack.c.h.b16 %v940
      %v977 = vunpack.c.l.b16 %v941
      %v978 = vunpack.c.h.b16 %v941
      %v979 = vunpack.c.l.b16 %v942
      %v980 = vunpack.c.h.b16 %v942
      %v981 = vunpack.c.l.b16 %v943
      %v982 = vunpack.c.h.b16 %v943
      %v983 = vunpack.c.l.b16 %v944
      %v984 = vunpack.c.h.b16 %v944
      %v985 = vunpack.c.l.b16 %v945
      %v986 = vunpack.c.h.b16 %v945
      %v987 = vunpack.c.l.b16 %v946
      %v988 = vunpack.c.h.b16 %v946
      %v989 = vunpack.c.l.b16 %v947
      %v990 = vunpack.c.h.b16 %v947
      %v991 = vunpack.c.l.b16 %v948
      %v992 = vunpack.c.h.b16 %v948
      %v993 = vunpack.c.l.b16 %v949
      %v994 = vunpack.c.h.b16 %v949
      %v995 = vpack.c.b16 %v965, %v965
      %v996 = vpack.c.b16 %v966, %v966
      %v997 = vpack.c.b16 %v967, %v967
      %v998 = vpack.c.b16 %v968, %v968
      %v999 = vpack.c.b16 %v969, %v969
      %v1000 = vpack.c.b16 %v970, %v970
      %v1001 = vpack.c.b16 %v971, %v971
      %v1002 = vpack.c.b16 %v972, %v972
      %v1003 = vpack.c.b16 %v973, %v973
      %v1004 = vpack.c.b16 %v974, %v974
      %v1005 = vpack.c.b16 %v975, %v975
      %v1006 = vpack.c.b16 %v976, %v976
      %v1007 = vpack.c.b16 %v977, %v977
      %v1008 = vpack.c.b16 %v978, %v978
      %v1009 = vpack.c.b16 %v979, %v979
      %v1010 = vpack.c.b16 %v980, %v980
      %v1011 = vpack.c.b16 %v981, %v981
      %v1012 = vpack.c.b16 %v982, %v982
      %v1013 = vpack.c.b16 %v983, %v983
      %v1014 = vpack.c.b16 %v984, %v984
      %v1015 = vpack.c.b16 %v985, %v985
      %v1016 = vpack.c.b16 %v986, %v986
      %v1017 = vpack.c.b16 %v987, %v987
      %v1018 = vpack.c.b16 %v988, %v988
      %v1019 = vpack.c.b16 %v989, %v989
      %v1020 = vpack.c.b16 %v990, %v990
      %v1021 = vpack.c.b16 %v991, %v991
      %v1022 = vpack.c.b16 %v992, %v992
      %v1023 = vpack.c.b16 %v993, %v993
      %v1024 = vpack.c.b16 %v994, %v994
      %1025 = vrot.lane.b32.xlu0 %v475, 8
      %v1026 = vpop.permute.xlu0 %1025
      %1027 = vrot.lane.b32.xlu0 %v476, 8
      %v1028 = vpop.permute.xlu0 %1027
      %1029 = vrot.lane.b32.xlu0 %v995, 8
      %v1030 = vpop.permute.xlu0 %1029
      %1031 = vrot.lane.b32.xlu0 %v996, 8
      %v1032 = vpop.permute.xlu0 %1031
      %1033 = vrot.lane.b32.xlu0 %v997, 8
      %v1034 = vpop.permute.xlu0 %1033
      %1035 = vrot.lane.b32.xlu0 %v998, 8
      %v1036 = vpop.permute.xlu0 %1035
      %1037 = vrot.lane.b32.xlu0 %v999, 8
      %v1038 = vpop.permute.xlu0 %1037
      %1039 = vrot.lane.b32.xlu0 %v1000, 8
      %v1040 = vpop.permute.xlu0 %1039
      %1041 = vrot.lane.b32.xlu0 %v1001, 8
      %v1042 = vpop.permute.xlu0 %1041
      %1043 = vrot.lane.b32.xlu0 %v1002, 8
      %v1044 = vpop.permute.xlu0 %1043
      %1045 = vrot.lane.b32.xlu0 %v1003, 8
      %v1046 = vpop.permute.xlu0 %1045
      %1047 = vrot.lane.b32.xlu0 %v1004, 8
      %v1048 = vpop.permute.xlu0 %1047
      %1049 = vrot.lane.b32.xlu0 %v1005, 8
      %v1050 = vpop.permute.xlu0 %1049
      %1051 = vrot.lane.b32.xlu0 %v1006, 8
      %v1052 = vpop.permute.xlu0 %1051
      %1053 = vrot.lane.b32.xlu0 %v1007, 8
      %v1054 = vpop.permute.xlu0 %1053
      %1055 = vrot.lane.b32.xlu0 %v1008, 8
      %v1056 = vpop.permute.xlu0 %1055
      %1057 = vrot.lane.b32.xlu0 %v1009, 8
      %v1058 = vpop.permute.xlu0 %1057
      %1059 = vrot.lane.b32.xlu0 %v1010, 8
      %v1060 = vpop.permute.xlu0 %1059
      %1061 = vrot.lane.b32.xlu0 %v1011, 8
      %v1062 = vpop.permute.xlu0 %1061
      %1063 = vrot.lane.b32.xlu0 %v1012, 8
      %v1064 = vpop.permute.xlu0 %1063
      %1065 = vrot.lane.b32.xlu0 %v1013, 8
      %v1066 = vpop.permute.xlu0 %1065
      %1067 = vrot.lane.b32.xlu0 %v1014, 8
      %v1068 = vpop.permute.xlu0 %1067
      %1069 = vrot.lane.b32.xlu0 %v1015, 8
      %v1070 = vpop.permute.xlu0 %1069
      %1071 = vrot.lane.b32.xlu0 %v1016, 8
      %v1072 = vpop.permute.xlu0 %1071
      %1073 = vrot.lane.b32.xlu0 %v1017, 8
      %v1074 = vpop.permute.xlu0 %1073
      %1075 = vrot.lane.b32.xlu0 %v1018, 8
      %v1076 = vpop.permute.xlu0 %1075
      %1077 = vrot.lane.b32.xlu0 %v1019, 8
      %v1078 = vpop.permute.xlu0 %1077
      %1079 = vrot.lane.b32.xlu0 %v1020, 8
      %v1080 = vpop.permute.xlu0 %1079
      %1081 = vrot.lane.b32.xlu0 %v1021, 8
      %v1082 = vpop.permute.xlu0 %1081
      %1083 = vrot.lane.b32.xlu0 %v1022, 8
      %v1084 = vpop.permute.xlu0 %1083
      %1085 = vrot.lane.b32.xlu0 %v1023, 8
      %v1086 = vpop.permute.xlu0 %1085
      %1087 = vrot.lane.b32.xlu0 %v1024, 8
      %v1088 = vpop.permute.xlu0 %1087
      %vm1121 = vcmask 93248
      %1122 = vst.msk [vmem:[#allocation2] sm:$0xf] %vm1121, %v1026
      %1123 = vst.msk [vmem:[#allocation2 + $0x4] sm:$0xf] %vm1121, %v1028
      %1124 = vst.msk [vmem:[#allocation2 + $0x8] sm:$0xf] %vm1121, %v1030
      %1125 = vst.msk [vmem:[#allocation2 + $0xc] sm:$0xf] %vm1121, %v1032
      %1126 = vst.msk [vmem:[#allocation2 + $0x10] sm:$0xf] %vm1121, %v1034
      %1127 = vst.msk [vmem:[#allocation2 + $0x14] sm:$0xf] %vm1121, %v1036
      %1128 = vst.msk [vmem:[#allocation2 + $0x18] sm:$0xf] %vm1121, %v1038
      %1129 = vst.msk [vmem:[#allocation2 + $0x1c] sm:$0xf] %vm1121, %v1040
      %1130 = vst.msk [vmem:[#allocation2 + $0x20] sm:$0xf] %vm1121, %v1042
      %1131 = vst.msk [vmem:[#allocation2 + $0x24] sm:$0xf] %vm1121, %v1044
      %1132 = vst.msk [vmem:[#allocation2 + $0x28] sm:$0xf] %vm1121, %v1046
      %1133 = vst.msk [vmem:[#allocation2 + $0x2c] sm:$0xf] %vm1121, %v1048
      %1134 = vst.msk [vmem:[#allocation2 + $0x30] sm:$0xf] %vm1121, %v1050
      %1135 = vst.msk [vmem:[#allocation2 + $0x34] sm:$0xf] %vm1121, %v1052
      %1136 = vst.msk [vmem:[#allocation2 + $0x38] sm:$0xf] %vm1121, %v1054
      %1137 = vst.msk [vmem:[#allocation2 + $0x3c] sm:$0xf] %vm1121, %v1056
      %1138 = vst.msk [vmem:[#allocation2 + $0x40] sm:$0xf] %vm1121, %v1058
      %1139 = vst.msk [vmem:[#allocation2 + $0x44] sm:$0xf] %vm1121, %v1060
      %1140 = vst.msk [vmem:[#allocation2 + $0x48] sm:$0xf] %vm1121, %v1062
      %1141 = vst.msk [vmem:[#allocation2 + $0x4c] sm:$0xf] %vm1121, %v1064
      %1142 = vst.msk [vmem:[#allocation2 + $0x50] sm:$0xf] %vm1121, %v1066
      %1143 = vst.msk [vmem:[#allocation2 + $0x54] sm:$0xf] %vm1121, %v1068
      %1144 = vst.msk [vmem:[#allocation2 + $0x58] sm:$0xf] %vm1121, %v1070
      %1145 = vst.msk [vmem:[#allocation2 + $0x5c] sm:$0xf] %vm1121, %v1072
      %1146 = vst.msk [vmem:[#allocation2 + $0x60] sm:$0xf] %vm1121, %v1074
      %1147 = vst.msk [vmem:[#allocation2 + $0x64] sm:$0xf] %vm1121, %v1076
      %1148 = vst.msk [vmem:[#allocation2 + $0x68] sm:$0xf] %vm1121, %v1078
      %1149 = vst.msk [vmem:[#allocation2 + $0x6c] sm:$0xf] %vm1121, %v1080
      %1150 = vst.msk [vmem:[#allocation2 + $0x70] sm:$0xf] %vm1121, %v1082
      %1151 = vst.msk [vmem:[#allocation2 + $0x74] sm:$0xf] %vm1121, %v1084
      %1152 = vst.msk [vmem:[#allocation2 + $0x78] sm:$0xf] %vm1121, %v1086
      %1153 = vst.msk [vmem:[#allocation2 + $0x7c] sm:$0xf] %vm1121, %v1088
      %v1154 = vrot.slane %v305, 7
      %v1155 = vsel %vm338, %v1154, %v337
      %v1156 = vsel %vm338, %v336, %v1154
      %v1157 = vsel %vm379, %v1156, 0.0
      %v1158 = vsel %vm380, %v1155, 0.0
      %v1159 = vpack.c.bf16 %v1158, %v1157
      %v1161 = vunpack.c.l.b16 %v1159
      %v1162 = vunpack.c.h.b16 %v1159
      %v1163 = vpack.c.b16 %v1161, %v1161
      %v1164 = vpack.c.b16 %v1162, %v1162
      %1165 = vrot.lane.b32.xlu0 %v477, 12
      %v1166 = vpop.permute.xlu0 %1165
      %1167 = vrot.lane.b32.xlu0 %v478, 12
      %v1168 = vpop.permute.xlu0 %1167
      %1169 = vrot.lane.b32.xlu0 %v479, 12
      %v1170 = vpop.permute.xlu0 %1169
      %1171 = vrot.lane.b32.xlu0 %v480, 12
      %v1172 = vpop.permute.xlu0 %1171
      %1173 = vrot.lane.b32.xlu0 %v481, 12
      %v1174 = vpop.permute.xlu0 %1173
      %1175 = vrot.lane.b32.xlu0 %v482, 12
      %v1176 = vpop.permute.xlu0 %1175
      %1177 = vrot.lane.b32.xlu0 %v483, 12
      %v1178 = vpop.permute.xlu0 %1177
      %1179 = vrot.lane.b32.xlu0 %v484, 12
      %v1180 = vpop.permute.xlu0 %1179
      %1181 = vrot.lane.b32.xlu0 %v485, 12
      %v1182 = vpop.permute.xlu0 %1181
      %1183 = vrot.lane.b32.xlu0 %v486, 12
      %v1184 = vpop.permute.xlu0 %1183
      %1185 = vrot.lane.b32.xlu0 %v487, 12
      %v1186 = vpop.permute.xlu0 %1185
      %1187 = vrot.lane.b32.xlu0 %v488, 12
      %v1188 = vpop.permute.xlu0 %1187
      %1189 = vrot.lane.b32.xlu0 %v489, 12
      %v1190 = vpop.permute.xlu0 %1189
      %1191 = vrot.lane.b32.xlu0 %v490, 12
      %v1192 = vpop.permute.xlu0 %1191
      %1193 = vrot.lane.b32.xlu0 %v491, 12
      %v1194 = vpop.permute.xlu0 %1193
      %1195 = vrot.lane.b32.xlu0 %v492, 12
      %v1196 = vpop.permute.xlu0 %1195
      %1197 = vrot.lane.b32.xlu0 %v493, 12
      %v1198 = vpop.permute.xlu0 %1197
      %1199 = vrot.lane.b32.xlu0 %v494, 12
      %v1200 = vpop.permute.xlu0 %1199
      %1201 = vrot.lane.b32.xlu0 %v495, 12
      %v1202 = vpop.permute.xlu0 %1201
      %1203 = vrot.lane.b32.xlu0 %v496, 12
      %v1204 = vpop.permute.xlu0 %1203
      %1205 = vrot.lane.b32.xlu0 %v497, 12
      %v1206 = vpop.permute.xlu0 %1205
      %1207 = vrot.lane.b32.xlu0 %v498, 12
      %v1208 = vpop.permute.xlu0 %1207
      %1209 = vrot.lane.b32.xlu0 %v499, 12
      %v1210 = vpop.permute.xlu0 %1209
      %1211 = vrot.lane.b32.xlu0 %v500, 12
      %v1212 = vpop.permute.xlu0 %1211
      %1213 = vrot.lane.b32.xlu0 %v501, 12
      %v1214 = vpop.permute.xlu0 %1213
      %1215 = vrot.lane.b32.xlu0 %v502, 12
      %v1216 = vpop.permute.xlu0 %1215
      %1217 = vrot.lane.b32.xlu0 %v503, 12
      %v1218 = vpop.permute.xlu0 %1217
      %1219 = vrot.lane.b32.xlu0 %v504, 12
      %v1220 = vpop.permute.xlu0 %1219
      %1221 = vrot.lane.b32.xlu0 %v505, 12
      %v1222 = vpop.permute.xlu0 %1221
      %1223 = vrot.lane.b32.xlu0 %v506, 12
      %v1224 = vpop.permute.xlu0 %1223
      %1225 = vrot.lane.b32.xlu0 %v1163, 12
      %v1226 = vpop.permute.xlu0 %1225
      %1227 = vrot.lane.b32.xlu0 %v1164, 12
      %v1228 = vpop.permute.xlu0 %1227
      %vm1261 = vcmask 126048
      %1262 = vst.msk [vmem:[#allocation2] sm:$0xf] %vm1261, %v1166
      %1263 = vst.msk [vmem:[#allocation2 + $0x4] sm:$0xf] %vm1261, %v1168
      %1264 = vst.msk [vmem:[#allocation2 + $0x8] sm:$0xf] %vm1261, %v1170
      %1265 = vst.msk [vmem:[#allocation2 + $0xc] sm:$0xf] %vm1261, %v1172
      %1266 = vst.msk [vmem:[#allocation2 + $0x10] sm:$0xf] %vm1261, %v1174
      %1267 = vst.msk [vmem:[#allocation2 + $0x14] sm:$0xf] %vm1261, %v1176
      %1268 = vst.msk [vmem:[#allocation2 + $0x18] sm:$0xf] %vm1261, %v1178
      %1269 = vst.msk [vmem:[#allocation2 + $0x1c] sm:$0xf] %vm1261, %v1180
      %1270 = vst.msk [vmem:[#allocation2 + $0x20] sm:$0xf] %vm1261, %v1182
      %1271 = vst.msk [vmem:[#allocation2 + $0x24] sm:$0xf] %vm1261, %v1184
      %1272 = vst.msk [vmem:[#allocation2 + $0x28] sm:$0xf] %vm1261, %v1186
      %1273 = vst.msk [vmem:[#allocation2 + $0x2c] sm:$0xf] %vm1261, %v1188
      %1274 = vst.msk [vmem:[#allocation2 + $0x30] sm:$0xf] %vm1261, %v1190
      %1275 = vst.msk [vmem:[#allocation2 + $0x34] sm:$0xf] %vm1261, %v1192
      %1276 = vst.msk [vmem:[#allocation2 + $0x38] sm:$0xf] %vm1261, %v1194
      %1277 = vst.msk [vmem:[#allocation2 + $0x3c] sm:$0xf] %vm1261, %v1196
      %1278 = vst.msk [vmem:[#allocation2 + $0x40] sm:$0xf] %vm1261, %v1198
      %1279 = vst.msk [vmem:[#allocation2 + $0x44] sm:$0xf] %vm1261, %v1200
      %1280 = vst.msk [vmem:[#allocation2 + $0x48] sm:$0xf] %vm1261, %v1202
      %1281 = vst.msk [vmem:[#allocation2 + $0x4c] sm:$0xf] %vm1261, %v1204
      %1282 = vst.msk [vmem:[#allocation2 + $0x50] sm:$0xf] %vm1261, %v1206
      %1283 = vst.msk [vmem:[#allocation2 + $0x54] sm:$0xf] %vm1261, %v1208
      %1284 = vst.msk [vmem:[#allocation2 + $0x58] sm:$0xf] %vm1261, %v1210
      %1285 = vst.msk [vmem:[#allocation2 + $0x5c] sm:$0xf] %vm1261, %v1212
      %1286 = vst.msk [vmem:[#allocation2 + $0x60] sm:$0xf] %vm1261, %v1214
      %1287 = vst.msk [vmem:[#allocation2 + $0x64] sm:$0xf] %vm1261, %v1216
      %1288 = vst.msk [vmem:[#allocation2 + $0x68] sm:$0xf] %vm1261, %v1218
      %1289 = vst.msk [vmem:[#allocation2 + $0x6c] sm:$0xf] %vm1261, %v1220
      %1290 = vst.msk [vmem:[#allocation2 + $0x70] sm:$0xf] %vm1261, %v1222
      %1291 = vst.msk [vmem:[#allocation2 + $0x74] sm:$0xf] %vm1261, %v1224
      %1292 = vst.msk [vmem:[#allocation2 + $0x78] sm:$0xf] %vm1261, %v1226
      %1293 = vst.msk [vmem:[#allocation2 + $0x7c] sm:$0xf] %vm1261, %v1228
      %v1294 = vsel %vm580, %v305, 0.0
      %v1295 = vsel %vm581, %v306, 0.0
      %v1296 = vpack.c.bf16 %v1295, %v1294
      %v1298 = vunpack.c.l.b16 %v1296
      %v1299 = vunpack.c.h.b16 %v1296
      %v1300 = vpack.c.b16 %v1298, %v1298
      %v1301 = vpack.c.b16 %v1299, %v1299
      %1302 = vrot.lane.b32.xlu0 %v672, 16
      %v1303 = vpop.permute.xlu0 %1302
      %1304 = vrot.lane.b32.xlu0 %v673, 16
      %v1305 = vpop.permute.xlu0 %1304
      %1306 = vrot.lane.b32.xlu0 %v674, 16
      %v1307 = vpop.permute.xlu0 %1306
      %1308 = vrot.lane.b32.xlu0 %v675, 16
      %v1309 = vpop.permute.xlu0 %1308
      %1310 = vrot.lane.b32.xlu0 %v676, 16
      %v1311 = vpop.permute.xlu0 %1310
      %1312 = vrot.lane.b32.xlu0 %v677, 16
      %v1313 = vpop.permute.xlu0 %1312
      %1314 = vrot.lane.b32.xlu0 %v678, 16
      %v1315 = vpop.permute.xlu0 %1314
      %1316 = vrot.lane.b32.xlu0 %v679, 16
      %v1317 = vpop.permute.xlu0 %1316
      %1318 = vrot.lane.b32.xlu0 %v680, 16
      %v1319 = vpop.permute.xlu0 %1318
      %1320 = vrot.lane.b32.xlu0 %v681, 16
      %v1321 = vpop.permute.xlu0 %1320
      %1322 = vrot.lane.b32.xlu0 %v682, 16
      %v1323 = vpop.permute.xlu0 %1322
      %1324 = vrot.lane.b32.xlu0 %v683, 16
      %v1325 = vpop.permute.xlu0 %1324
      %1326 = vrot.lane.b32.xlu0 %v684, 16
      %v1327 = vpop.permute.xlu0 %1326
      %1328 = vrot.lane.b32.xlu0 %v685, 16
      %v1329 = vpop.permute.xlu0 %1328
      %1330 = vrot.lane.b32.xlu0 %v686, 16
      %v1331 = vpop.permute.xlu0 %1330
      %1332 = vrot.lane.b32.xlu0 %v687, 16
      %v1333 = vpop.permute.xlu0 %1332
      %1334 = vrot.lane.b32.xlu0 %v688, 16
      %v1335 = vpop.permute.xlu0 %1334
      %1336 = vrot.lane.b32.xlu0 %v689, 16
      %v1337 = vpop.permute.xlu0 %1336
      %1338 = vrot.lane.b32.xlu0 %v690, 16
      %v1339 = vpop.permute.xlu0 %1338
      %1340 = vrot.lane.b32.xlu0 %v691, 16
      %v1341 = vpop.permute.xlu0 %1340
      %1342 = vrot.lane.b32.xlu0 %v692, 16
      %v1343 = vpop.permute.xlu0 %1342
      %1344 = vrot.lane.b32.xlu0 %v693, 16
      %v1345 = vpop.permute.xlu0 %1344
      %1346 = vrot.lane.b32.xlu0 %v694, 16
      %v1347 = vpop.permute.xlu0 %1346
      %1348 = vrot.lane.b32.xlu0 %v695, 16
      %v1349 = vpop.permute.xlu0 %1348
      %1350 = vrot.lane.b32.xlu0 %v696, 16
      %v1351 = vpop.permute.xlu0 %1350
      %1352 = vrot.lane.b32.xlu0 %v697, 16
      %v1353 = vpop.permute.xlu0 %1352
      %1354 = vrot.lane.b32.xlu0 %v698, 16
      %v1355 = vpop.permute.xlu0 %1354
      %1356 = vrot.lane.b32.xlu0 %v699, 16
      %v1357 = vpop.permute.xlu0 %1356
      %1358 = vrot.lane.b32.xlu0 %v700, 16
      %v1359 = vpop.permute.xlu0 %1358
      %1360 = vrot.lane.b32.xlu0 %v701, 16
      %v1361 = vpop.permute.xlu0 %1360
      %1362 = vrot.lane.b32.xlu0 %v1300, 16
      %v1363 = vpop.permute.xlu0 %1362
      %1364 = vrot.lane.b32.xlu0 %v1301, 16
      %v1365 = vpop.permute.xlu0 %1364
      %vm1398 = vcmask 158848
      %1399 = vst.msk [vmem:[#allocation2] sm:$0xf] %vm1398, %v1303
      %1400 = vst.msk [vmem:[#allocation2 + $0x4] sm:$0xf] %vm1398, %v1305
      %1401 = vst.msk [vmem:[#allocation2 + $0x8] sm:$0xf] %vm1398, %v1307
      %1402 = vst.msk [vmem:[#allocation2 + $0xc] sm:$0xf] %vm1398, %v1309
      %1403 = vst.msk [vmem:[#allocation2 + $0x10] sm:$0xf] %vm1398, %v1311
      %1404 = vst.msk [vmem:[#allocation2 + $0x14] sm:$0xf] %vm1398, %v1313
      %1405 = vst.msk [vmem:[#allocation2 + $0x18] sm:$0xf] %vm1398, %v1315
      %1406 = vst.msk [vmem:[#allocation2 + $0x1c] sm:$0xf] %vm1398, %v1317
      %1407 = vst.msk [vmem:[#allocation2 + $0x20] sm:$0xf] %vm1398, %v1319
      %1408 = vst.msk [vmem:[#allocation2 + $0x24] sm:$0xf] %vm1398, %v1321
      %1409 = vst.msk [vmem:[#allocation2 + $0x28] sm:$0xf] %vm1398, %v1323
      %1410 = vst.msk [vmem:[#allocation2 + $0x2c] sm:$0xf] %vm1398, %v1325
      %1411 = vst.msk [vmem:[#allocation2 + $0x30] sm:$0xf] %vm1398, %v1327
      %1412 = vst.msk [vmem:[#allocation2 + $0x34] sm:$0xf] %vm1398, %v1329
      %1413 = vst.msk [vmem:[#allocation2 + $0x38] sm:$0xf] %vm1398, %v1331
      %1414 = vst.msk [vmem:[#allocation2 + $0x3c] sm:$0xf] %vm1398, %v1333
      %1415 = vst.msk [vmem:[#allocation2 + $0x40] sm:$0xf] %vm1398, %v1335
      %1416 = vst.msk [vmem:[#allocation2 + $0x44] sm:$0xf] %vm1398, %v1337
      %1417 = vst.msk [vmem:[#allocation2 + $0x48] sm:$0xf] %vm1398, %v1339
      %1418 = vst.msk [vmem:[#allocation2 + $0x4c] sm:$0xf] %vm1398, %v1341
      %1419 = vst.msk [vmem:[#allocation2 + $0x50] sm:$0xf] %vm1398, %v1343
      %1420 = vst.msk [vmem:[#allocation2 + $0x54] sm:$0xf] %vm1398, %v1345
      %1421 = vst.msk [vmem:[#allocation2 + $0x58] sm:$0xf] %vm1398, %v1347
      %1422 = vst.msk [vmem:[#allocation2 + $0x5c] sm:$0xf] %vm1398, %v1349
      %1423 = vst.msk [vmem:[#allocation2 + $0x60] sm:$0xf] %vm1398, %v1351
      %1424 = vst.msk [vmem:[#allocation2 + $0x64] sm:$0xf] %vm1398, %v1353
      %1425 = vst.msk [vmem:[#allocation2 + $0x68] sm:$0xf] %vm1398, %v1355
      %1426 = vst.msk [vmem:[#allocation2 + $0x6c] sm:$0xf] %vm1398, %v1357
      %1427 = vst.msk [vmem:[#allocation2 + $0x70] sm:$0xf] %vm1398, %v1359
      %1428 = vst.msk [vmem:[#allocation2 + $0x74] sm:$0xf] %vm1398, %v1361
      %1429 = vst.msk [vmem:[#allocation2 + $0x78] sm:$0xf] %vm1398, %v1363
      %1430 = vst.msk [vmem:[#allocation2 + $0x7c] sm:$0xf] %vm1398, %v1365
      %v1431 = vrot.slane %v306, 1
      %v1432 = vsel %vm862, %v861, %v1431
      %v1433 = vsel %vm862, %v1431, %v831
      %v1434 = vsel %vm903, %v1432, 0.0
      %v1435 = vsel %vm904, %v1433, 0.0
      %v1436 = vpack.c.bf16 %v1435, %v1434
      %v1438 = vunpack.c.l.b16 %v1436
      %v1439 = vunpack.c.h.b16 %v1436
      %v1440 = vpack.c.b16 %v1438, %v1438
      %v1441 = vpack.c.b16 %v1439, %v1439
      %1442 = vrot.lane.b32.xlu0 %v995, 20
      %v1443 = vpop.permute.xlu0 %1442
      %1444 = vrot.lane.b32.xlu0 %v996, 20
      %v1445 = vpop.permute.xlu0 %1444
      %1446 = vrot.lane.b32.xlu0 %v997, 20
      %v1447 = vpop.permute.xlu0 %1446
      %1448 = vrot.lane.b32.xlu0 %v998, 20
      %v1449 = vpop.permute.xlu0 %1448
      %1450 = vrot.lane.b32.xlu0 %v999, 20
      %v1451 = vpop.permute.xlu0 %1450
      %1452 = vrot.lane.b32.xlu0 %v1000, 20
      %v1453 = vpop.permute.xlu0 %1452
      %1454 = vrot.lane.b32.xlu0 %v1001, 20
      %v1455 = vpop.permute.xlu0 %1454
      %1456 = vrot.lane.b32.xlu0 %v1002, 20
      %v1457 = vpop.permute.xlu0 %1456
      %1458 = vrot.lane.b32.xlu0 %v1003, 20
      %v1459 = vpop.permute.xlu0 %1458
      %1460 = vrot.lane.b32.xlu0 %v1004, 20
      %v1461 = vpop.permute.xlu0 %1460
      %1462 = vrot.lane.b32.xlu0 %v1005, 20
      %v1463 = vpop.permute.xlu0 %1462
      %1464 = vrot.lane.b32.xlu0 %v1006, 20
      %v1465 = vpop.permute.xlu0 %1464
      %1466 = vrot.lane.b32.xlu0 %v1007, 20
      %v1467 = vpop.permute.xlu0 %1466
      %1468 = vrot.lane.b32.xlu0 %v1008, 20
      %v1469 = vpop.permute.xlu0 %1468
      %1470 = vrot.lane.b32.xlu0 %v1009, 20
      %v1471 = vpop.permute.xlu0 %1470
      %1472 = vrot.lane.b32.xlu0 %v1010, 20
      %v1473 = vpop.permute.xlu0 %1472
      %1474 = vrot.lane.b32.xlu0 %v1011, 20
      %v1475 = vpop.permute.xlu0 %1474
      %1476 = vrot.lane.b32.xlu0 %v1012, 20
      %v1477 = vpop.permute.xlu0 %1476
      %1478 = vrot.lane.b32.xlu0 %v1013, 20
      %v1479 = vpop.permute.xlu0 %1478
      %1480 = vrot.lane.b32.xlu0 %v1014, 20
      %v1481 = vpop.permute.xlu0 %1480
      %1482 = vrot.lane.b32.xlu0 %v1015, 20
      %v1483 = vpop.permute.xlu0 %1482
      %1484 = vrot.lane.b32.xlu0 %v1016, 20
      %v1485 = vpop.permute.xlu0 %1484
      %1486 = vrot.lane.b32.xlu0 %v1017, 20
      %v1487 = vpop.permute.xlu0 %1486
      %1488 = vrot.lane.b32.xlu0 %v1018, 20
      %v1489 = vpop.permute.xlu0 %1488
      %1490 = vrot.lane.b32.xlu0 %v1019, 20
      %v1491 = vpop.permute.xlu0 %1490
      %1492 = vrot.lane.b32.xlu0 %v1020, 20
      %v1493 = vpop.permute.xlu0 %1492
      %1494 = vrot.lane.b32.xlu0 %v1021, 20
      %v1495 = vpop.permute.xlu0 %1494
      %1496 = vrot.lane.b32.xlu0 %v1022, 20
      %v1497 = vpop.permute.xlu0 %1496
      %1498 = vrot.lane.b32.xlu0 %v1023, 20
      %v1499 = vpop.permute.xlu0 %1498
      %1500 = vrot.lane.b32.xlu0 %v1024, 20
      %v1501 = vpop.permute.xlu0 %1500
      %1502 = vrot.lane.b32.xlu0 %v1440, 20
      %v1503 = vpop.permute.xlu0 %1502
      %1504 = vrot.lane.b32.xlu0 %v1441, 20
      %v1505 = vpop.permute.xlu0 %1504
      %vm1538 = vcmask 191648
      %1539 = vst.msk [vmem:[#allocation2] sm:$0xf] %vm1538, %v1443
      %1540 = vst.msk [vmem:[#allocation2 + $0x4] sm:$0xf] %vm1538, %v1445
      %1541 = vst.msk [vmem:[#allocation2 + $0x8] sm:$0xf] %vm1538, %v1447
      %1542 = vst.msk [vmem:[#allocation2 + $0xc] sm:$0xf] %vm1538, %v1449
      %1543 = vst.msk [vmem:[#allocation2 + $0x10] sm:$0xf] %vm1538, %v1451
      %1544 = vst.msk [vmem:[#allocation2 + $0x14] sm:$0xf] %vm1538, %v1453
      %1545 = vst.msk [vmem:[#allocation2 + $0x18] sm:$0xf] %vm1538, %v1455
      %1546 = vst.msk [vmem:[#allocation2 + $0x1c] sm:$0xf] %vm1538, %v1457
      %1547 = vst.msk [vmem:[#allocation2 + $0x20] sm:$0xf] %vm1538, %v1459
      %1548 = vst.msk [vmem:[#allocation2 + $0x24] sm:$0xf] %vm1538, %v1461
      %1549 = vst.msk [vmem:[#allocation2 + $0x28] sm:$0xf] %vm1538, %v1463
      %1550 = vst.msk [vmem:[#allocation2 + $0x2c] sm:$0xf] %vm1538, %v1465
      %1551 = vst.msk [vmem:[#allocation2 + $0x30] sm:$0xf] %vm1538, %v1467
      %1552 = vst.msk [vmem:[#allocation2 + $0x34] sm:$0xf] %vm1538, %v1469
      %1553 = vst.msk [vmem:[#allocation2 + $0x38] sm:$0xf] %vm1538, %v1471
      %1554 = vst.msk [vmem:[#allocation2 + $0x3c] sm:$0xf] %vm1538, %v1473
      %1555 = vst.msk [vmem:[#allocation2 + $0x40] sm:$0xf] %vm1538, %v1475
      %1556 = vst.msk [vmem:[#allocation2 + $0x44] sm:$0xf] %vm1538, %v1477
      %1557 = vst.msk [vmem:[#allocation2 + $0x48] sm:$0xf] %vm1538, %v1479
      %1558 = vst.msk [vmem:[#allocation2 + $0x4c] sm:$0xf] %vm1538, %v1481
      %1559 = vst.msk [vmem:[#allocation2 + $0x50] sm:$0xf] %vm1538, %v1483
      %1560 = vst.msk [vmem:[#allocation2 + $0x54] sm:$0xf] %vm1538, %v1485
      %1561 = vst.msk [vmem:[#allocation2 + $0x58] sm:$0xf] %vm1538, %v1487
      %1562 = vst.msk [vmem:[#allocation2 + $0x5c] sm:$0xf] %vm1538, %v1489
      %1563 = vst.msk [vmem:[#allocation2 + $0x60] sm:$0xf] %vm1538, %v1491
      %1564 = vst.msk [vmem:[#allocation2 + $0x64] sm:$0xf] %vm1538, %v1493
      %1565 = vst.msk [vmem:[#allocation2 + $0x68] sm:$0xf] %vm1538, %v1495
      %1566 = vst.msk [vmem:[#allocation2 + $0x6c] sm:$0xf] %vm1538, %v1497
      %1567 = vst.msk [vmem:[#allocation2 + $0x70] sm:$0xf] %vm1538, %v1499
      %1568 = vst.msk [vmem:[#allocation2 + $0x74] sm:$0xf] %vm1538, %v1501
      %1569 = vst.msk [vmem:[#allocation2 + $0x78] sm:$0xf] %vm1538, %v1503
      %1570 = vst.msk [vmem:[#allocation2 + $0x7c] sm:$0xf] %vm1538, %v1505
      %1571 = vrot.lane.b32.xlu0 %v479, 24
      %v1572 = vpop.permute.xlu0 %1571
      %1573 = vrot.lane.b32.xlu0 %v480, 24
      %v1574 = vpop.permute.xlu0 %1573
      %1575 = vrot.lane.b32.xlu0 %v481, 24
      %v1576 = vpop.permute.xlu0 %1575
      %1577 = vrot.lane.b32.xlu0 %v482, 24
      %v1578 = vpop.permute.xlu0 %1577
      %1579 = vrot.lane.b32.xlu0 %v483, 24
      %v1580 = vpop.permute.xlu0 %1579
      %1581 = vrot.lane.b32.xlu0 %v484, 24
      %v1582 = vpop.permute.xlu0 %1581
      %1583 = vrot.lane.b32.xlu0 %v485, 24
      %v1584 = vpop.permute.xlu0 %1583
      %1585 = vrot.lane.b32.xlu0 %v486, 24
      %v1586 = vpop.permute.xlu0 %1585
      %1587 = vrot.lane.b32.xlu0 %v487, 24
      %v1588 = vpop.permute.xlu0 %1587
      %1589 = vrot.lane.b32.xlu0 %v488, 24
      %v1590 = vpop.permute.xlu0 %1589
      %1591 = vrot.lane.b32.xlu0 %v489, 24
      %v1592 = vpop.permute.xlu0 %1591
      %1593 = vrot.lane.b32.xlu0 %v490, 24
      %v1594 = vpop.permute.xlu0 %1593
      %1595 = vrot.lane.b32.xlu0 %v491, 24
      %v1596 = vpop.permute.xlu0 %1595
      %1597 = vrot.lane.b32.xlu0 %v492, 24
      %v1598 = vpop.permute.xlu0 %1597
      %1599 = vrot.lane.b32.xlu0 %v493, 24
      %v1600 = vpop.permute.xlu0 %1599
      %1601 = vrot.lane.b32.xlu0 %v494, 24
      %v1602 = vpop.permute.xlu0 %1601
      %1603 = vrot.lane.b32.xlu0 %v495, 24
      %v1604 = vpop.permute.xlu0 %1603
      %1605 = vrot.lane.b32.xlu0 %v496, 24
      %v1606 = vpop.permute.xlu0 %1605
      %1607 = vrot.lane.b32.xlu0 %v497, 24
      %v1608 = vpop.permute.xlu0 %1607
      %1609 = vrot.lane.b32.xlu0 %v498, 24
      %v1610 = vpop.permute.xlu0 %1609
      %1611 = vrot.lane.b32.xlu0 %v499, 24
      %v1612 = vpop.permute.xlu0 %1611
      %1613 = vrot.lane.b32.xlu0 %v500, 24
      %v1614 = vpop.permute.xlu0 %1613
      %1615 = vrot.lane.b32.xlu0 %v501, 24
      %v1616 = vpop.permute.xlu0 %1615
      %1617 = vrot.lane.b32.xlu0 %v502, 24
      %v1618 = vpop.permute.xlu0 %1617
      %1619 = vrot.lane.b32.xlu0 %v503, 24
      %v1620 = vpop.permute.xlu0 %1619
      %1621 = vrot.lane.b32.xlu0 %v504, 24
      %v1622 = vpop.permute.xlu0 %1621
      %1623 = vrot.lane.b32.xlu0 %v505, 24
      %v1624 = vpop.permute.xlu0 %1623
      %1625 = vrot.lane.b32.xlu0 %v506, 24
      %v1626 = vpop.permute.xlu0 %1625
      %1627 = vrot.lane.b32.xlu0 %v1163, 24
      %v1628 = vpop.permute.xlu0 %1627
      %1629 = vrot.lane.b32.xlu0 %v1164, 24
      %v1630 = vpop.permute.xlu0 %1629
      %1631 = vrot.lane.b32.xlu0 %v475, 24
      %v1632 = vpop.permute.xlu0 %1631
      %1633 = vrot.lane.b32.xlu0 %v476, 24
      %v1634 = vpop.permute.xlu0 %1633
      %vm1667 = vcmask 224448
      %1668 = vst.msk [vmem:[#allocation2] sm:$0xf] %vm1667, %v1572
      %1669 = vst.msk [vmem:[#allocation2 + $0x4] sm:$0xf] %vm1667, %v1574
      %1670 = vst.msk [vmem:[#allocation2 + $0x8] sm:$0xf] %vm1667, %v1576
      %1671 = vst.msk [vmem:[#allocation2 + $0xc] sm:$0xf] %vm1667, %v1578
      %1672 = vst.msk [vmem:[#allocation2 + $0x10] sm:$0xf] %vm1667, %v1580
      %1673 = vst.msk [vmem:[#allocation2 + $0x14] sm:$0xf] %vm1667, %v1582
      %1674 = vst.msk [vmem:[#allocation2 + $0x18] sm:$0xf] %vm1667, %v1584
      %1675 = vst.msk [vmem:[#allocation2 + $0x1c] sm:$0xf] %vm1667, %v1586
      %1676 = vst.msk [vmem:[#allocation2 + $0x20] sm:$0xf] %vm1667, %v1588
      %1677 = vst.msk [vmem:[#allocation2 + $0x24] sm:$0xf] %vm1667, %v1590
      %1678 = vst.msk [vmem:[#allocation2 + $0x28] sm:$0xf] %vm1667, %v1592
      %1679 = vst.msk [vmem:[#allocation2 + $0x2c] sm:$0xf] %vm1667, %v1594
      %1680 = vst.msk [vmem:[#allocation2 + $0x30] sm:$0xf] %vm1667, %v1596
      %1681 = vst.msk [vmem:[#allocation2 + $0x34] sm:$0xf] %vm1667, %v1598
      %1682 = vst.msk [vmem:[#allocation2 + $0x38] sm:$0xf] %vm1667, %v1600
      %1683 = vst.msk [vmem:[#allocation2 + $0x3c] sm:$0xf] %vm1667, %v1602
      %1684 = vst.msk [vmem:[#allocation2 + $0x40] sm:$0xf] %vm1667, %v1604
      %1685 = vst.msk [vmem:[#allocation2 + $0x44] sm:$0xf] %vm1667, %v1606
      %1686 = vst.msk [vmem:[#allocation2 + $0x48] sm:$0xf] %vm1667, %v1608
      %1687 = vst.msk [vmem:[#allocation2 + $0x4c] sm:$0xf] %vm1667, %v1610
      %1688 = vst.msk [vmem:[#allocation2 + $0x50] sm:$0xf] %vm1667, %v1612
      %1689 = vst.msk [vmem:[#allocation2 + $0x54] sm:$0xf] %vm1667, %v1614
      %1690 = vst.msk [vmem:[#allocation2 + $0x58] sm:$0xf] %vm1667, %v1616
      %1691 = vst.msk [vmem:[#allocation2 + $0x5c] sm:$0xf] %vm1667, %v1618
      %1692 = vst.msk [vmem:[#allocation2 + $0x60] sm:$0xf] %vm1667, %v1620
      %1693 = vst.msk [vmem:[#allocation2 + $0x64] sm:$0xf] %vm1667, %v1622
      %1694 = vst.msk [vmem:[#allocation2 + $0x68] sm:$0xf] %vm1667, %v1624
      %1695 = vst.msk [vmem:[#allocation2 + $0x6c] sm:$0xf] %vm1667, %v1626
      %1696 = vst.msk [vmem:[#allocation2 + $0x70] sm:$0xf] %vm1667, %v1628
      %1697 = vst.msk [vmem:[#allocation2 + $0x74] sm:$0xf] %vm1667, %v1630
      %1698 = vst.msk [vmem:[#allocation2 + $0x78] sm:$0xf] %vm1667, %v1632
      %1699 = vst.msk [vmem:[#allocation2 + $0x7c] sm:$0xf] %vm1667, %v1634
      %1700 = vrot.lane.b32.xlu0 %v674, 28
      %v1701 = vpop.permute.xlu0 %1700
      %1702 = vrot.lane.b32.xlu0 %v675, 28
      %v1703 = vpop.permute.xlu0 %1702
      %1704 = vrot.lane.b32.xlu0 %v676, 28
      %v1705 = vpop.permute.xlu0 %1704
      %1706 = vrot.lane.b32.xlu0 %v677, 28
      %v1707 = vpop.permute.xlu0 %1706
      %1708 = vrot.lane.b32.xlu0 %v678, 28
      %v1709 = vpop.permute.xlu0 %1708
      %1710 = vrot.lane.b32.xlu0 %v679, 28
      %v1711 = vpop.permute.xlu0 %1710
      %1712 = vrot.lane.b32.xlu0 %v680, 28
      %v1713 = vpop.permute.xlu0 %1712
      %1714 = vrot.lane.b32.xlu0 %v681, 28
      %v1715 = vpop.permute.xlu0 %1714
      %1716 = vrot.lane.b32.xlu0 %v682, 28
      %v1717 = vpop.permute.xlu0 %1716
      %1718 = vrot.lane.b32.xlu0 %v683, 28
      %v1719 = vpop.permute.xlu0 %1718
      %1720 = vrot.lane.b32.xlu0 %v684, 28
      %v1721 = vpop.permute.xlu0 %1720
      %1722 = vrot.lane.b32.xlu0 %v685, 28
      %v1723 = vpop.permute.xlu0 %1722
      %1724 = vrot.lane.b32.xlu0 %v686, 28
      %v1725 = vpop.permute.xlu0 %1724
      %1726 = vrot.lane.b32.xlu0 %v687, 28
      %v1727 = vpop.permute.xlu0 %1726
      %1728 = vrot.lane.b32.xlu0 %v688, 28
      %v1729 = vpop.permute.xlu0 %1728
      %1730 = vrot.lane.b32.xlu0 %v689, 28
      %v1731 = vpop.permute.xlu0 %1730
      %1732 = vrot.lane.b32.xlu0 %v690, 28
      %v1733 = vpop.permute.xlu0 %1732
      %1734 = vrot.lane.b32.xlu0 %v691, 28
      %v1735 = vpop.permute.xlu0 %1734
      %1736 = vrot.lane.b32.xlu0 %v692, 28
      %v1737 = vpop.permute.xlu0 %1736
      %1738 = vrot.lane.b32.xlu0 %v693, 28
      %v1739 = vpop.permute.xlu0 %1738
      %1740 = vrot.lane.b32.xlu0 %v694, 28
      %v1741 = vpop.permute.xlu0 %1740
      %1742 = vrot.lane.b32.xlu0 %v695, 28
      %v1743 = vpop.permute.xlu0 %1742
      %1744 = vrot.lane.b32.xlu0 %v696, 28
      %v1745 = vpop.permute.xlu0 %1744
      %1746 = vrot.lane.b32.xlu0 %v697, 28
      %v1747 = vpop.permute.xlu0 %1746
      %1748 = vrot.lane.b32.xlu0 %v698, 28
      %v1749 = vpop.permute.xlu0 %1748
      %1750 = vrot.lane.b32.xlu0 %v699, 28
      %v1751 = vpop.permute.xlu0 %1750
      %1752 = vrot.lane.b32.xlu0 %v700, 28
      %v1753 = vpop.permute.xlu0 %1752
      %1754 = vrot.lane.b32.xlu0 %v701, 28
      %v1755 = vpop.permute.xlu0 %1754
      %1756 = vrot.lane.b32.xlu0 %v1300, 28
      %v1757 = vpop.permute.xlu0 %1756
      %1758 = vrot.lane.b32.xlu0 %v1301, 28
      %v1759 = vpop.permute.xlu0 %1758
      %1760 = vrot.lane.b32.xlu0 %v475, 28
      %v1761 = vpop.permute.xlu0 %1760
      %1762 = vrot.lane.b32.xlu0 %v476, 28
      %v1763 = vpop.permute.xlu0 %1762
      %vm1796 = vcmask 257248
      %1797 = vst.msk [vmem:[#allocation2] sm:$0xf] %vm1796, %v1701
      %1798 = vst.msk [vmem:[#allocation2 + $0x4] sm:$0xf] %vm1796, %v1703
      %1799 = vst.msk [vmem:[#allocation2 + $0x8] sm:$0xf] %vm1796, %v1705
      %1800 = vst.msk [vmem:[#allocation2 + $0xc] sm:$0xf] %vm1796, %v1707
      %1801 = vst.msk [vmem:[#allocation2 + $0x10] sm:$0xf] %vm1796, %v1709
      %1802 = vst.msk [vmem:[#allocation2 + $0x14] sm:$0xf] %vm1796, %v1711
      %1803 = vst.msk [vmem:[#allocation2 + $0x18] sm:$0xf] %vm1796, %v1713
      %1804 = vst.msk [vmem:[#allocation2 + $0x1c] sm:$0xf] %vm1796, %v1715
      %1805 = vst.msk [vmem:[#allocation2 + $0x20] sm:$0xf] %vm1796, %v1717
      %1806 = vst.msk [vmem:[#allocation2 + $0x24] sm:$0xf] %vm1796, %v1719
      %1807 = vst.msk [vmem:[#allocation2 + $0x28] sm:$0xf] %vm1796, %v1721
      %1808 = vst.msk [vmem:[#allocation2 + $0x2c] sm:$0xf] %vm1796, %v1723
      %1809 = vst.msk [vmem:[#allocation2 + $0x30] sm:$0xf] %vm1796, %v1725
      %1810 = vst.msk [vmem:[#allocation2 + $0x34] sm:$0xf] %vm1796, %v1727
      %1811 = vst.msk [vmem:[#allocation2 + $0x38] sm:$0xf] %vm1796, %v1729
      %1812 = vst.msk [vmem:[#allocation2 + $0x3c] sm:$0xf] %vm1796, %v1731
      %1813 = vst.msk [vmem:[#allocation2 + $0x40] sm:$0xf] %vm1796, %v1733
      %1814 = vst.msk [vmem:[#allocation2 + $0x44] sm:$0xf] %vm1796, %v1735
      %1815 = vst.msk [vmem:[#allocation2 + $0x48] sm:$0xf] %vm1796, %v1737
      %1816 = vst.msk [vmem:[#allocation2 + $0x4c] sm:$0xf] %vm1796, %v1739
      %1817 = vst.msk [vmem:[#allocation2 + $0x50] sm:$0xf] %vm1796, %v1741
      %1818 = vst.msk [vmem:[#allocation2 + $0x54] sm:$0xf] %vm1796, %v1743
      %1819 = vst.msk [vmem:[#allocation2 + $0x58] sm:$0xf] %vm1796, %v1745
      %1820 = vst.msk [vmem:[#allocation2 + $0x5c] sm:$0xf] %vm1796, %v1747
      %1821 = vst.msk [vmem:[#allocation2 + $0x60] sm:$0xf] %vm1796, %v1749
      %1822 = vst.msk [vmem:[#allocation2 + $0x64] sm:$0xf] %vm1796, %v1751
      %1823 = vst.msk [vmem:[#allocation2 + $0x68] sm:$0xf] %vm1796, %v1753
      %1824 = vst.msk [vmem:[#allocation2 + $0x6c] sm:$0xf] %vm1796, %v1755
      %1825 = vst.msk [vmem:[#allocation2 + $0x70] sm:$0xf] %vm1796, %v1757
      %1826 = vst.msk [vmem:[#allocation2 + $0x74] sm:$0xf] %vm1796, %v1759
      %1827 = vst.msk [vmem:[#allocation2 + $0x78] sm:$0xf] %vm1796, %v1761
      %1828 = vst.msk [vmem:[#allocation2 + $0x7c] sm:$0xf] %vm1796, %v1763
      %1829 = vrot.lane.b32.xlu0 %v997, 32
      %v1830 = vpop.permute.xlu0 %1829
      %1831 = vrot.lane.b32.xlu0 %v998, 32
      %v1832 = vpop.permute.xlu0 %1831
      %1833 = vrot.lane.b32.xlu0 %v999, 32
      %v1834 = vpop.permute.xlu0 %1833
      %1835 = vrot.lane.b32.xlu0 %v1000, 32
      %v1836 = vpop.permute.xlu0 %1835
      %1837 = vrot.lane.b32.xlu0 %v1001, 32
      %v1838 = vpop.permute.xlu0 %1837
      %1839 = vrot.lane.b32.xlu0 %v1002, 32
      %v1840 = vpop.permute.xlu0 %1839
      %1841 = vrot.lane.b32.xlu0 %v1003, 32
      %v1842 = vpop.permute.xlu0 %1841
      %1843 = vrot.lane.b32.xlu0 %v1004, 32
      %v1844 = vpop.permute.xlu0 %1843
      %1845 = vrot.lane.b32.xlu0 %v1005, 32
      %v1846 = vpop.permute.xlu0 %1845
      %1847 = vrot.lane.b32.xlu0 %v1006, 32
      %v1848 = vpop.permute.xlu0 %1847
      %1849 = vrot.lane.b32.xlu0 %v1007, 32
      %v1850 = vpop.permute.xlu0 %1849
      %1851 = vrot.lane.b32.xlu0 %v1008, 32
      %v1852 = vpop.permute.xlu0 %1851
      %1853 = vrot.lane.b32.xlu0 %v1009, 32
      %v1854 = vpop.permute.xlu0 %1853
      %1855 = vrot.lane.b32.xlu0 %v1010, 32
      %v1856 = vpop.permute.xlu0 %1855
      %1857 = vrot.lane.b32.xlu0 %v1011, 32
      %v1858 = vpop.permute.xlu0 %1857
      %1859 = vrot.lane.b32.xlu0 %v1012, 32
      %v1860 = vpop.permute.xlu0 %1859
      %1861 = vrot.lane.b32.xlu0 %v1013, 32
      %v1862 = vpop.permute.xlu0 %1861
      %1863 = vrot.lane.b32.xlu0 %v1014, 32
      %v1864 = vpop.permute.xlu0 %1863
      %1865 = vrot.lane.b32.xlu0 %v1015, 32
      %v1866 = vpop.permute.xlu0 %1865
      %1867 = vrot.lane.b32.xlu0 %v1016, 32
      %v1868 = vpop.permute.xlu0 %1867
      %1869 = vrot.lane.b32.xlu0 %v1017, 32
      %v1870 = vpop.permute.xlu0 %1869
      %1871 = vrot.lane.b32.xlu0 %v1018, 32
      %v1872 = vpop.permute.xlu0 %1871
      %1873 = vrot.lane.b32.xlu0 %v1019, 32
      %v1874 = vpop.permute.xlu0 %1873
      %1875 = vrot.lane.b32.xlu0 %v1020, 32
      %v1876 = vpop.permute.xlu0 %1875
      %1877 = vrot.lane.b32.xlu0 %v1021, 32
      %v1878 = vpop.permute.xlu0 %1877
      %1879 = vrot.lane.b32.xlu0 %v1022, 32
      %v1880 = vpop.permute.xlu0 %1879
      %1881 = vrot.lane.b32.xlu0 %v1023, 32
      %v1882 = vpop.permute.xlu0 %1881
      %1883 = vrot.lane.b32.xlu0 %v1024, 32
      %v1884 = vpop.permute.xlu0 %1883
      %1885 = vrot.lane.b32.xlu0 %v1440, 32
      %v1886 = vpop.permute.xlu0 %1885
      %1887 = vrot.lane.b32.xlu0 %v1441, 32
      %v1888 = vpop.permute.xlu0 %1887
      %1889 = vrot.lane.b32.xlu0 %v475, 32
      %v1890 = vpop.permute.xlu0 %1889
      %1891 = vrot.lane.b32.xlu0 %v476, 32
      %v1892 = vpop.permute.xlu0 %1891
      %vm1925 = vcmask 290048
      %1926 = vst.msk [vmem:[#allocation2] sm:$0xf] %vm1925, %v1830
      %1927 = vst.msk [vmem:[#allocation2 + $0x4] sm:$0xf] %vm1925, %v1832
      %1928 = vst.msk [vmem:[#allocation2 + $0x8] sm:$0xf] %vm1925, %v1834
      %1929 = vst.msk [vmem:[#allocation2 + $0xc] sm:$0xf] %vm1925, %v1836
      %1930 = vst.msk [vmem:[#allocation2 + $0x10] sm:$0xf] %vm1925, %v1838
      %1931 = vst.msk [vmem:[#allocation2 + $0x14] sm:$0xf] %vm1925, %v1840
      %1932 = vst.msk [vmem:[#allocation2 + $0x18] sm:$0xf] %vm1925, %v1842
      %1933 = vst.msk [vmem:[#allocation2 + $0x1c] sm:$0xf] %vm1925, %v1844
      %1934 = vst.msk [vmem:[#allocation2 + $0x20] sm:$0xf] %vm1925, %v1846
      %1935 = vst.msk [vmem:[#allocation2 + $0x24] sm:$0xf] %vm1925, %v1848
      %1936 = vst.msk [vmem:[#allocation2 + $0x28] sm:$0xf] %vm1925, %v1850
      %1937 = vst.msk [vmem:[#allocation2 + $0x2c] sm:$0xf] %vm1925, %v1852
      %1938 = vst.msk [vmem:[#allocation2 + $0x30] sm:$0xf] %vm1925, %v1854
      %1939 = vst.msk [vmem:[#allocation2 + $0x34] sm:$0xf] %vm1925, %v1856
      %1940 = vst.msk [vmem:[#allocation2 + $0x38] sm:$0xf] %vm1925, %v1858
      %1941 = vst.msk [vmem:[#allocation2 + $0x3c] sm:$0xf] %vm1925, %v1860
      %1942 = vst.msk [vmem:[#allocation2 + $0x40] sm:$0xf] %vm1925, %v1862
      %1943 = vst.msk [vmem:[#allocation2 + $0x44] sm:$0xf] %vm1925, %v1864
      %1944 = vst.msk [vmem:[#allocation2 + $0x48] sm:$0xf] %vm1925, %v1866
      %1945 = vst.msk [vmem:[#allocation2 + $0x4c] sm:$0xf] %vm1925, %v1868
      %1946 = vst.msk [vmem:[#allocation2 + $0x50] sm:$0xf] %vm1925, %v1870
      %1947 = vst.msk [vmem:[#allocation2 + $0x54] sm:$0xf] %vm1925, %v1872
      %1948 = vst.msk [vmem:[#allocation2 + $0x58] sm:$0xf] %vm1925, %v1874
      %1949 = vst.msk [vmem:[#allocation2 + $0x5c] sm:$0xf] %vm1925, %v1876
      %1950 = vst.msk [vmem:[#allocation2 + $0x60] sm:$0xf] %vm1925, %v1878
      %1951 = vst.msk [vmem:[#allocation2 + $0x64] sm:$0xf] %vm1925, %v1880
      %1952 = vst.msk [vmem:[#allocation2 + $0x68] sm:$0xf] %vm1925, %v1882
      %1953 = vst.msk [vmem:[#allocation2 + $0x6c] sm:$0xf] %vm1925, %v1884
      %1954 = vst.msk [vmem:[#allocation2 + $0x70] sm:$0xf] %vm1925, %v1886
      %1955 = vst.msk [vmem:[#allocation2 + $0x74] sm:$0xf] %vm1925, %v1888
      %1956 = vst.msk [vmem:[#allocation2 + $0x78] sm:$0xf] %vm1925, %v1890
      %1957 = vst.msk [vmem:[#allocation2 + $0x7c] sm:$0xf] %vm1925, %v1892
      %v1958 = vld [vmem:[#allocation2] sm:$0xf]
      %v1959 = vld [vmem:[#allocation2 + $0x4] sm:$0xf]
      %v1960 = vld [vmem:[#allocation2 + $0x8] sm:$0xf]
      %v1961 = vld [vmem:[#allocation2 + $0xc] sm:$0xf]
      %v1962 = vld [vmem:[#allocation2 + $0x10] sm:$0xf]
      %v1963 = vld [vmem:[#allocation2 + $0x14] sm:$0xf]
      %v1964 = vld [vmem:[#allocation2 + $0x18] sm:$0xf]
      %v1965 = vld [vmem:[#allocation2 + $0x1c] sm:$0xf]
      %v1966 = vld [vmem:[#allocation2 + $0x20] sm:$0xf]
      %v1967 = vld [vmem:[#allocation2 + $0x24] sm:$0xf]
      %v1968 = vld [vmem:[#allocation2 + $0x28] sm:$0xf]
      %v1969 = vld [vmem:[#allocation2 + $0x2c] sm:$0xf]
      %v1970 = vld [vmem:[#allocation2 + $0x30] sm:$0xf]
      %v1971 = vld [vmem:[#allocation2 + $0x34] sm:$0xf]
      %v1972 = vld [vmem:[#allocation2 + $0x38] sm:$0xf]
      %v1973 = vld [vmem:[#allocation2 + $0x3c] sm:$0xf]
      %v1974 = vld [vmem:[#allocation2 + $0x40] sm:$0xf]
      %v1975 = vld [vmem:[#allocation2 + $0x44] sm:$0xf]
      %v1976 = vld [vmem:[#allocation2 + $0x48] sm:$0xf]
      %v1977 = vld [vmem:[#allocation2 + $0x4c] sm:$0xf]
      %v1978 = vld [vmem:[#allocation2 + $0x50] sm:$0xf]
      %v1979 = vld [vmem:[#allocation2 + $0x54] sm:$0xf]
      %v1980 = vld [vmem:[#allocation2 + $0x58] sm:$0xf]
      %v1981 = vld [vmem:[#allocation2 + $0x5c] sm:$0xf]
      %v1982 = vld [vmem:[#allocation2 + $0x60] sm:$0xf]
      %v1983 = vld [vmem:[#allocation2 + $0x64] sm:$0xf]
      %v1984 = vld [vmem:[#allocation2 + $0x68] sm:$0xf]
      %v1985 = vld [vmem:[#allocation2 + $0x6c] sm:$0xf]
      %v1986 = vld [vmem:[#allocation2 + $0x70] sm:$0xf]
      %v1987 = vld [vmem:[#allocation2 + $0x74] sm:$0xf]
      %v1988 = vld [vmem:[#allocation2 + $0x78] sm:$0xf]
      %v1989 = vld [vmem:[#allocation2 + $0x7c] sm:$0xf]
      %v1990 = vld [vmem:[%s1] sm:$0xf]
      %v1991 = vld [vmem:[%s1 + $0x4] sm:$0xf]
      %v1992 = vld [vmem:[%s1 + $0x8] sm:$0xf]
      %v1993 = vld [vmem:[%s1 + $0xc] sm:$0xf]
      %v1994 = vld [vmem:[%s1 + $0x10] sm:$0x3]
      %v2027 = vunpack.c.l.b16 %v1958
      %v2028 = vunpack.c.l.b16 %v1959
      %v2029 = vunpack.c.l.b16 %v1960
      %v2030 = vunpack.c.l.b16 %v1961
      %v2031 = vunpack.c.l.b16 %v1962
      %v2032 = vunpack.c.l.b16 %v1963
      %v2033 = vunpack.c.l.b16 %v1964
      %v2034 = vunpack.c.l.b16 %v1965
      %v2035 = vunpack.c.l.b16 %v1966
      %v2036 = vunpack.c.l.b16 %v1967
      %v2037 = vunpack.c.l.b16 %v1968
      %v2038 = vunpack.c.l.b16 %v1969
      %v2039 = vunpack.c.l.b16 %v1970
      %v2040 = vunpack.c.l.b16 %v1971
      %v2041 = vunpack.c.l.b16 %v1972
      %v2042 = vunpack.c.l.b16 %v1973
      %v2043 = vunpack.c.l.b16 %v1974
      %v2044 = vunpack.c.l.b16 %v1975
      %v2045 = vunpack.c.l.b16 %v1976
      %v2046 = vunpack.c.l.b16 %v1977
      %v2047 = vunpack.c.l.b16 %v1978
      %v2048 = vunpack.c.l.b16 %v1979
      %v2049 = vunpack.c.l.b16 %v1980
      %v2050 = vunpack.c.l.b16 %v1981
      %v2051 = vunpack.c.l.b16 %v1982
      %v2052 = vunpack.c.l.b16 %v1983
      %v2053 = vunpack.c.l.b16 %v1984
      %v2054 = vunpack.c.l.b16 %v1985
      %v2055 = vunpack.c.l.b16 %v1986
      %v2056 = vunpack.c.l.b16 %v1987
      %v2057 = vunpack.c.l.b16 %v1988
      %v2058 = vunpack.c.l.b16 %v1989
      %v2059 = vpack.c.b16 %v2028, %v2027
      %v2060 = vpack.c.b16 %v2030, %v2029
      %v2061 = vpack.c.b16 %v2032, %v2031
      %v2062 = vpack.c.b16 %v2034, %v2033
      %v2063 = vpack.c.b16 %v2036, %v2035
      %v2064 = vpack.c.b16 %v2038, %v2037
      %v2065 = vpack.c.b16 %v2040, %v2039
      %v2066 = vpack.c.b16 %v2042, %v2041
      %v2067 = vpack.c.b16 %v2044, %v2043
      %v2068 = vpack.c.b16 %v2046, %v2045
      %v2069 = vpack.c.b16 %v2048, %v2047
      %v2070 = vpack.c.b16 %v2050, %v2049
      %v2071 = vpack.c.b16 %v2052, %v2051
      %v2072 = vpack.c.b16 %v2054, %v2053
      %v2073 = vpack.c.b16 %v2056, %v2055
      %v2074 = vpack.c.b16 %v2058, %v2057
      %v2080 = vunpack.c.l.b16 %v1990
      %v2081 = vunpack.c.l.b16 %v1991
      %v2082 = vunpack.c.l.b16 %v1992
      %v2083 = vunpack.c.l.b16 %v1993
      %v2084 = vunpack.c.l.b16 %v1994
      %v2085 = vpack.c.b16 %v2081, %v2080
      %v2086 = vpack.c.b16 %v2083, %v2082
      %v2087 = vpack.c.b16 %v2084, %v2084
      %vm2090 = vcmask 293888
      %v2092 = vsel %vm2090, %v2059, 0
      %v2095 = vsel %vm2090, %v2060, 0
      %v2098 = vsel %vm2090, %v2061, 0
      %v2101 = vsel %vm2090, %v2062, 0
      %v2104 = vsel %vm2090, %v2063, 0
      %v2107 = vsel %vm2090, %v2064, 0
      %v2110 = vsel %vm2090, %v2065, 0
      %v2113 = vsel %vm2090, %v2066, 0
      %v2116 = vsel %vm2090, %v2067, 0
      %v2119 = vsel %vm2090, %v2068, 0
      %v2122 = vsel %vm2090, %v2069, 0
      %v2125 = vsel %vm2090, %v2070, 0
      %v2128 = vsel %vm2090, %v2071, 0
      %v2131 = vsel %vm2090, %v2072, 0
      %v2134 = vsel %vm2090, %v2073, 0
      %v2137 = vsel %vm2090, %v2074, 0
      %vm2139 = vcmask 1041408
      %v2141 = vsel %vm2139, %v2087, 0
      %2143 = vmatprep.subr.bf16.mxu0 0
      %2144 = vmatpush1.bf16.msra.mxu0 0
      %2145 = vmatprep.subr.bf16.mxu0 0
      %2146 = vmatpush1.bf16.msra.mxu0 0
      %2147 = vmatprep.subr.bf16.mxu0 0
      %2148 = vmatpush1.bf16.msra.mxu0 0
      %2149 = vmatprep.subr.bf16.mxu0 0
      %2150 = vmatpush1.bf16.msra.mxu0 0
      %2151 = vmatprep.subr.bf16.mxu0 0
      %2152 = vmatpush1.bf16.msra.mxu0 0
      %2153 = vmatprep.subr.bf16.mxu0 0
      %2154 = vmatpush1.bf16.msra.mxu0 %v2141
      %2155 = vmatprep.subr.bf16.mxu0 0
      %2156 = vmatpush1.bf16.msra.mxu0 %v2086
      %2157 = vmatprep.subr.bf16.mxu0 0
      %2158 = vmatpush1.bf16.msra.mxu0 %v2085
      %2159 = vmatprep.subr.bf16.mxu0 0
      %2160 = vmatpush2.bf16.msra.mxu0 0
      %2161 = vmatprep.subr.bf16.mxu0 0
      %2162 = vmatpush2.bf16.msra.mxu0 0
      %2163 = vmatprep.subr.bf16.mxu0 0
      %2164 = vmatpush2.bf16.msra.mxu0 0
      %2165 = vmatprep.subr.bf16.mxu0 0
      %2166 = vmatpush2.bf16.msra.mxu0 0
      %2167 = vmatprep.subr.bf16.mxu0 0
      %2168 = vmatpush2.bf16.msra.mxu0 0
      %2169 = vmatprep.subr.bf16.mxu0 0
      %2170 = vmatpush2.bf16.msra.mxu0 0
      %2171 = vmatprep.subr.bf16.mxu0 0
      %2172 = vmatpush2.bf16.msra.mxu0 0
      %2173 = vmatprep.subr.bf16.mxu0 0
      %2174 = vmatpush2.bf16.msra.mxu0 0
      %2175 = vmatprep.mubr.bf16.mxu0 0
      %2176 = vmatmul.mubr.bf16.gmra.mxu0 %v2092
      %v2177 = vpop.f32.mrf.mxu0
      %v2178 = vadd.f32 0.0, %v2177
      %v2179 = vpop.f32.mrf.mxu0
      %v2180 = vpop.f32.mrf.mxu0
      %v2181 = vadd.f32 0.0, %v2180
      %v2182 = vpop.f32.mrf.mxu0
      %2183 = vmatprep.mubr.bf16.mxu0 0
      %2184 = vmatmul.mubr.bf16.gmra.mxu0 %v2095
      %v2185 = vpop.f32.mrf.mxu0
      %v2186 = vadd.f32 0.0, %v2185
      %v2187 = vpop.f32.mrf.mxu0
      %v2188 = vpop.f32.mrf.mxu0
      %v2189 = vadd.f32 0.0, %v2188
      %v2190 = vpop.f32.mrf.mxu0
      %2191 = vmatprep.mubr.bf16.mxu0 0
      %2192 = vmatmul.mubr.bf16.gmra.mxu0 %v2098
      %v2193 = vpop.f32.mrf.mxu0
      %v2194 = vadd.f32 0.0, %v2193
      %v2195 = vpop.f32.mrf.mxu0
      %v2196 = vpop.f32.mrf.mxu0
      %v2197 = vadd.f32 0.0, %v2196
      %v2198 = vpop.f32.mrf.mxu0
      %2199 = vmatprep.mubr.bf16.mxu0 0
      %2200 = vmatmul.mubr.bf16.gmra.mxu0 %v2101
      %v2201 = vpop.f32.mrf.mxu0
      %v2202 = vadd.f32 0.0, %v2201
      %v2203 = vpop.f32.mrf.mxu0
      %v2204 = vpop.f32.mrf.mxu0
      %v2205 = vadd.f32 0.0, %v2204
      %v2206 = vpop.f32.mrf.mxu0
      %2207 = vmatprep.mubr.bf16.mxu0 0
      %2208 = vmatmul.mubr.bf16.gmra.mxu0 %v2104
      %v2209 = vpop.f32.mrf.mxu0
      %v2210 = vadd.f32 0.0, %v2209
      %v2211 = vpop.f32.mrf.mxu0
      %v2212 = vpop.f32.mrf.mxu0
      %v2213 = vadd.f32 0.0, %v2212
      %v2214 = vpop.f32.mrf.mxu0
      %2215 = vmatprep.mubr.bf16.mxu0 0
      %2216 = vmatmul.mubr.bf16.gmra.mxu0 %v2107
      %v2217 = vpop.f32.mrf.mxu0
      %v2218 = vadd.f32 0.0, %v2217
      %v2219 = vpop.f32.mrf.mxu0
      %v2220 = vpop.f32.mrf.mxu0
      %v2221 = vadd.f32 0.0, %v2220
      %v2222 = vpop.f32.mrf.mxu0
      %2223 = vmatprep.mubr.bf16.mxu0 0
      %2224 = vmatmul.mubr.bf16.gmra.mxu0 %v2110
      %v2225 = vpop.f32.mrf.mxu0
      %v2226 = vadd.f32 0.0, %v2225
      %v2227 = vpop.f32.mrf.mxu0
      %v2228 = vpop.f32.mrf.mxu0
      %v2229 = vadd.f32 0.0, %v2228
      %v2230 = vpop.f32.mrf.mxu0
      %2231 = vmatprep.mubr.bf16.mxu0 0
      %2232 = vmatmul.mubr.bf16.gmra.mxu0 %v2113
      %v2233 = vpop.f32.mrf.mxu0
      %v2234 = vadd.f32 0.0, %v2233
      %v2235 = vpop.f32.mrf.mxu0
      %v2236 = vpop.f32.mrf.mxu0
      %v2237 = vadd.f32 0.0, %v2236
      %v2238 = vpop.f32.mrf.mxu0
      %2239 = vmatprep.mubr.bf16.mxu0 0
      %2240 = vmatmul.mubr.bf16.gmra.mxu0 %v2116
      %v2241 = vpop.f32.mrf.mxu0
      %v2242 = vadd.f32 0.0, %v2241
      %v2243 = vpop.f32.mrf.mxu0
      %v2244 = vpop.f32.mrf.mxu0
      %v2245 = vadd.f32 0.0, %v2244
      %v2246 = vpop.f32.mrf.mxu0
      %2247 = vmatprep.mubr.bf16.mxu0 0
      %2248 = vmatmul.mubr.bf16.gmra.mxu0 %v2119
      %v2249 = vpop.f32.mrf.mxu0
      %v2250 = vadd.f32 0.0, %v2249
      %v2251 = vpop.f32.mrf.mxu0
      %v2252 = vpop.f32.mrf.mxu0
      %v2253 = vadd.f32 0.0, %v2252
      %v2254 = vpop.f32.mrf.mxu0
      %2255 = vmatprep.mubr.bf16.mxu0 0
      %2256 = vmatmul.mubr.bf16.gmra.mxu0 %v2122
      %v2257 = vpop.f32.mrf.mxu0
      %v2258 = vadd.f32 0.0, %v2257
      %v2259 = vpop.f32.mrf.mxu0
      %v2260 = vpop.f32.mrf.mxu0
      %v2261 = vadd.f32 0.0, %v2260
      %v2262 = vpop.f32.mrf.mxu0
      %2263 = vmatprep.mubr.bf16.mxu0 0
      %2264 = vmatmul.mubr.bf16.gmra.mxu0 %v2125
      %v2265 = vpop.f32.mrf.mxu0
      %v2266 = vadd.f32 0.0, %v2265
      %v2267 = vpop.f32.mrf.mxu0
      %v2268 = vpop.f32.mrf.mxu0
      %v2269 = vadd.f32 0.0, %v2268
      %v2270 = vpop.f32.mrf.mxu0
      %2271 = vmatprep.mubr.bf16.mxu0 0
      %2272 = vmatmul.mubr.bf16.gmra.mxu0 %v2128
      %v2273 = vpop.f32.mrf.mxu0
      %v2274 = vadd.f32 0.0, %v2273
      %v2275 = vpop.f32.mrf.mxu0
      %v2276 = vpop.f32.mrf.mxu0
      %v2277 = vadd.f32 0.0, %v2276
      %v2278 = vpop.f32.mrf.mxu0
      %2279 = vmatprep.mubr.bf16.mxu0 0
      %2280 = vmatmul.mubr.bf16.gmra.mxu0 %v2131
      %v2281 = vpop.f32.mrf.mxu0
      %v2282 = vadd.f32 0.0, %v2281
      %v2283 = vpop.f32.mrf.mxu0
      %v2284 = vpop.f32.mrf.mxu0
      %v2285 = vadd.f32 0.0, %v2284
      %v2286 = vpop.f32.mrf.mxu0
      %2287 = vmatprep.mubr.bf16.mxu0 0
      %2288 = vmatmul.mubr.bf16.gmra.mxu0 %v2134
      %v2289 = vpop.f32.mrf.mxu0
      %v2290 = vadd.f32 0.0, %v2289
      %v2291 = vpop.f32.mrf.mxu0
      %v2292 = vpop.f32.mrf.mxu0
      %v2293 = vadd.f32 0.0, %v2292
      %v2294 = vpop.f32.mrf.mxu0
      %2295 = vmatprep.mubr.bf16.mxu0 0
      %2296 = vmatmul.mubr.bf16.gmra.mxu0 %v2137
      %v2297 = vpop.f32.mrf.mxu0
      %v2298 = vadd.f32 0.0, %v2297
      %v2299 = vpop.f32.mrf.mxu0
      %v2300 = vpop.f32.mrf.mxu0
      %v2301 = vadd.f32 0.0, %v2300
      %v2302 = vpop.f32.mrf.mxu0
      %2303 = vdwg.mxu0
      %v2304 = vlaneseq
      %v2305 = vshrl.u32 %v2304, 7
      %v2306 = vsub.s32 2, %v2305
      %v2307 = vrot.slane %v231, %v2306
      %v2308 = vmul.f32 %v2178, %v2307
      %v2309 = vmul.f32 %v2181, %v2307
      %v2310 = vmul.f32 %v2186, %v2307
      %v2311 = vmul.f32 %v2189, %v2307
      %v2312 = vmul.f32 %v2194, %v2307
      %v2313 = vmul.f32 %v2197, %v2307
      %v2314 = vmul.f32 %v2202, %v2307
      %v2315 = vmul.f32 %v2205, %v2307
      %v2316 = vmul.f32 %v2210, %v2307
      %v2317 = vmul.f32 %v2213, %v2307
      %v2318 = vmul.f32 %v2218, %v2307
      %v2319 = vmul.f32 %v2221, %v2307
      %v2320 = vmul.f32 %v2226, %v2307
      %v2321 = vmul.f32 %v2229, %v2307
      %v2322 = vmul.f32 %v2234, %v2307
      %v2323 = vmul.f32 %v2237, %v2307
      %v2324 = vmul.f32 %v2242, %v2307
      %v2325 = vmul.f32 %v2245, %v2307
      %v2326 = vmul.f32 %v2250, %v2307
      %v2327 = vmul.f32 %v2253, %v2307
      %v2328 = vmul.f32 %v2258, %v2307
      %v2329 = vmul.f32 %v2261, %v2307
      %v2330 = vmul.f32 %v2266, %v2307
      %v2331 = vmul.f32 %v2269, %v2307
      %v2332 = vmul.f32 %v2274, %v2307
      %v2333 = vmul.f32 %v2277, %v2307
      %v2334 = vmul.f32 %v2282, %v2307
      %v2335 = vmul.f32 %v2285, %v2307
      %v2336 = vmul.f32 %v2290, %v2307
      %v2337 = vmul.f32 %v2293, %v2307
      %v2338 = vmul.f32 %v2298, %v2307
      %v2339 = vmul.f32 %v2301, %v2307
      %v2340 = vlaneseq
      %v2341 = vshrl.u32 %v2340, 7
      %v2342 = vsub.s32 3, %v2341
      %v2343 = vrot.slane %v231, %v2342
      %v2344 = vadd.f32 %v2308, %v2343
      %v2345 = vadd.f32 %v2309, %v2343
      %v2346 = vadd.f32 %v2310, %v2343
      %v2347 = vadd.f32 %v2311, %v2343
      %v2348 = vadd.f32 %v2312, %v2343
      %v2349 = vadd.f32 %v2313, %v2343
      %v2350 = vadd.f32 %v2314, %v2343
      %v2351 = vadd.f32 %v2315, %v2343
      %v2352 = vadd.f32 %v2316, %v2343
      %v2353 = vadd.f32 %v2317, %v2343
      %v2354 = vadd.f32 %v2318, %v2343
      %v2355 = vadd.f32 %v2319, %v2343
      %v2356 = vadd.f32 %v2320, %v2343
      %v2357 = vadd.f32 %v2321, %v2343
      %v2358 = vadd.f32 %v2322, %v2343
      %v2359 = vadd.f32 %v2323, %v2343
      %v2360 = vadd.f32 %v2324, %v2343
      %v2361 = vadd.f32 %v2325, %v2343
      %v2362 = vadd.f32 %v2326, %v2343
      %v2363 = vadd.f32 %v2327, %v2343
      %v2364 = vadd.f32 %v2328, %v2343
      %v2365 = vadd.f32 %v2329, %v2343
      %v2366 = vadd.f32 %v2330, %v2343
      %v2367 = vadd.f32 %v2331, %v2343
      %v2368 = vadd.f32 %v2332, %v2343
      %v2369 = vadd.f32 %v2333, %v2343
      %v2370 = vadd.f32 %v2334, %v2343
      %v2371 = vadd.f32 %v2335, %v2343
      %v2372 = vadd.f32 %v2336, %v2343
      %v2373 = vadd.f32 %v2337, %v2343
      %v2374 = vadd.f32 %v2338, %v2343
      %v2375 = vadd.f32 %v2339, %v2343
      %vm2376 = vcmp.ge.f32.partialorder %v2344, 0.0
      %vm2377 = vcmp.ge.f32.partialorder %v2345, 0.0
      %vm2378 = vcmp.ge.f32.partialorder %v2346, 0.0
      %vm2379 = vcmp.ge.f32.partialorder %v2347, 0.0
      %vm2380 = vcmp.ge.f32.partialorder %v2348, 0.0
      %vm2381 = vcmp.ge.f32.partialorder %v2349, 0.0
      %vm2382 = vcmp.ge.f32.partialorder %v2350, 0.0
      %vm2383 = vcmp.ge.f32.partialorder %v2351, 0.0
      %vm2384 = vcmp.ge.f32.partialorder %v2352, 0.0
      %vm2385 = vcmp.ge.f32.partialorder %v2353, 0.0
      %vm2386 = vcmp.ge.f32.partialorder %v2354, 0.0
      %vm2387 = vcmp.ge.f32.partialorder %v2355, 0.0
      %vm2388 = vcmp.ge.f32.partialorder %v2356, 0.0
      %vm2389 = vcmp.ge.f32.partialorder %v2357, 0.0
      %vm2390 = vcmp.ge.f32.partialorder %v2358, 0.0
      %vm2391 = vcmp.ge.f32.partialorder %v2359, 0.0
      %vm2392 = vcmp.ge.f32.partialorder %v2360, 0.0
      %vm2393 = vcmp.ge.f32.partialorder %v2361, 0.0
      %vm2394 = vcmp.ge.f32.partialorder %v2362, 0.0
      %vm2395 = vcmp.ge.f32.partialorder %v2363, 0.0
      %vm2396 = vcmp.ge.f32.partialorder %v2364, 0.0
      %vm2397 = vcmp.ge.f32.partialorder %v2365, 0.0
      %vm2398 = vcmp.ge.f32.partialorder %v2366, 0.0
      %vm2399 = vcmp.ge.f32.partialorder %v2367, 0.0
      %vm2400 = vcmp.ge.f32.partialorder %v2368, 0.0
      %vm2401 = vcmp.ge.f32.partialorder %v2369, 0.0
      %vm2402 = vcmp.ge.f32.partialorder %v2370, 0.0
      %vm2403 = vcmp.ge.f32.partialorder %v2371, 0.0
      %vm2404 = vcmp.ge.f32.partialorder %v2372, 0.0
      %vm2405 = vcmp.ge.f32.partialorder %v2373, 0.0
      %vm2406 = vcmp.ge.f32.partialorder %v2374, 0.0
      %vm2407 = vcmp.ge.f32.partialorder %v2375, 0.0
      %v2408 = vlaneseq
      %v2409 = vshrl.u32 %v2408, 7
      %v2410 = vsub.s32 4, %v2409
      %v2411 = vrot.slane %v231, %v2410
      %v2412 = vmul.f32 %v2411, %v2344
      %v2413 = vmul.f32 %v2411, %v2345
      %v2414 = vmul.f32 %v2411, %v2346
      %v2415 = vmul.f32 %v2411, %v2347
      %v2416 = vmul.f32 %v2411, %v2348
      %v2417 = vmul.f32 %v2411, %v2349
      %v2418 = vmul.f32 %v2411, %v2350
      %v2419 = vmul.f32 %v2411, %v2351
      %v2420 = vmul.f32 %v2411, %v2352
      %v2421 = vmul.f32 %v2411, %v2353
      %v2422 = vmul.f32 %v2411, %v2354
      %v2423 = vmul.f32 %v2411, %v2355
      %v2424 = vmul.f32 %v2411, %v2356
      %v2425 = vmul.f32 %v2411, %v2357
      %v2426 = vmul.f32 %v2411, %v2358
      %v2427 = vmul.f32 %v2411, %v2359
      %v2428 = vmul.f32 %v2411, %v2360
      %v2429 = vmul.f32 %v2411, %v2361
      %v2430 = vmul.f32 %v2411, %v2362
      %v2431 = vmul.f32 %v2411, %v2363
      %v2432 = vmul.f32 %v2411, %v2364
      %v2433 = vmul.f32 %v2411, %v2365
      %v2434 = vmul.f32 %v2411, %v2366
      %v2435 = vmul.f32 %v2411, %v2367
      %v2436 = vmul.f32 %v2411, %v2368
      %v2437 = vmul.f32 %v2411, %v2369
      %v2438 = vmul.f32 %v2411, %v2370
      %v2439 = vmul.f32 %v2411, %v2371
      %v2440 = vmul.f32 %v2411, %v2372
      %v2441 = vmul.f32 %v2411, %v2373
      %v2442 = vmul.f32 %v2411, %v2374
      %v2443 = vmul.f32 %v2411, %v2375
      %v2444 = vsel %vm2376, %v2344, %v2412
      %v2445 = vsel %vm2377, %v2345, %v2413
      %v2446 = vsel %vm2378, %v2346, %v2414
      %v2447 = vsel %vm2379, %v2347, %v2415
      %v2448 = vsel %vm2380, %v2348, %v2416
      %v2449 = vsel %vm2381, %v2349, %v2417
      %v2450 = vsel %vm2382, %v2350, %v2418
      %v2451 = vsel %vm2383, %v2351, %v2419
      %v2452 = vsel %vm2384, %v2352, %v2420
      %v2453 = vsel %vm2385, %v2353, %v2421
      %v2454 = vsel %vm2386, %v2354, %v2422
      %v2455 = vsel %vm2387, %v2355, %v2423
      %v2456 = vsel %vm2388, %v2356, %v2424
      %v2457 = vsel %vm2389, %v2357, %v2425
      %v2458 = vsel %vm2390, %v2358, %v2426
      %v2459 = vsel %vm2391, %v2359, %v2427
      %v2460 = vsel %vm2392, %v2360, %v2428
      %v2461 = vsel %vm2393, %v2361, %v2429
      %v2462 = vsel %vm2394, %v2362, %v2430
      %v2463 = vsel %vm2395, %v2363, %v2431
      %v2464 = vsel %vm2396, %v2364, %v2432
      %v2465 = vsel %vm2397, %v2365, %v2433
      %v2466 = vsel %vm2398, %v2366, %v2434
      %v2467 = vsel %vm2399, %v2367, %v2435
      %v2468 = vsel %vm2400, %v2368, %v2436
      %v2469 = vsel %vm2401, %v2369, %v2437
      %v2470 = vsel %vm2402, %v2370, %v2438
      %v2471 = vsel %vm2403, %v2371, %v2439
      %v2472 = vsel %vm2404, %v2372, %v2440
      %v2473 = vsel %vm2405, %v2373, %v2441
      %v2474 = vsel %vm2406, %v2374, %v2442
      %v2475 = vsel %vm2407, %v2375, %v2443
      %v2476 = vrot.slane %v2444, 7
      %v2477 = vrot.slane %v2445, 7
      %v2478 = vrot.slane %v2446, 7
      %v2479 = vrot.slane %v2447, 7
      %v2480 = vrot.slane %v2448, 7
      %v2481 = vrot.slane %v2449, 7
      %v2482 = vrot.slane %v2450, 7
      %v2483 = vrot.slane %v2451, 7
      %v2484 = vrot.slane %v2452, 7
      %v2485 = vrot.slane %v2453, 7
      %v2486 = vrot.slane %v2454, 7
      %v2487 = vrot.slane %v2455, 7
      %v2488 = vrot.slane %v2456, 7
      %v2489 = vrot.slane %v2457, 7
      %v2490 = vrot.slane %v2458, 7
      %v2491 = vrot.slane %v2459, 7
      %v2492 = vrot.slane %v2460, 7
      %v2493 = vrot.slane %v2461, 7
      %v2494 = vrot.slane %v2462, 7
      %v2495 = vrot.slane %v2463, 7
      %v2496 = vrot.slane %v2464, 7
      %v2497 = vrot.slane %v2465, 7
      %v2498 = vrot.slane %v2466, 7
      %v2499 = vrot.slane %v2467, 7
      %v2500 = vrot.slane %v2468, 7
      %v2501 = vrot.slane %v2469, 7
      %v2502 = vrot.slane %v2470, 7
      %v2503 = vrot.slane %v2471, 7
      %v2504 = vrot.slane %v2472, 7
      %v2505 = vrot.slane %v2473, 7
      %v2506 = vrot.slane %v2475, 7
      %v2507 = vsel %vm338, %v2504, %v2505
      %v2508 = vsel %vm338, %v2503, %v2504
      %v2509 = vsel %vm338, %v2502, %v2503
      %v2510 = vsel %vm338, %v2501, %v2502
      %v2511 = vsel %vm338, %v2500, %v2501
      %v2512 = vsel %vm338, %v2499, %v2500
      %v2513 = vsel %vm338, %v2498, %v2499
      %v2514 = vsel %vm338, %v2497, %v2498
      %v2515 = vsel %vm338, %v2496, %v2497
      %v2516 = vsel %vm338, %v2495, %v2496
      %v2517 = vsel %vm338, %v2494, %v2495
      %v2518 = vsel %vm338, %v2493, %v2494
      %v2519 = vsel %vm338, %v2492, %v2493
      %v2520 = vsel %vm338, %v2491, %v2492
      %v2521 = vsel %vm338, %v2490, %v2491
      %v2522 = vsel %vm338, %v2489, %v2490
      %v2523 = vsel %vm338, %v2488, %v2489
      %v2524 = vsel %vm338, %v2487, %v2488
      %v2525 = vsel %vm338, %v2486, %v2487
      %v2526 = vsel %vm338, %v2485, %v2486
      %v2527 = vsel %vm338, %v2484, %v2485
      %v2528 = vsel %vm338, %v2483, %v2484
      %v2529 = vsel %vm338, %v2482, %v2483
      %v2530 = vsel %vm338, %v2481, %v2482
      %v2531 = vsel %vm338, %v2480, %v2481
      %v2532 = vsel %vm338, %v2479, %v2480
      %v2533 = vsel %vm338, %v2478, %v2479
      %v2534 = vsel %vm338, %v2477, %v2478
      %v2535 = vsel %vm338, %v2476, %v2477
      %v2536 = vsel %vm338, %v2506, %v2476
      %v2537 = vsel %vm379, %v2536, 0.0
      %v2538 = vsel %vm380, %v2535, 0.0
      %v2539 = vsel %vm379, %v2534, 0.0
      %v2540 = vsel %vm380, %v2533, 0.0
      %v2541 = vsel %vm379, %v2532, 0.0
      %v2542 = vsel %vm380, %v2531, 0.0
      %v2543 = vsel %vm379, %v2530, 0.0
      %v2544 = vsel %vm380, %v2529, 0.0
      %v2545 = vsel %vm379, %v2528, 0.0
      %v2546 = vsel %vm380, %v2527, 0.0
      %v2547 = vsel %vm379, %v2526, 0.0
      %v2548 = vsel %vm380, %v2525, 0.0
      %v2549 = vsel %vm379, %v2524, 0.0
      %v2550 = vsel %vm380, %v2523, 0.0
      %v2551 = vsel %vm379, %v2522, 0.0
      %v2552 = vsel %vm380, %v2521, 0.0
      %v2553 = vsel %vm379, %v2520, 0.0
      %v2554 = vsel %vm380, %v2519, 0.0
      %v2555 = vsel %vm379, %v2518, 0.0
      %v2556 = vsel %vm380, %v2517, 0.0
      %v2557 = vsel %vm379, %v2516, 0.0
      %v2558 = vsel %vm380, %v2515, 0.0
      %v2559 = vsel %vm379, %v2514, 0.0
      %v2560 = vsel %vm380, %v2513, 0.0
      %v2561 = vsel %vm379, %v2512, 0.0
      %v2562 = vsel %vm380, %v2511, 0.0
      %v2563 = vsel %vm379, %v2510, 0.0
      %v2564 = vsel %vm380, %v2509, 0.0
      %v2565 = vsel %vm379, %v2508, 0.0
      %v2566 = vsel %vm380, %v2507, 0.0
      %v2567 = vpack.c.bf16 %v2538, %v2537
      %v2568 = vpack.c.bf16 %v2540, %v2539
      %v2569 = vpack.c.bf16 %v2542, %v2541
      %v2570 = vpack.c.bf16 %v2544, %v2543
      %v2571 = vpack.c.bf16 %v2546, %v2545
      %v2572 = vpack.c.bf16 %v2548, %v2547
      %v2573 = vpack.c.bf16 %v2550, %v2549
      %v2574 = vpack.c.bf16 %v2552, %v2551
      %v2575 = vpack.c.bf16 %v2554, %v2553
      %v2576 = vpack.c.bf16 %v2556, %v2555
      %v2577 = vpack.c.bf16 %v2558, %v2557
      %v2578 = vpack.c.bf16 %v2560, %v2559
      %v2579 = vpack.c.bf16 %v2562, %v2561
      %v2580 = vpack.c.bf16 %v2564, %v2563
      %v2581 = vpack.c.bf16 %v2566, %v2565
      %v2597 = vunpack.c.l.b16 %v2567
      %v2598 = vunpack.c.h.b16 %v2567
      %v2599 = vunpack.c.l.b16 %v2568
      %v2600 = vunpack.c.h.b16 %v2568
      %v2601 = vunpack.c.l.b16 %v2569
      %v2602 = vunpack.c.h.b16 %v2569
      %v2603 = vunpack.c.l.b16 %v2570
      %v2604 = vunpack.c.h.b16 %v2570
      %v2605 = vunpack.c.l.b16 %v2571
      %v2606 = vunpack.c.h.b16 %v2571
      %v2607 = vunpack.c.l.b16 %v2572
      %v2608 = vunpack.c.h.b16 %v2572
      %v2609 = vunpack.c.l.b16 %v2573
      %v2610 = vunpack.c.h.b16 %v2573
      %v2611 = vunpack.c.l.b16 %v2574
      %v2612 = vunpack.c.h.b16 %v2574
      %v2613 = vunpack.c.l.b16 %v2575
      %v2614 = vunpack.c.h.b16 %v2575
      %v2615 = vunpack.c.l.b16 %v2576
      %v2616 = vunpack.c.h.b16 %v2576
      %v2617 = vunpack.c.l.b16 %v2577
      %v2618 = vunpack.c.h.b16 %v2577
      %v2619 = vunpack.c.l.b16 %v2578
      %v2620 = vunpack.c.h.b16 %v2578
      %v2621 = vunpack.c.l.b16 %v2579
      %v2622 = vunpack.c.h.b16 %v2579
      %v2623 = vunpack.c.l.b16 %v2580
      %v2624 = vunpack.c.h.b16 %v2580
      %v2625 = vunpack.c.l.b16 %v2581
      %v2626 = vunpack.c.h.b16 %v2581
      %v2627 = vpack.c.b16 %v2597, %v2597
      %v2628 = vpack.c.b16 %v2598, %v2598
      %v2629 = vpack.c.b16 %v2599, %v2599
      %v2630 = vpack.c.b16 %v2600, %v2600
      %v2631 = vpack.c.b16 %v2601, %v2601
      %v2632 = vpack.c.b16 %v2602, %v2602
      %v2633 = vpack.c.b16 %v2603, %v2603
      %v2634 = vpack.c.b16 %v2604, %v2604
      %v2635 = vpack.c.b16 %v2605, %v2605
      %v2636 = vpack.c.b16 %v2606, %v2606
      %v2637 = vpack.c.b16 %v2607, %v2607
      %v2638 = vpack.c.b16 %v2608, %v2608
      %v2639 = vpack.c.b16 %v2609, %v2609
      %v2640 = vpack.c.b16 %v2610, %v2610
      %v2641 = vpack.c.b16 %v2611, %v2611
      %v2642 = vpack.c.b16 %v2612, %v2612
      %v2643 = vpack.c.b16 %v2613, %v2613
      %v2644 = vpack.c.b16 %v2614, %v2614
      %v2645 = vpack.c.b16 %v2615, %v2615
      %v2646 = vpack.c.b16 %v2616, %v2616
      %v2647 = vpack.c.b16 %v2617, %v2617
      %v2648 = vpack.c.b16 %v2618, %v2618
      %v2649 = vpack.c.b16 %v2619, %v2619
      %v2650 = vpack.c.b16 %v2620, %v2620
      %v2651 = vpack.c.b16 %v2621, %v2621
      %v2652 = vpack.c.b16 %v2622, %v2622
      %v2653 = vpack.c.b16 %v2623, %v2623
      %v2654 = vpack.c.b16 %v2624, %v2624
      %v2655 = vpack.c.b16 %v2625, %v2625
      %v2656 = vpack.c.b16 %v2626, %v2626
      %2687 = vst.msk [vmem:[#allocation2] sm:$0xf] %vm539, %v475
      %2688 = vst.msk [vmem:[#allocation2 + $0x4] sm:$0xf] %vm539, %v476
      %2689 = vst.msk [vmem:[#allocation2 + $0x8] sm:$0xf] %vm539, %v2627
      %2690 = vst.msk [vmem:[#allocation2 + $0xc] sm:$0xf] %vm539, %v2628
      %2691 = vst.msk [vmem:[#allocation2 + $0x10] sm:$0xf] %vm539, %v2629
      %2692 = vst.msk [vmem:[#allocation2 + $0x14] sm:$0xf] %vm539, %v2630
      %2693 = vst.msk [vmem:[#allocation2 + $0x18] sm:$0xf] %vm539, %v2631
      %2694 = vst.msk [vmem:[#allocation2 + $0x1c] sm:$0xf] %vm539, %v2632
      %2695 = vst.msk [vmem:[#allocation2 + $0x20] sm:$0xf] %vm539, %v2633
      %2696 = vst.msk [vmem:[#allocation2 + $0x24] sm:$0xf] %vm539, %v2634
      %2697 = vst.msk [vmem:[#allocation2 + $0x28] sm:$0xf] %vm539, %v2635
      %2698 = vst.msk [vmem:[#allocation2 + $0x2c] sm:$0xf] %vm539, %v2636
      %2699 = vst.msk [vmem:[#allocation2 + $0x30] sm:$0xf] %vm539, %v2637
      %2700 = vst.msk [vmem:[#allocation2 + $0x34] sm:$0xf] %vm539, %v2638
      %2701 = vst.msk [vmem:[#allocation2 + $0x38] sm:$0xf] %vm539, %v2639
      %2702 = vst.msk [vmem:[#allocation2 + $0x3c] sm:$0xf] %vm539, %v2640
      %2703 = vst.msk [vmem:[#allocation2 + $0x40] sm:$0xf] %vm539, %v2641
      %2704 = vst.msk [vmem:[#allocation2 + $0x44] sm:$0xf] %vm539, %v2642
      %2705 = vst.msk [vmem:[#allocation2 + $0x48] sm:$0xf] %vm539, %v2643
      %2706 = vst.msk [vmem:[#allocation2 + $0x4c] sm:$0xf] %vm539, %v2644
      %2707 = vst.msk [vmem:[#allocation2 + $0x50] sm:$0xf] %vm539, %v2645
      %2708 = vst.msk [vmem:[#allocation2 + $0x54] sm:$0xf] %vm539, %v2646
      %2709 = vst.msk [vmem:[#allocation2 + $0x58] sm:$0xf] %vm539, %v2647
      %2710 = vst.msk [vmem:[#allocation2 + $0x5c] sm:$0xf] %vm539, %v2648
      %2711 = vst.msk [vmem:[#allocation2 + $0x60] sm:$0xf] %vm539, %v2649
      %2712 = vst.msk [vmem:[#allocation2 + $0x64] sm:$0xf] %vm539, %v2650
      %2713 = vst.msk [vmem:[#allocation2 + $0x68] sm:$0xf] %vm539, %v2651
      %2714 = vst.msk [vmem:[#allocation2 + $0x6c] sm:$0xf] %vm539, %v2652
      %2715 = vst.msk [vmem:[#allocation2 + $0x70] sm:$0xf] %vm539, %v2653
      %2716 = vst.msk [vmem:[#allocation2 + $0x74] sm:$0xf] %vm539, %v2654
      %2717 = vst.msk [vmem:[#allocation2 + $0x78] sm:$0xf] %vm539, %v2655
      %2718 = vst.msk [vmem:[#allocation2 + $0x7c] sm:$0xf] %vm539, %v2656
      %v2719 = vsel %vm580, %v2444, 0.0
      %v2720 = vsel %vm581, %v2445, 0.0
      %v2721 = vsel %vm580, %v2446, 0.0
      %v2722 = vsel %vm581, %v2447, 0.0
      %v2723 = vsel %vm580, %v2448, 0.0
      %v2724 = vsel %vm581, %v2449, 0.0
      %v2725 = vsel %vm580, %v2450, 0.0
      %v2726 = vsel %vm581, %v2451, 0.0
      %v2727 = vsel %vm580, %v2452, 0.0
      %v2728 = vsel %vm581, %v2453, 0.0
      %v2729 = vsel %vm580, %v2454, 0.0
      %v2730 = vsel %vm581, %v2455, 0.0
      %v2731 = vsel %vm580, %v2456, 0.0
      %v2732 = vsel %vm581, %v2457, 0.0
      %v2733 = vsel %vm580, %v2458, 0.0
      %v2734 = vsel %vm581, %v2459, 0.0
      %v2735 = vsel %vm580, %v2460, 0.0
      %v2736 = vsel %vm581, %v2461, 0.0
      %v2737 = vsel %vm580, %v2462, 0.0
      %v2738 = vsel %vm581, %v2463, 0.0
      %v2739 = vsel %vm580, %v2464, 0.0
      %v2740 = vsel %vm581, %v2465, 0.0
      %v2741 = vsel %vm580, %v2466, 0.0
      %v2742 = vsel %vm581, %v2467, 0.0
      %v2743 = vsel %vm580, %v2468, 0.0
      %v2744 = vsel %vm581, %v2469, 0.0
      %v2745 = vsel %vm580, %v2470, 0.0
      %v2746 = vsel %vm581, %v2471, 0.0
      %v2747 = vsel %vm580, %v2472, 0.0
      %v2748 = vsel %vm581, %v2473, 0.0
      %v2749 = vpack.c.bf16 %v2720, %v2719
      %v2750 = vpack.c.bf16 %v2722, %v2721
      %v2751 = vpack.c.bf16 %v2724, %v2723
      %v2752 = vpack.c.bf16 %v2726, %v2725
      %v2753 = vpack.c.bf16 %v2728, %v2727
      %v2754 = vpack.c.bf16 %v2730, %v2729
      %v2755 = vpack.c.bf16 %v2732, %v2731
      %v2756 = vpack.c.bf16 %v2734, %v2733
      %v2757 = vpack.c.bf16 %v2736, %v2735
      %v2758 = vpack.c.bf16 %v2738, %v2737
      %v2759 = vpack.c.bf16 %v2740, %v2739
      %v2760 = vpack.c.bf16 %v2742, %v2741
      %v2761 = vpack.c.bf16 %v2744, %v2743
      %v2762 = vpack.c.bf16 %v2746, %v2745
      %v2763 = vpack.c.bf16 %v2748, %v2747
      %v2779 = vunpack.c.l.b16 %v2749
      %v2780 = vunpack.c.h.b16 %v2749
      %v2781 = vunpack.c.l.b16 %v2750
      %v2782 = vunpack.c.h.b16 %v2750
      %v2783 = vunpack.c.l.b16 %v2751
      %v2784 = vunpack.c.h.b16 %v2751
      %v2785 = vunpack.c.l.b16 %v2752
      %v2786 = vunpack.c.h.b16 %v2752
      %v2787 = vunpack.c.l.b16 %v2753
      %v2788 = vunpack.c.h.b16 %v2753
      %v2789 = vunpack.c.l.b16 %v2754
      %v2790 = vunpack.c.h.b16 %v2754
      %v2791 = vunpack.c.l.b16 %v2755
      %v2792 = vunpack.c.h.b16 %v2755
      %v2793 = vunpack.c.l.b16 %v2756
      %v2794 = vunpack.c.h.b16 %v2756
      %v2795 = vunpack.c.l.b16 %v2757
      %v2796 = vunpack.c.h.b16 %v2757
      %v2797 = vunpack.c.l.b16 %v2758
      %v2798 = vunpack.c.h.b16 %v2758
      %v2799 = vunpack.c.l.b16 %v2759
      %v2800 = vunpack.c.h.b16 %v2759
      %v2801 = vunpack.c.l.b16 %v2760
      %v2802 = vunpack.c.h.b16 %v2760
      %v2803 = vunpack.c.l.b16 %v2761
      %v2804 = vunpack.c.h.b16 %v2761
      %v2805 = vunpack.c.l.b16 %v2762
      %v2806 = vunpack.c.h.b16 %v2762
      %v2807 = vunpack.c.l.b16 %v2763
      %v2808 = vunpack.c.h.b16 %v2763
      %v2809 = vpack.c.b16 %v2779, %v2779
      %v2810 = vpack.c.b16 %v2780, %v2780
      %v2811 = vpack.c.b16 %v2781, %v2781
      %v2812 = vpack.c.b16 %v2782, %v2782
      %v2813 = vpack.c.b16 %v2783, %v2783
      %v2814 = vpack.c.b16 %v2784, %v2784
      %v2815 = vpack.c.b16 %v2785, %v2785
      %v2816 = vpack.c.b16 %v2786, %v2786
      %v2817 = vpack.c.b16 %v2787, %v2787
      %v2818 = vpack.c.b16 %v2788, %v2788
      %v2819 = vpack.c.b16 %v2789, %v2789
      %v2820 = vpack.c.b16 %v2790, %v2790
      %v2821 = vpack.c.b16 %v2791, %v2791
      %v2822 = vpack.c.b16 %v2792, %v2792
      %v2823 = vpack.c.b16 %v2793, %v2793
      %v2824 = vpack.c.b16 %v2794, %v2794
      %v2825 = vpack.c.b16 %v2795, %v2795
      %v2826 = vpack.c.b16 %v2796, %v2796
      %v2827 = vpack.c.b16 %v2797, %v2797
      %v2828 = vpack.c.b16 %v2798, %v2798
      %v2829 = vpack.c.b16 %v2799, %v2799
      %v2830 = vpack.c.b16 %v2800, %v2800
      %v2831 = vpack.c.b16 %v2801, %v2801
      %v2832 = vpack.c.b16 %v2802, %v2802
      %v2833 = vpack.c.b16 %v2803, %v2803
      %v2834 = vpack.c.b16 %v2804, %v2804
      %v2835 = vpack.c.b16 %v2805, %v2805
      %v2836 = vpack.c.b16 %v2806, %v2806
      %v2837 = vpack.c.b16 %v2807, %v2807
      %v2838 = vpack.c.b16 %v2808, %v2808
      %2839 = vrot.lane.b32.xlu0 %v2809, 4
      %v2840 = vpop.permute.xlu0 %2839
      %2841 = vrot.lane.b32.xlu0 %v2810, 4
      %v2842 = vpop.permute.xlu0 %2841
      %2843 = vrot.lane.b32.xlu0 %v2811, 4
      %v2844 = vpop.permute.xlu0 %2843
      %2845 = vrot.lane.b32.xlu0 %v2812, 4
      %v2846 = vpop.permute.xlu0 %2845
      %2847 = vrot.lane.b32.xlu0 %v2813, 4
      %v2848 = vpop.permute.xlu0 %2847
      %2849 = vrot.lane.b32.xlu0 %v2814, 4
      %v2850 = vpop.permute.xlu0 %2849
      %2851 = vrot.lane.b32.xlu0 %v2815, 4
      %v2852 = vpop.permute.xlu0 %2851
      %2853 = vrot.lane.b32.xlu0 %v2816, 4
      %v2854 = vpop.permute.xlu0 %2853
      %2855 = vrot.lane.b32.xlu0 %v2817, 4
      %v2856 = vpop.permute.xlu0 %2855
      %2857 = vrot.lane.b32.xlu0 %v2818, 4
      %v2858 = vpop.permute.xlu0 %2857
      %2859 = vrot.lane.b32.xlu0 %v2819, 4
      %v2860 = vpop.permute.xlu0 %2859
      %2861 = vrot.lane.b32.xlu0 %v2820, 4
      %v2862 = vpop.permute.xlu0 %2861
      %2863 = vrot.lane.b32.xlu0 %v2821, 4
      %v2864 = vpop.permute.xlu0 %2863
      %2865 = vrot.lane.b32.xlu0 %v2822, 4
      %v2866 = vpop.permute.xlu0 %2865
      %2867 = vrot.lane.b32.xlu0 %v2823, 4
      %v2868 = vpop.permute.xlu0 %2867
      %2869 = vrot.lane.b32.xlu0 %v2824, 4
      %v2870 = vpop.permute.xlu0 %2869
      %2871 = vrot.lane.b32.xlu0 %v2825, 4
      %v2872 = vpop.permute.xlu0 %2871
      %2873 = vrot.lane.b32.xlu0 %v2826, 4
      %v2874 = vpop.permute.xlu0 %2873
      %2875 = vrot.lane.b32.xlu0 %v2827, 4
      %v2876 = vpop.permute.xlu0 %2875
      %2877 = vrot.lane.b32.xlu0 %v2828, 4
      %v2878 = vpop.permute.xlu0 %2877
      %2879 = vrot.lane.b32.xlu0 %v2829, 4
      %v2880 = vpop.permute.xlu0 %2879
      %2881 = vrot.lane.b32.xlu0 %v2830, 4
      %v2882 = vpop.permute.xlu0 %2881
      %2883 = vrot.lane.b32.xlu0 %v2831, 4
      %v2884 = vpop.permute.xlu0 %2883
      %2885 = vrot.lane.b32.xlu0 %v2832, 4
      %v2886 = vpop.permute.xlu0 %2885
      %2887 = vrot.lane.b32.xlu0 %v2833, 4
      %v2888 = vpop.permute.xlu0 %2887
      %2889 = vrot.lane.b32.xlu0 %v2834, 4
      %v2890 = vpop.permute.xlu0 %2889
      %2891 = vrot.lane.b32.xlu0 %v2835, 4
      %v2892 = vpop.permute.xlu0 %2891
      %2893 = vrot.lane.b32.xlu0 %v2836, 4
      %v2894 = vpop.permute.xlu0 %2893
      %2895 = vrot.lane.b32.xlu0 %v2837, 4
      %v2896 = vpop.permute.xlu0 %2895
      %2897 = vrot.lane.b32.xlu0 %v2838, 4
      %v2898 = vpop.permute.xlu0 %2897
      %2929 = vst.msk [vmem:[#allocation2] sm:$0xf] %vm798, %v703
      %2930 = vst.msk [vmem:[#allocation2 + $0x4] sm:$0xf] %vm798, %v705
      %2931 = vst.msk [vmem:[#allocation2 + $0x8] sm:$0xf] %vm798, %v2840
      %2932 = vst.msk [vmem:[#allocation2 + $0xc] sm:$0xf] %vm798, %v2842
      %2933 = vst.msk [vmem:[#allocation2 + $0x10] sm:$0xf] %vm798, %v2844
      %2934 = vst.msk [vmem:[#allocation2 + $0x14] sm:$0xf] %vm798, %v2846
      %2935 = vst.msk [vmem:[#allocation2 + $0x18] sm:$0xf] %vm798, %v2848
      %2936 = vst.msk [vmem:[#allocation2 + $0x1c] sm:$0xf] %vm798, %v2850
      %2937 = vst.msk [vmem:[#allocation2 + $0x20] sm:$0xf] %vm798, %v2852
      %2938 = vst.msk [vmem:[#allocation2 + $0x24] sm:$0xf] %vm798, %v2854
      %2939 = vst.msk [vmem:[#allocation2 + $0x28] sm:$0xf] %vm798, %v2856
      %2940 = vst.msk [vmem:[#allocation2 + $0x2c] sm:$0xf] %vm798, %v2858
      %2941 = vst.msk [vmem:[#allocation2 + $0x30] sm:$0xf] %vm798, %v2860
      %2942 = vst.msk [vmem:[#allocation2 + $0x34] sm:$0xf] %vm798, %v2862
      %2943 = vst.msk [vmem:[#allocation2 + $0x38] sm:$0xf] %vm798, %v2864
      %2944 = vst.msk [vmem:[#allocation2 + $0x3c] sm:$0xf] %vm798, %v2866
      %2945 = vst.msk [vmem:[#allocation2 + $0x40] sm:$0xf] %vm798, %v2868
      %2946 = vst.msk [vmem:[#allocation2 + $0x44] sm:$0xf] %vm798, %v2870
      %2947 = vst.msk [vmem:[#allocation2 + $0x48] sm:$0xf] %vm798, %v2872
      %2948 = vst.msk [vmem:[#allocation2 + $0x4c] sm:$0xf] %vm798, %v2874
      %2949 = vst.msk [vmem:[#allocation2 + $0x50] sm:$0xf] %vm798, %v2876
      %2950 = vst.msk [vmem:[#allocation2 + $0x54] sm:$0xf] %vm798, %v2878
      %2951 = vst.msk [vmem:[#allocation2 + $0x58] sm:$0xf] %vm798, %v2880
      %2952 = vst.msk [vmem:[#allocation2 + $0x5c] sm:$0xf] %vm798, %v2882
      %2953 = vst.msk [vmem:[#allocation2 + $0x60] sm:$0xf] %vm798, %v2884
      %2954 = vst.msk [vmem:[#allocation2 + $0x64] sm:$0xf] %vm798, %v2886
      %2955 = vst.msk [vmem:[#allocation2 + $0x68] sm:$0xf] %vm798, %v2888
      %2956 = vst.msk [vmem:[#allocation2 + $0x6c] sm:$0xf] %vm798, %v2890
      %2957 = vst.msk [vmem:[#allocation2 + $0x70] sm:$0xf] %vm798, %v2892
      %2958 = vst.msk [vmem:[#allocation2 + $0x74] sm:$0xf] %vm798, %v2894
      %2959 = vst.msk [vmem:[#allocation2 + $0x78] sm:$0xf] %vm798, %v2896
      %2960 = vst.msk [vmem:[#allocation2 + $0x7c] sm:$0xf] %vm798, %v2898
      %v2961 = vrot.slane %v2444, 1
      %v2962 = vrot.slane %v2445, 1
      %v2963 = vrot.slane %v2446, 1
      %v2964 = vrot.slane %v2447, 1
      %v2965 = vrot.slane %v2448, 1
      %v2966 = vrot.slane %v2449, 1
      %v2967 = vrot.slane %v2450, 1
      %v2968 = vrot.slane %v2451, 1
      %v2969 = vrot.slane %v2452, 1
      %v2970 = vrot.slane %v2453, 1
      %v2971 = vrot.slane %v2454, 1
      %v2972 = vrot.slane %v2455, 1
      %v2973 = vrot.slane %v2456, 1
      %v2974 = vrot.slane %v2457, 1
      %v2975 = vrot.slane %v2458, 1
      %v2976 = vrot.slane %v2459, 1
      %v2977 = vrot.slane %v2460, 1
      %v2978 = vrot.slane %v2461, 1
      %v2979 = vrot.slane %v2462, 1
      %v2980 = vrot.slane %v2463, 1
      %v2981 = vrot.slane %v2464, 1
      %v2982 = vrot.slane %v2465, 1
      %v2983 = vrot.slane %v2466, 1
      %v2984 = vrot.slane %v2467, 1
      %v2985 = vrot.slane %v2468, 1
      %v2986 = vrot.slane %v2469, 1
      %v2987 = vrot.slane %v2470, 1
      %v2988 = vrot.slane %v2471, 1
      %v2989 = vrot.slane %v2472, 1
      %v2990 = vrot.slane %v2473, 1
      %v2991 = vrot.slane %v2474, 1
      %v2992 = vsel %vm862, %v2990, %v2991
      %v2993 = vsel %vm862, %v2989, %v2990
      %v2994 = vsel %vm862, %v2988, %v2989
      %v2995 = vsel %vm862, %v2987, %v2988
      %v2996 = vsel %vm862, %v2986, %v2987
      %v2997 = vsel %vm862, %v2985, %v2986
      %v2998 = vsel %vm862, %v2984, %v2985
      %v2999 = vsel %vm862, %v2983, %v2984
      %v3000 = vsel %vm862, %v2982, %v2983
      %v3001 = vsel %vm862, %v2981, %v2982
      %v3002 = vsel %vm862, %v2980, %v2981
      %v3003 = vsel %vm862, %v2979, %v2980
      %v3004 = vsel %vm862, %v2978, %v2979
      %v3005 = vsel %vm862, %v2977, %v2978
      %v3006 = vsel %vm862, %v2976, %v2977
      %v3007 = vsel %vm862, %v2975, %v2976
      %v3008 = vsel %vm862, %v2974, %v2975
      %v3009 = vsel %vm862, %v2973, %v2974
      %v3010 = vsel %vm862, %v2972, %v2973
      %v3011 = vsel %vm862, %v2971, %v2972
      %v3012 = vsel %vm862, %v2970, %v2971
      %v3013 = vsel %vm862, %v2969, %v2970
      %v3014 = vsel %vm862, %v2968, %v2969
      %v3015 = vsel %vm862, %v2967, %v2968
      %v3016 = vsel %vm862, %v2966, %v2967
      %v3017 = vsel %vm862, %v2965, %v2966
      %v3018 = vsel %vm862, %v2964, %v2965
      %v3019 = vsel %vm862, %v2963, %v2964
      %v3020 = vsel %vm862, %v2962, %v2963
      %v3021 = vsel %vm862, %v2961, %v2962
      %v3022 = vsel %vm903, %v3021, 0.0
      %v3023 = vsel %vm904, %v3020, 0.0
      %v3024 = vsel %vm903, %v3019, 0.0
      %v3025 = vsel %vm904, %v3018, 0.0
      %v3026 = vsel %vm903, %v3017, 0.0
      %v3027 = vsel %vm904, %v3016, 0.0
      %v3028 = vsel %vm903, %v3015, 0.0
      %v3029 = vsel %vm904, %v3014, 0.0
      %v3030 = vsel %vm903, %v3013, 0.0
      %v3031 = vsel %vm904, %v3012, 0.0
      %v3032 = vsel %vm903, %v3011, 0.0
      %v3033 = vsel %vm904, %v3010, 0.0
      %v3034 = vsel %vm903, %v3009, 0.0
      %v3035 = vsel %vm904, %v3008, 0.0
      %v3036 = vsel %vm903, %v3007, 0.0
      %v3037 = vsel %vm904, %v3006, 0.0
      %v3038 = vsel %vm903, %v3005, 0.0
      %v3039 = vsel %vm904, %v3004, 0.0
      %v3040 = vsel %vm903, %v3003, 0.0
      %v3041 = vsel %vm904, %v3002, 0.0
      %v3042 = vsel %vm903, %v3001, 0.0
      %v3043 = vsel %vm904, %v3000, 0.0
      %v3044 = vsel %vm903, %v2999, 0.0
      %v3045 = vsel %vm904, %v2998, 0.0
      %v3046 = vsel %vm903, %v2997, 0.0
      %v3047 = vsel %vm904, %v2996, 0.0
      %v3048 = vsel %vm903, %v2995, 0.0
      %v3049 = vsel %vm904, %v2994, 0.0
      %v3050 = vsel %vm903, %v2993, 0.0
      %v3051 = vsel %vm904, %v2992, 0.0
      %v3052 = vpack.c.bf16 %v3023, %v3022
      %v3053 = vpack.c.bf16 %v3025, %v3024
      %v3054 = vpack.c.bf16 %v3027, %v3026
      %v3055 = vpack.c.bf16 %v3029, %v3028
      %v3056 = vpack.c.bf16 %v3031, %v3030
      %v3057 = vpack.c.bf16 %v3033, %v3032
      %v3058 = vpack.c.bf16 %v3035, %v3034
      %v3059 = vpack.c.bf16 %v3037, %v3036
      %v3060 = vpack.c.bf16 %v3039, %v3038
      %v3061 = vpack.c.bf16 %v3041, %v3040
      %v3062 = vpack.c.bf16 %v3043, %v3042
      %v3063 = vpack.c.bf16 %v3045, %v3044
      %v3064 = vpack.c.bf16 %v3047, %v3046
      %v3065 = vpack.c.bf16 %v3049, %v3048
      %v3066 = vpack.c.bf16 %v3051, %v3050
      %v3082 = vunpack.c.l.b16 %v3052
      %v3083 = vunpack.c.h.b16 %v3052
      %v3084 = vunpack.c.l.b16 %v3053
      %v3085 = vunpack.c.h.b16 %v3053
      %v3086 = vunpack.c.l.b16 %v3054
      %v3087 = vunpack.c.h.b16 %v3054
      %v3088 = vunpack.c.l.b16 %v3055
      %v3089 = vunpack.c.h.b16 %v3055
      %v3090 = vunpack.c.l.b16 %v3056
      %v3091 = vunpack.c.h.b16 %v3056
      %v3092 = vunpack.c.l.b16 %v3057
      %v3093 = vunpack.c.h.b16 %v3057
      %v3094 = vunpack.c.l.b16 %v3058
      %v3095 = vunpack.c.h.b16 %v3058
      %v3096 = vunpack.c.l.b16 %v3059
      %v3097 = vunpack.c.h.b16 %v3059
      %v3098 = vunpack.c.l.b16 %v3060
      %v3099 = vunpack.c.h.b16 %v3060
      %v3100 = vunpack.c.l.b16 %v3061
      %v3101 = vunpack.c.h.b16 %v3061
      %v3102 = vunpack.c.l.b16 %v3062
      %v3103 = vunpack.c.h.b16 %v3062
      %v3104 = vunpack.c.l.b16 %v3063
      %v3105 = vunpack.c.h.b16 %v3063
      %v3106 = vunpack.c.l.b16 %v3064
      %v3107 = vunpack.c.h.b16 %v3064
      %v3108 = vunpack.c.l.b16 %v3065
      %v3109 = vunpack.c.h.b16 %v3065
      %v3110 = vunpack.c.l.b16 %v3066
      %v3111 = vunpack.c.h.b16 %v3066
      %v3112 = vpack.c.b16 %v3082, %v3082
      %v3113 = vpack.c.b16 %v3083, %v3083
      %v3114 = vpack.c.b16 %v3084, %v3084
      %v3115 = vpack.c.b16 %v3085, %v3085
      %v3116 = vpack.c.b16 %v3086, %v3086
      %v3117 = vpack.c.b16 %v3087, %v3087
      %v3118 = vpack.c.b16 %v3088, %v3088
      %v3119 = vpack.c.b16 %v3089, %v3089
      %v3120 = vpack.c.b16 %v3090, %v3090
      %v3121 = vpack.c.b16 %v3091, %v3091
      %v3122 = vpack.c.b16 %v3092, %v3092
      %v3123 = vpack.c.b16 %v3093, %v3093
      %v3124 = vpack.c.b16 %v3094, %v3094
      %v3125 = vpack.c.b16 %v3095, %v3095
      %v3126 = vpack.c.b16 %v3096, %v3096
      %v3127 = vpack.c.b16 %v3097, %v3097
      %v3128 = vpack.c.b16 %v3098, %v3098
      %v3129 = vpack.c.b16 %v3099, %v3099
      %v3130 = vpack.c.b16 %v3100, %v3100
      %v3131 = vpack.c.b16 %v3101, %v3101
      %v3132 = vpack.c.b16 %v3102, %v3102
      %v3133 = vpack.c.b16 %v3103, %v3103
      %v3134 = vpack.c.b16 %v3104, %v3104
      %v3135 = vpack.c.b16 %v3105, %v3105
      %v3136 = vpack.c.b16 %v3106, %v3106
      %v3137 = vpack.c.b16 %v3107, %v3107
      %v3138 = vpack.c.b16 %v3108, %v3108
      %v3139 = vpack.c.b16 %v3109, %v3109
      %v3140 = vpack.c.b16 %v3110, %v3110
      %v3141 = vpack.c.b16 %v3111, %v3111
      %3142 = vrot.lane.b32.xlu0 %v3112, 8
      %v3143 = vpop.permute.xlu0 %3142
      %3144 = vrot.lane.b32.xlu0 %v3113, 8
      %v3145 = vpop.permute.xlu0 %3144
      %3146 = vrot.lane.b32.xlu0 %v3114, 8
      %v3147 = vpop.permute.xlu0 %3146
      %3148 = vrot.lane.b32.xlu0 %v3115, 8
      %v3149 = vpop.permute.xlu0 %3148
      %3150 = vrot.lane.b32.xlu0 %v3116, 8
      %v3151 = vpop.permute.xlu0 %3150
      %3152 = vrot.lane.b32.xlu0 %v3117, 8
      %v3153 = vpop.permute.xlu0 %3152
      %3154 = vrot.lane.b32.xlu0 %v3118, 8
      %v3155 = vpop.permute.xlu0 %3154
      %3156 = vrot.lane.b32.xlu0 %v3119, 8
      %v3157 = vpop.permute.xlu0 %3156
      %3158 = vrot.lane.b32.xlu0 %v3120, 8
      %v3159 = vpop.permute.xlu0 %3158
      %3160 = vrot.lane.b32.xlu0 %v3121, 8
      %v3161 = vpop.permute.xlu0 %3160
      %3162 = vrot.lane.b32.xlu0 %v3122, 8
      %v3163 = vpop.permute.xlu0 %3162
      %3164 = vrot.lane.b32.xlu0 %v3123, 8
      %v3165 = vpop.permute.xlu0 %3164
      %3166 = vrot.lane.b32.xlu0 %v3124, 8
      %v3167 = vpop.permute.xlu0 %3166
      %3168 = vrot.lane.b32.xlu0 %v3125, 8
      %v3169 = vpop.permute.xlu0 %3168
      %3170 = vrot.lane.b32.xlu0 %v3126, 8
      %v3171 = vpop.permute.xlu0 %3170
      %3172 = vrot.lane.b32.xlu0 %v3127, 8
      %v3173 = vpop.permute.xlu0 %3172
      %3174 = vrot.lane.b32.xlu0 %v3128, 8
      %v3175 = vpop.permute.xlu0 %3174
      %3176 = vrot.lane.b32.xlu0 %v3129, 8
      %v3177 = vpop.permute.xlu0 %3176
      %3178 = vrot.lane.b32.xlu0 %v3130, 8
      %v3179 = vpop.permute.xlu0 %3178
      %3180 = vrot.lane.b32.xlu0 %v3131, 8
      %v3181 = vpop.permute.xlu0 %3180
      %3182 = vrot.lane.b32.xlu0 %v3132, 8
      %v3183 = vpop.permute.xlu0 %3182
      %3184 = vrot.lane.b32.xlu0 %v3133, 8
      %v3185 = vpop.permute.xlu0 %3184
      %3186 = vrot.lane.b32.xlu0 %v3134, 8
      %v3187 = vpop.permute.xlu0 %3186
      %3188 = vrot.lane.b32.xlu0 %v3135, 8
      %v3189 = vpop.permute.xlu0 %3188
      %3190 = vrot.lane.b32.xlu0 %v3136, 8
      %v3191 = vpop.permute.xlu0 %3190
      %3192 = vrot.lane.b32.xlu0 %v3137, 8
      %v3193 = vpop.permute.xlu0 %3192
      %3194 = vrot.lane.b32.xlu0 %v3138, 8
      %v3195 = vpop.permute.xlu0 %3194
      %3196 = vrot.lane.b32.xlu0 %v3139, 8
      %v3197 = vpop.permute.xlu0 %3196
      %3198 = vrot.lane.b32.xlu0 %v3140, 8
      %v3199 = vpop.permute.xlu0 %3198
      %3200 = vrot.lane.b32.xlu0 %v3141, 8
      %v3201 = vpop.permute.xlu0 %3200
      %3232 = vst.msk [vmem:[#allocation2] sm:$0xf] %vm1121, %v1026
      %3233 = vst.msk [vmem:[#allocation2 + $0x4] sm:$0xf] %vm1121, %v1028
      %3234 = vst.msk [vmem:[#allocation2 + $0x8] sm:$0xf] %vm1121, %v3143
      %3235 = vst.msk [vmem:[#allocation2 + $0xc] sm:$0xf] %vm1121, %v3145
      %3236 = vst.msk [vmem:[#allocation2 + $0x10] sm:$0xf] %vm1121, %v3147
      %3237 = vst.msk [vmem:[#allocation2 + $0x14] sm:$0xf] %vm1121, %v3149
      %3238 = vst.msk [vmem:[#allocation2 + $0x18] sm:$0xf] %vm1121, %v3151
      %3239 = vst.msk [vmem:[#allocation2 + $0x1c] sm:$0xf] %vm1121, %v3153
      %3240 = vst.msk [vmem:[#allocation2 + $0x20] sm:$0xf] %vm1121, %v3155
      %3241 = vst.msk [vmem:[#allocation2 + $0x24] sm:$0xf] %vm1121, %v3157
      %3242 = vst.msk [vmem:[#allocation2 + $0x28] sm:$0xf] %vm1121, %v3159
      %3243 = vst.msk [vmem:[#allocation2 + $0x2c] sm:$0xf] %vm1121, %v3161
      %3244 = vst.msk [vmem:[#allocation2 + $0x30] sm:$0xf] %vm1121, %v3163
      %3245 = vst.msk [vmem:[#allocation2 + $0x34] sm:$0xf] %vm1121, %v3165
      %3246 = vst.msk [vmem:[#allocation2 + $0x38] sm:$0xf] %vm1121, %v3167
      %3247 = vst.msk [vmem:[#allocation2 + $0x3c] sm:$0xf] %vm1121, %v3169
      %3248 = vst.msk [vmem:[#allocation2 + $0x40] sm:$0xf] %vm1121, %v3171
      %3249 = vst.msk [vmem:[#allocation2 + $0x44] sm:$0xf] %vm1121, %v3173
      %3250 = vst.msk [vmem:[#allocation2 + $0x48] sm:$0xf] %vm1121, %v3175
      %3251 = vst.msk [vmem:[#allocation2 + $0x4c] sm:$0xf] %vm1121, %v3177
      %3252 = vst.msk [vmem:[#allocation2 + $0x50] sm:$0xf] %vm1121, %v3179
      %3253 = vst.msk [vmem:[#allocation2 + $0x54] sm:$0xf] %vm1121, %v3181
      %3254 = vst.msk [vmem:[#allocation2 + $0x58] sm:$0xf] %vm1121, %v3183
      %3255 = vst.msk [vmem:[#allocation2 + $0x5c] sm:$0xf] %vm1121, %v3185
      %3256 = vst.msk [vmem:[#allocation2 + $0x60] sm:$0xf] %vm1121, %v3187
      %3257 = vst.msk [vmem:[#allocation2 + $0x64] sm:$0xf] %vm1121, %v3189
      %3258 = vst.msk [vmem:[#allocation2 + $0x68] sm:$0xf] %vm1121, %v3191
      %3259 = vst.msk [vmem:[#allocation2 + $0x6c] sm:$0xf] %vm1121, %v3193
      %3260 = vst.msk [vmem:[#allocation2 + $0x70] sm:$0xf] %vm1121, %v3195
      %3261 = vst.msk [vmem:[#allocation2 + $0x74] sm:$0xf] %vm1121, %v3197
      %3262 = vst.msk [vmem:[#allocation2 + $0x78] sm:$0xf] %vm1121, %v3199
      %3263 = vst.msk [vmem:[#allocation2 + $0x7c] sm:$0xf] %vm1121, %v3201
      %v3264 = vrot.slane %v2474, 7
      %v3265 = vsel %vm338, %v3264, %v2506
      %v3266 = vsel %vm338, %v2505, %v3264
      %v3267 = vsel %vm379, %v3266, 0.0
      %v3268 = vsel %vm380, %v3265, 0.0
      %v3269 = vpack.c.bf16 %v3268, %v3267
      %v3271 = vunpack.c.l.b16 %v3269
      %v3272 = vunpack.c.h.b16 %v3269
      %v3273 = vpack.c.b16 %v3271, %v3271
      %v3274 = vpack.c.b16 %v3272, %v3272
      %3275 = vrot.lane.b32.xlu0 %v2627, 12
      %v3276 = vpop.permute.xlu0 %3275
      %3277 = vrot.lane.b32.xlu0 %v2628, 12
      %v3278 = vpop.permute.xlu0 %3277
      %3279 = vrot.lane.b32.xlu0 %v2629, 12
      %v3280 = vpop.permute.xlu0 %3279
      %3281 = vrot.lane.b32.xlu0 %v2630, 12
      %v3282 = vpop.permute.xlu0 %3281
      %3283 = vrot.lane.b32.xlu0 %v2631, 12
      %v3284 = vpop.permute.xlu0 %3283
      %3285 = vrot.lane.b32.xlu0 %v2632, 12
      %v3286 = vpop.permute.xlu0 %3285
      %3287 = vrot.lane.b32.xlu0 %v2633, 12
      %v3288 = vpop.permute.xlu0 %3287
      %3289 = vrot.lane.b32.xlu0 %v2634, 12
      %v3290 = vpop.permute.xlu0 %3289
      %3291 = vrot.lane.b32.xlu0 %v2635, 12
      %v3292 = vpop.permute.xlu0 %3291
      %3293 = vrot.lane.b32.xlu0 %v2636, 12
      %v3294 = vpop.permute.xlu0 %3293
      %3295 = vrot.lane.b32.xlu0 %v2637, 12
      %v3296 = vpop.permute.xlu0 %3295
      %3297 = vrot.lane.b32.xlu0 %v2638, 12
      %v3298 = vpop.permute.xlu0 %3297
      %3299 = vrot.lane.b32.xlu0 %v2639, 12
      %v3300 = vpop.permute.xlu0 %3299
      %3301 = vrot.lane.b32.xlu0 %v2640, 12
      %v3302 = vpop.permute.xlu0 %3301
      %3303 = vrot.lane.b32.xlu0 %v2641, 12
      %v3304 = vpop.permute.xlu0 %3303
      %3305 = vrot.lane.b32.xlu0 %v2642, 12
      %v3306 = vpop.permute.xlu0 %3305
      %3307 = vrot.lane.b32.xlu0 %v2643, 12
      %v3308 = vpop.permute.xlu0 %3307
      %3309 = vrot.lane.b32.xlu0 %v2644, 12
      %v3310 = vpop.permute.xlu0 %3309
      %3311 = vrot.lane.b32.xlu0 %v2645, 12
      %v3312 = vpop.permute.xlu0 %3311
      %3313 = vrot.lane.b32.xlu0 %v2646, 12
      %v3314 = vpop.permute.xlu0 %3313
      %3315 = vrot.lane.b32.xlu0 %v2647, 12
      %v3316 = vpop.permute.xlu0 %3315
      %3317 = vrot.lane.b32.xlu0 %v2648, 12
      %v3318 = vpop.permute.xlu0 %3317
      %3319 = vrot.lane.b32.xlu0 %v2649, 12
      %v3320 = vpop.permute.xlu0 %3319
      %3321 = vrot.lane.b32.xlu0 %v2650, 12
      %v3322 = vpop.permute.xlu0 %3321
      %3323 = vrot.lane.b32.xlu0 %v2651, 12
      %v3324 = vpop.permute.xlu0 %3323
      %3325 = vrot.lane.b32.xlu0 %v2652, 12
      %v3326 = vpop.permute.xlu0 %3325
      %3327 = vrot.lane.b32.xlu0 %v2653, 12
      %v3328 = vpop.permute.xlu0 %3327
      %3329 = vrot.lane.b32.xlu0 %v2654, 12
      %v3330 = vpop.permute.xlu0 %3329
      %3331 = vrot.lane.b32.xlu0 %v2655, 12
      %v3332 = vpop.permute.xlu0 %3331
      %3333 = vrot.lane.b32.xlu0 %v2656, 12
      %v3334 = vpop.permute.xlu0 %3333
      %3335 = vrot.lane.b32.xlu0 %v3273, 12
      %v3336 = vpop.permute.xlu0 %3335
      %3337 = vrot.lane.b32.xlu0 %v3274, 12
      %v3338 = vpop.permute.xlu0 %3337
      %3371 = vst.msk [vmem:[#allocation2] sm:$0xf] %vm1261, %v3276
      %3372 = vst.msk [vmem:[#allocation2 + $0x4] sm:$0xf] %vm1261, %v3278
      %3373 = vst.msk [vmem:[#allocation2 + $0x8] sm:$0xf] %vm1261, %v3280
      %3374 = vst.msk [vmem:[#allocation2 + $0xc] sm:$0xf] %vm1261, %v3282
      %3375 = vst.msk [vmem:[#allocation2 + $0x10] sm:$0xf] %vm1261, %v3284
      %3376 = vst.msk [vmem:[#allocation2 + $0x14] sm:$0xf] %vm1261, %v3286
      %3377 = vst.msk [vmem:[#allocation2 + $0x18] sm:$0xf] %vm1261, %v3288
      %3378 = vst.msk [vmem:[#allocation2 + $0x1c] sm:$0xf] %vm1261, %v3290
      %3379 = vst.msk [vmem:[#allocation2 + $0x20] sm:$0xf] %vm1261, %v3292
      %3380 = vst.msk [vmem:[#allocation2 + $0x24] sm:$0xf] %vm1261, %v3294
      %3381 = vst.msk [vmem:[#allocation2 + $0x28] sm:$0xf] %vm1261, %v3296
      %3382 = vst.msk [vmem:[#allocation2 + $0x2c] sm:$0xf] %vm1261, %v3298
      %3383 = vst.msk [vmem:[#allocation2 + $0x30] sm:$0xf] %vm1261, %v3300
      %3384 = vst.msk [vmem:[#allocation2 + $0x34] sm:$0xf] %vm1261, %v3302
      %3385 = vst.msk [vmem:[#allocation2 + $0x38] sm:$0xf] %vm1261, %v3304
      %3386 = vst.msk [vmem:[#allocation2 + $0x3c] sm:$0xf] %vm1261, %v3306
      %3387 = vst.msk [vmem:[#allocation2 + $0x40] sm:$0xf] %vm1261, %v3308
      %3388 = vst.msk [vmem:[#allocation2 + $0x44] sm:$0xf] %vm1261, %v3310
      %3389 = vst.msk [vmem:[#allocation2 + $0x48] sm:$0xf] %vm1261, %v3312
      %3390 = vst.msk [vmem:[#allocation2 + $0x4c] sm:$0xf] %vm1261, %v3314
      %3391 = vst.msk [vmem:[#allocation2 + $0x50] sm:$0xf] %vm1261, %v3316
      %3392 = vst.msk [vmem:[#allocation2 + $0x54] sm:$0xf] %vm1261, %v3318
      %3393 = vst.msk [vmem:[#allocation2 + $0x58] sm:$0xf] %vm1261, %v3320
      %3394 = vst.msk [vmem:[#allocation2 + $0x5c] sm:$0xf] %vm1261, %v3322
      %3395 = vst.msk [vmem:[#allocation2 + $0x60] sm:$0xf] %vm1261, %v3324
      %3396 = vst.msk [vmem:[#allocation2 + $0x64] sm:$0xf] %vm1261, %v3326
      %3397 = vst.msk [vmem:[#allocation2 + $0x68] sm:$0xf] %vm1261, %v3328
      %3398 = vst.msk [vmem:[#allocation2 + $0x6c] sm:$0xf] %vm1261, %v3330
      %3399 = vst.msk [vmem:[#allocation2 + $0x70] sm:$0xf] %vm1261, %v3332
      %3400 = vst.msk [vmem:[#allocation2 + $0x74] sm:$0xf] %vm1261, %v3334
      %3401 = vst.msk [vmem:[#allocation2 + $0x78] sm:$0xf] %vm1261, %v3336
      %3402 = vst.msk [vmem:[#allocation2 + $0x7c] sm:$0xf] %vm1261, %v3338
      %v3403 = vsel %vm580, %v2474, 0.0
      %v3404 = vsel %vm581, %v2475, 0.0
      %v3405 = vpack.c.bf16 %v3404, %v3403
      %v3407 = vunpack.c.l.b16 %v3405
      %v3408 = vunpack.c.h.b16 %v3405
      %v3409 = vpack.c.b16 %v3407, %v3407
      %v3410 = vpack.c.b16 %v3408, %v3408
      %3411 = vrot.lane.b32.xlu0 %v2809, 16
      %v3412 = vpop.permute.xlu0 %3411
      %3413 = vrot.lane.b32.xlu0 %v2810, 16
      %v3414 = vpop.permute.xlu0 %3413
      %3415 = vrot.lane.b32.xlu0 %v2811, 16
      %v3416 = vpop.permute.xlu0 %3415
      %3417 = vrot.lane.b32.xlu0 %v2812, 16
      %v3418 = vpop.permute.xlu0 %3417
      %3419 = vrot.lane.b32.xlu0 %v2813, 16
      %v3420 = vpop.permute.xlu0 %3419
      %3421 = vrot.lane.b32.xlu0 %v2814, 16
      %v3422 = vpop.permute.xlu0 %3421
      %3423 = vrot.lane.b32.xlu0 %v2815, 16
      %v3424 = vpop.permute.xlu0 %3423
      %3425 = vrot.lane.b32.xlu0 %v2816, 16
      %v3426 = vpop.permute.xlu0 %3425
      %3427 = vrot.lane.b32.xlu0 %v2817, 16
      %v3428 = vpop.permute.xlu0 %3427
      %3429 = vrot.lane.b32.xlu0 %v2818, 16
      %v3430 = vpop.permute.xlu0 %3429
      %3431 = vrot.lane.b32.xlu0 %v2819, 16
      %v3432 = vpop.permute.xlu0 %3431
      %3433 = vrot.lane.b32.xlu0 %v2820, 16
      %v3434 = vpop.permute.xlu0 %3433
      %3435 = vrot.lane.b32.xlu0 %v2821, 16
      %v3436 = vpop.permute.xlu0 %3435
      %3437 = vrot.lane.b32.xlu0 %v2822, 16
      %v3438 = vpop.permute.xlu0 %3437
      %3439 = vrot.lane.b32.xlu0 %v2823, 16
      %v3440 = vpop.permute.xlu0 %3439
      %3441 = vrot.lane.b32.xlu0 %v2824, 16
      %v3442 = vpop.permute.xlu0 %3441
      %3443 = vrot.lane.b32.xlu0 %v2825, 16
      %v3444 = vpop.permute.xlu0 %3443
      %3445 = vrot.lane.b32.xlu0 %v2826, 16
      %v3446 = vpop.permute.xlu0 %3445
      %3447 = vrot.lane.b32.xlu0 %v2827, 16
      %v3448 = vpop.permute.xlu0 %3447
      %3449 = vrot.lane.b32.xlu0 %v2828, 16
      %v3450 = vpop.permute.xlu0 %3449
      %3451 = vrot.lane.b32.xlu0 %v2829, 16
      %v3452 = vpop.permute.xlu0 %3451
      %3453 = vrot.lane.b32.xlu0 %v2830, 16
      %v3454 = vpop.permute.xlu0 %3453
      %3455 = vrot.lane.b32.xlu0 %v2831, 16
      %v3456 = vpop.permute.xlu0 %3455
      %3457 = vrot.lane.b32.xlu0 %v2832, 16
      %v3458 = vpop.permute.xlu0 %3457
      %3459 = vrot.lane.b32.xlu0 %v2833, 16
      %v3460 = vpop.permute.xlu0 %3459
      %3461 = vrot.lane.b32.xlu0 %v2834, 16
      %v3462 = vpop.permute.xlu0 %3461
      %3463 = vrot.lane.b32.xlu0 %v2835, 16
      %v3464 = vpop.permute.xlu0 %3463
      %3465 = vrot.lane.b32.xlu0 %v2836, 16
      %v3466 = vpop.permute.xlu0 %3465
      %3467 = vrot.lane.b32.xlu0 %v2837, 16
      %v3468 = vpop.permute.xlu0 %3467
      %3469 = vrot.lane.b32.xlu0 %v2838, 16
      %v3470 = vpop.permute.xlu0 %3469
      %3471 = vrot.lane.b32.xlu0 %v3409, 16
      %v3472 = vpop.permute.xlu0 %3471
      %3473 = vrot.lane.b32.xlu0 %v3410, 16
      %v3474 = vpop.permute.xlu0 %3473
      %3507 = vst.msk [vmem:[#allocation2] sm:$0xf] %vm1398, %v3412
      %3508 = vst.msk [vmem:[#allocation2 + $0x4] sm:$0xf] %vm1398, %v3414
      %3509 = vst.msk [vmem:[#allocation2 + $0x8] sm:$0xf] %vm1398, %v3416
      %3510 = vst.msk [vmem:[#allocation2 + $0xc] sm:$0xf] %vm1398, %v3418
      %3511 = vst.msk [vmem:[#allocation2 + $0x10] sm:$0xf] %vm1398, %v3420
      %3512 = vst.msk [vmem:[#allocation2 + $0x14] sm:$0xf] %vm1398, %v3422
      %3513 = vst.msk [vmem:[#allocation2 + $0x18] sm:$0xf] %vm1398, %v3424
      %3514 = vst.msk [vmem:[#allocation2 + $0x1c] sm:$0xf] %vm1398, %v3426
      %3515 = vst.msk [vmem:[#allocation2 + $0x20] sm:$0xf] %vm1398, %v3428
      %3516 = vst.msk [vmem:[#allocation2 + $0x24] sm:$0xf] %vm1398, %v3430
      %3517 = vst.msk [vmem:[#allocation2 + $0x28] sm:$0xf] %vm1398, %v3432
      %3518 = vst.msk [vmem:[#allocation2 + $0x2c] sm:$0xf] %vm1398, %v3434
      %3519 = vst.msk [vmem:[#allocation2 + $0x30] sm:$0xf] %vm1398, %v3436
      %3520 = vst.msk [vmem:[#allocation2 + $0x34] sm:$0xf] %vm1398, %v3438
      %3521 = vst.msk [vmem:[#allocation2 + $0x38] sm:$0xf] %vm1398, %v3440
      %3522 = vst.msk [vmem:[#allocation2 + $0x3c] sm:$0xf] %vm1398, %v3442
      %3523 = vst.msk [vmem:[#allocation2 + $0x40] sm:$0xf] %vm1398, %v3444
      %3524 = vst.msk [vmem:[#allocation2 + $0x44] sm:$0xf] %vm1398, %v3446
      %3525 = vst.msk [vmem:[#allocation2 + $0x48] sm:$0xf] %vm1398, %v3448
      %3526 = vst.msk [vmem:[#allocation2 + $0x4c] sm:$0xf] %vm1398, %v3450
      %3527 = vst.msk [vmem:[#allocation2 + $0x50] sm:$0xf] %vm1398, %v3452
      %3528 = vst.msk [vmem:[#allocation2 + $0x54] sm:$0xf] %vm1398, %v3454
      %3529 = vst.msk [vmem:[#allocation2 + $0x58] sm:$0xf] %vm1398, %v3456
      %3530 = vst.msk [vmem:[#allocation2 + $0x5c] sm:$0xf] %vm1398, %v3458
      %3531 = vst.msk [vmem:[#allocation2 + $0x60] sm:$0xf] %vm1398, %v3460
      %3532 = vst.msk [vmem:[#allocation2 + $0x64] sm:$0xf] %vm1398, %v3462
      %3533 = vst.msk [vmem:[#allocation2 + $0x68] sm:$0xf] %vm1398, %v3464
      %3534 = vst.msk [vmem:[#allocation2 + $0x6c] sm:$0xf] %vm1398, %v3466
      %3535 = vst.msk [vmem:[#allocation2 + $0x70] sm:$0xf] %vm1398, %v3468
      %3536 = vst.msk [vmem:[#allocation2 + $0x74] sm:$0xf] %vm1398, %v3470
      %3537 = vst.msk [vmem:[#allocation2 + $0x78] sm:$0xf] %vm1398, %v3472
      %3538 = vst.msk [vmem:[#allocation2 + $0x7c] sm:$0xf] %vm1398, %v3474
      %v3539 = vrot.slane %v2475, 1
      %v3540 = vsel %vm862, %v2991, %v3539
      %v3541 = vsel %vm862, %v3539, %v2961
      %v3542 = vsel %vm903, %v3540, 0.0
      %v3543 = vsel %vm904, %v3541, 0.0
      %v3544 = vpack.c.bf16 %v3543, %v3542
      %v3546 = vunpack.c.l.b16 %v3544
      %v3547 = vunpack.c.h.b16 %v3544
      %v3548 = vpack.c.b16 %v3546, %v3546
      %v3549 = vpack.c.b16 %v3547, %v3547
      %3550 = vrot.lane.b32.xlu0 %v3112, 20
      %v3551 = vpop.permute.xlu0 %3550
      %3552 = vrot.lane.b32.xlu0 %v3113, 20
      %v3553 = vpop.permute.xlu0 %3552
      %3554 = vrot.lane.b32.xlu0 %v3114, 20
      %v3555 = vpop.permute.xlu0 %3554
      %3556 = vrot.lane.b32.xlu0 %v3115, 20
      %v3557 = vpop.permute.xlu0 %3556
      %3558 = vrot.lane.b32.xlu0 %v3116, 20
      %v3559 = vpop.permute.xlu0 %3558
      %3560 = vrot.lane.b32.xlu0 %v3117, 20
      %v3561 = vpop.permute.xlu0 %3560
      %3562 = vrot.lane.b32.xlu0 %v3118, 20
      %v3563 = vpop.permute.xlu0 %3562
      %3564 = vrot.lane.b32.xlu0 %v3119, 20
      %v3565 = vpop.permute.xlu0 %3564
      %3566 = vrot.lane.b32.xlu0 %v3120, 20
      %v3567 = vpop.permute.xlu0 %3566
      %3568 = vrot.lane.b32.xlu0 %v3121, 20
      %v3569 = vpop.permute.xlu0 %3568
      %3570 = vrot.lane.b32.xlu0 %v3122, 20
      %v3571 = vpop.permute.xlu0 %3570
      %3572 = vrot.lane.b32.xlu0 %v3123, 20
      %v3573 = vpop.permute.xlu0 %3572
      %3574 = vrot.lane.b32.xlu0 %v3124, 20
      %v3575 = vpop.permute.xlu0 %3574
      %3576 = vrot.lane.b32.xlu0 %v3125, 20
      %v3577 = vpop.permute.xlu0 %3576
      %3578 = vrot.lane.b32.xlu0 %v3126, 20
      %v3579 = vpop.permute.xlu0 %3578
      %3580 = vrot.lane.b32.xlu0 %v3127, 20
      %v3581 = vpop.permute.xlu0 %3580
      %3582 = vrot.lane.b32.xlu0 %v3128, 20
      %v3583 = vpop.permute.xlu0 %3582
      %3584 = vrot.lane.b32.xlu0 %v3129, 20
      %v3585 = vpop.permute.xlu0 %3584
      %3586 = vrot.lane.b32.xlu0 %v3130, 20
      %v3587 = vpop.permute.xlu0 %3586
      %3588 = vrot.lane.b32.xlu0 %v3131, 20
      %v3589 = vpop.permute.xlu0 %3588
      %3590 = vrot.lane.b32.xlu0 %v3132, 20
      %v3591 = vpop.permute.xlu0 %3590
      %3592 = vrot.lane.b32.xlu0 %v3133, 20
      %v3593 = vpop.permute.xlu0 %3592
      %3594 = vrot.lane.b32.xlu0 %v3134, 20
      %v3595 = vpop.permute.xlu0 %3594
      %3596 = vrot.lane.b32.xlu0 %v3135, 20
      %v3597 = vpop.permute.xlu0 %3596
      %3598 = vrot.lane.b32.xlu0 %v3136, 20
      %v3599 = vpop.permute.xlu0 %3598
      %3600 = vrot.lane.b32.xlu0 %v3137, 20
      %v3601 = vpop.permute.xlu0 %3600
      %3602 = vrot.lane.b32.xlu0 %v3138, 20
      %v3603 = vpop.permute.xlu0 %3602
      %3604 = vrot.lane.b32.xlu0 %v3139, 20
      %v3605 = vpop.permute.xlu0 %3604
      %3606 = vrot.lane.b32.xlu0 %v3140, 20
      %v3607 = vpop.permute.xlu0 %3606
      %3608 = vrot.lane.b32.xlu0 %v3141, 20
      %v3609 = vpop.permute.xlu0 %3608
      %3610 = vrot.lane.b32.xlu0 %v3548, 20
      %v3611 = vpop.permute.xlu0 %3610
      %3612 = vrot.lane.b32.xlu0 %v3549, 20
      %v3613 = vpop.permute.xlu0 %3612
      %3646 = vst.msk [vmem:[#allocation2] sm:$0xf] %vm1538, %v3551
      %3647 = vst.msk [vmem:[#allocation2 + $0x4] sm:$0xf] %vm1538, %v3553
      %3648 = vst.msk [vmem:[#allocation2 + $0x8] sm:$0xf] %vm1538, %v3555
      %3649 = vst.msk [vmem:[#allocation2 + $0xc] sm:$0xf] %vm1538, %v3557
      %3650 = vst.msk [vmem:[#allocation2 + $0x10] sm:$0xf] %vm1538, %v3559
      %3651 = vst.msk [vmem:[#allocation2 + $0x14] sm:$0xf] %vm1538, %v3561
      %3652 = vst.msk [vmem:[#allocation2 + $0x18] sm:$0xf] %vm1538, %v3563
      %3653 = vst.msk [vmem:[#allocation2 + $0x1c] sm:$0xf] %vm1538, %v3565
      %3654 = vst.msk [vmem:[#allocation2 + $0x20] sm:$0xf] %vm1538, %v3567
      %3655 = vst.msk [vmem:[#allocation2 + $0x24] sm:$0xf] %vm1538, %v3569
      %3656 = vst.msk [vmem:[#allocation2 + $0x28] sm:$0xf] %vm1538, %v3571
      %3657 = vst.msk [vmem:[#allocation2 + $0x2c] sm:$0xf] %vm1538, %v3573
      %3658 = vst.msk [vmem:[#allocation2 + $0x30] sm:$0xf] %vm1538, %v3575
      %3659 = vst.msk [vmem:[#allocation2 + $0x34] sm:$0xf] %vm1538, %v3577
      %3660 = vst.msk [vmem:[#allocation2 + $0x38] sm:$0xf] %vm1538, %v3579
      %3661 = vst.msk [vmem:[#allocation2 + $0x3c] sm:$0xf] %vm1538, %v3581
      %3662 = vst.msk [vmem:[#allocation2 + $0x40] sm:$0xf] %vm1538, %v3583
      %3663 = vst.msk [vmem:[#allocation2 + $0x44] sm:$0xf] %vm1538, %v3585
      %3664 = vst.msk [vmem:[#allocation2 + $0x48] sm:$0xf] %vm1538, %v3587
      %3665 = vst.msk [vmem:[#allocation2 + $0x4c] sm:$0xf] %vm1538, %v3589
      %3666 = vst.msk [vmem:[#allocation2 + $0x50] sm:$0xf] %vm1538, %v3591
      %3667 = vst.msk [vmem:[#allocation2 + $0x54] sm:$0xf] %vm1538, %v3593
      %3668 = vst.msk [vmem:[#allocation2 + $0x58] sm:$0xf] %vm1538, %v3595
      %3669 = vst.msk [vmem:[#allocation2 + $0x5c] sm:$0xf] %vm1538, %v3597
      %3670 = vst.msk [vmem:[#allocation2 + $0x60] sm:$0xf] %vm1538, %v3599
      %3671 = vst.msk [vmem:[#allocation2 + $0x64] sm:$0xf] %vm1538, %v3601
      %3672 = vst.msk [vmem:[#allocation2 + $0x68] sm:$0xf] %vm1538, %v3603
      %3673 = vst.msk [vmem:[#allocation2 + $0x6c] sm:$0xf] %vm1538, %v3605
      %3674 = vst.msk [vmem:[#allocation2 + $0x70] sm:$0xf] %vm1538, %v3607
      %3675 = vst.msk [vmem:[#allocation2 + $0x74] sm:$0xf] %vm1538, %v3609
      %3676 = vst.msk [vmem:[#allocation2 + $0x78] sm:$0xf] %vm1538, %v3611
      %3677 = vst.msk [vmem:[#allocation2 + $0x7c] sm:$0xf] %vm1538, %v3613
      %3678 = vrot.lane.b32.xlu0 %v2629, 24
      %v3679 = vpop.permute.xlu0 %3678
      %3680 = vrot.lane.b32.xlu0 %v2630, 24
      %v3681 = vpop.permute.xlu0 %3680
      %3682 = vrot.lane.b32.xlu0 %v2631, 24
      %v3683 = vpop.permute.xlu0 %3682
      %3684 = vrot.lane.b32.xlu0 %v2632, 24
      %v3685 = vpop.permute.xlu0 %3684
      %3686 = vrot.lane.b32.xlu0 %v2633, 24
      %v3687 = vpop.permute.xlu0 %3686
      %3688 = vrot.lane.b32.xlu0 %v2634, 24
      %v3689 = vpop.permute.xlu0 %3688
      %3690 = vrot.lane.b32.xlu0 %v2635, 24
      %v3691 = vpop.permute.xlu0 %3690
      %3692 = vrot.lane.b32.xlu0 %v2636, 24
      %v3693 = vpop.permute.xlu0 %3692
      %3694 = vrot.lane.b32.xlu0 %v2637, 24
      %v3695 = vpop.permute.xlu0 %3694
      %3696 = vrot.lane.b32.xlu0 %v2638, 24
      %v3697 = vpop.permute.xlu0 %3696
      %3698 = vrot.lane.b32.xlu0 %v2639, 24
      %v3699 = vpop.permute.xlu0 %3698
      %3700 = vrot.lane.b32.xlu0 %v2640, 24
      %v3701 = vpop.permute.xlu0 %3700
      %3702 = vrot.lane.b32.xlu0 %v2641, 24
      %v3703 = vpop.permute.xlu0 %3702
      %3704 = vrot.lane.b32.xlu0 %v2642, 24
      %v3705 = vpop.permute.xlu0 %3704
      %3706 = vrot.lane.b32.xlu0 %v2643, 24
      %v3707 = vpop.permute.xlu0 %3706
      %3708 = vrot.lane.b32.xlu0 %v2644, 24
      %v3709 = vpop.permute.xlu0 %3708
      %3710 = vrot.lane.b32.xlu0 %v2645, 24
      %v3711 = vpop.permute.xlu0 %3710
      %3712 = vrot.lane.b32.xlu0 %v2646, 24
      %v3713 = vpop.permute.xlu0 %3712
      %3714 = vrot.lane.b32.xlu0 %v2647, 24
      %v3715 = vpop.permute.xlu0 %3714
      %3716 = vrot.lane.b32.xlu0 %v2648, 24
      %v3717 = vpop.permute.xlu0 %3716
      %3718 = vrot.lane.b32.xlu0 %v2649, 24
      %v3719 = vpop.permute.xlu0 %3718
      %3720 = vrot.lane.b32.xlu0 %v2650, 24
      %v3721 = vpop.permute.xlu0 %3720
      %3722 = vrot.lane.b32.xlu0 %v2651, 24
      %v3723 = vpop.permute.xlu0 %3722
      %3724 = vrot.lane.b32.xlu0 %v2652, 24
      %v3725 = vpop.permute.xlu0 %3724
      %3726 = vrot.lane.b32.xlu0 %v2653, 24
      %v3727 = vpop.permute.xlu0 %3726
      %3728 = vrot.lane.b32.xlu0 %v2654, 24
      %v3729 = vpop.permute.xlu0 %3728
      %3730 = vrot.lane.b32.xlu0 %v2655, 24
      %v3731 = vpop.permute.xlu0 %3730
      %3732 = vrot.lane.b32.xlu0 %v2656, 24
      %v3733 = vpop.permute.xlu0 %3732
      %3734 = vrot.lane.b32.xlu0 %v3273, 24
      %v3735 = vpop.permute.xlu0 %3734
      %3736 = vrot.lane.b32.xlu0 %v3274, 24
      %v3737 = vpop.permute.xlu0 %3736
      %3768 = vst.msk [vmem:[#allocation2] sm:$0xf] %vm1667, %v3679
      %3769 = vst.msk [vmem:[#allocation2 + $0x4] sm:$0xf] %vm1667, %v3681
      %3770 = vst.msk [vmem:[#allocation2 + $0x8] sm:$0xf] %vm1667, %v3683
      %3771 = vst.msk [vmem:[#allocation2 + $0xc] sm:$0xf] %vm1667, %v3685
      %3772 = vst.msk [vmem:[#allocation2 + $0x10] sm:$0xf] %vm1667, %v3687
      %3773 = vst.msk [vmem:[#allocation2 + $0x14] sm:$0xf] %vm1667, %v3689
      %3774 = vst.msk [vmem:[#allocation2 + $0x18] sm:$0xf] %vm1667, %v3691
      %3775 = vst.msk [vmem:[#allocation2 + $0x1c] sm:$0xf] %vm1667, %v3693
      %3776 = vst.msk [vmem:[#allocation2 + $0x20] sm:$0xf] %vm1667, %v3695
      %3777 = vst.msk [vmem:[#allocation2 + $0x24] sm:$0xf] %vm1667, %v3697
      %3778 = vst.msk [vmem:[#allocation2 + $0x28] sm:$0xf] %vm1667, %v3699
      %3779 = vst.msk [vmem:[#allocation2 + $0x2c] sm:$0xf] %vm1667, %v3701
      %3780 = vst.msk [vmem:[#allocation2 + $0x30] sm:$0xf] %vm1667, %v3703
      %3781 = vst.msk [vmem:[#allocation2 + $0x34] sm:$0xf] %vm1667, %v3705
      %3782 = vst.msk [vmem:[#allocation2 + $0x38] sm:$0xf] %vm1667, %v3707
      %3783 = vst.msk [vmem:[#allocation2 + $0x3c] sm:$0xf] %vm1667, %v3709
      %3784 = vst.msk [vmem:[#allocation2 + $0x40] sm:$0xf] %vm1667, %v3711
      %3785 = vst.msk [vmem:[#allocation2 + $0x44] sm:$0xf] %vm1667, %v3713
      %3786 = vst.msk [vmem:[#allocation2 + $0x48] sm:$0xf] %vm1667, %v3715
      %3787 = vst.msk [vmem:[#allocation2 + $0x4c] sm:$0xf] %vm1667, %v3717
      %3788 = vst.msk [vmem:[#allocation2 + $0x50] sm:$0xf] %vm1667, %v3719
      %3789 = vst.msk [vmem:[#allocation2 + $0x54] sm:$0xf] %vm1667, %v3721
      %3790 = vst.msk [vmem:[#allocation2 + $0x58] sm:$0xf] %vm1667, %v3723
      %3791 = vst.msk [vmem:[#allocation2 + $0x5c] sm:$0xf] %vm1667, %v3725
      %3792 = vst.msk [vmem:[#allocation2 + $0x60] sm:$0xf] %vm1667, %v3727
      %3793 = vst.msk [vmem:[#allocation2 + $0x64] sm:$0xf] %vm1667, %v3729
      %3794 = vst.msk [vmem:[#allocation2 + $0x68] sm:$0xf] %vm1667, %v3731
      %3795 = vst.msk [vmem:[#allocation2 + $0x6c] sm:$0xf] %vm1667, %v3733
      %3796 = vst.msk [vmem:[#allocation2 + $0x70] sm:$0xf] %vm1667, %v3735
      %3797 = vst.msk [vmem:[#allocation2 + $0x74] sm:$0xf] %vm1667, %v3737
      %3798 = vst.msk [vmem:[#allocation2 + $0x78] sm:$0xf] %vm1667, %v1632
      %3799 = vst.msk [vmem:[#allocation2 + $0x7c] sm:$0xf] %vm1667, %v1634
      %3800 = vrot.lane.b32.xlu0 %v2811, 28
      %v3801 = vpop.permute.xlu0 %3800
      %3802 = vrot.lane.b32.xlu0 %v2812, 28
      %v3803 = vpop.permute.xlu0 %3802
      %3804 = vrot.lane.b32.xlu0 %v2813, 28
      %v3805 = vpop.permute.xlu0 %3804
      %3806 = vrot.lane.b32.xlu0 %v2814, 28
      %v3807 = vpop.permute.xlu0 %3806
      %3808 = vrot.lane.b32.xlu0 %v2815, 28
      %v3809 = vpop.permute.xlu0 %3808
      %3810 = vrot.lane.b32.xlu0 %v2816, 28
      %v3811 = vpop.permute.xlu0 %3810
      %3812 = vrot.lane.b32.xlu0 %v2817, 28
      %v3813 = vpop.permute.xlu0 %3812
      %3814 = vrot.lane.b32.xlu0 %v2818, 28
      %v3815 = vpop.permute.xlu0 %3814
      %3816 = vrot.lane.b32.xlu0 %v2819, 28
      %v3817 = vpop.permute.xlu0 %3816
      %3818 = vrot.lane.b32.xlu0 %v2820, 28
      %v3819 = vpop.permute.xlu0 %3818
      %3820 = vrot.lane.b32.xlu0 %v2821, 28
      %v3821 = vpop.permute.xlu0 %3820
      %3822 = vrot.lane.b32.xlu0 %v2822, 28
      %v3823 = vpop.permute.xlu0 %3822
      %3824 = vrot.lane.b32.xlu0 %v2823, 28
      %v3825 = vpop.permute.xlu0 %3824
      %3826 = vrot.lane.b32.xlu0 %v2824, 28
      %v3827 = vpop.permute.xlu0 %3826
      %3828 = vrot.lane.b32.xlu0 %v2825, 28
      %v3829 = vpop.permute.xlu0 %3828
      %3830 = vrot.lane.b32.xlu0 %v2826, 28
      %v3831 = vpop.permute.xlu0 %3830
      %3832 = vrot.lane.b32.xlu0 %v2827, 28
      %v3833 = vpop.permute.xlu0 %3832
      %3834 = vrot.lane.b32.xlu0 %v2828, 28
      %v3835 = vpop.permute.xlu0 %3834
      %3836 = vrot.lane.b32.xlu0 %v2829, 28
      %v3837 = vpop.permute.xlu0 %3836
      %3838 = vrot.lane.b32.xlu0 %v2830, 28
      %v3839 = vpop.permute.xlu0 %3838
      %3840 = vrot.lane.b32.xlu0 %v2831, 28
      %v3841 = vpop.permute.xlu0 %3840
      %3842 = vrot.lane.b32.xlu0 %v2832, 28
      %v3843 = vpop.permute.xlu0 %3842
      %3844 = vrot.lane.b32.xlu0 %v2833, 28
      %v3845 = vpop.permute.xlu0 %3844
      %3846 = vrot.lane.b32.xlu0 %v2834, 28
      %v3847 = vpop.permute.xlu0 %3846
      %3848 = vrot.lane.b32.xlu0 %v2835, 28
      %v3849 = vpop.permute.xlu0 %3848
      %3850 = vrot.lane.b32.xlu0 %v2836, 28
      %v3851 = vpop.permute.xlu0 %3850
      %3852 = vrot.lane.b32.xlu0 %v2837, 28
      %v3853 = vpop.permute.xlu0 %3852
      %3854 = vrot.lane.b32.xlu0 %v2838, 28
      %v3855 = vpop.permute.xlu0 %3854
      %3856 = vrot.lane.b32.xlu0 %v3409, 28
      %v3857 = vpop.permute.xlu0 %3856
      %3858 = vrot.lane.b32.xlu0 %v3410, 28
      %v3859 = vpop.permute.xlu0 %3858
      %3890 = vst.msk [vmem:[#allocation2] sm:$0xf] %vm1796, %v3801
      %3891 = vst.msk [vmem:[#allocation2 + $0x4] sm:$0xf] %vm1796, %v3803
      %3892 = vst.msk [vmem:[#allocation2 + $0x8] sm:$0xf] %vm1796, %v3805
      %3893 = vst.msk [vmem:[#allocation2 + $0xc] sm:$0xf] %vm1796, %v3807
      %3894 = vst.msk [vmem:[#allocation2 + $0x10] sm:$0xf] %vm1796, %v3809
      %3895 = vst.msk [vmem:[#allocation2 + $0x14] sm:$0xf] %vm1796, %v3811
      %3896 = vst.msk [vmem:[#allocation2 + $0x18] sm:$0xf] %vm1796, %v3813
      %3897 = vst.msk [vmem:[#allocation2 + $0x1c] sm:$0xf] %vm1796, %v3815
      %3898 = vst.msk [vmem:[#allocation2 + $0x20] sm:$0xf] %vm1796, %v3817
      %3899 = vst.msk [vmem:[#allocation2 + $0x24] sm:$0xf] %vm1796, %v3819
      %3900 = vst.msk [vmem:[#allocation2 + $0x28] sm:$0xf] %vm1796, %v3821
      %3901 = vst.msk [vmem:[#allocation2 + $0x2c] sm:$0xf] %vm1796, %v3823
      %3902 = vst.msk [vmem:[#allocation2 + $0x30] sm:$0xf] %vm1796, %v3825
      %3903 = vst.msk [vmem:[#allocation2 + $0x34] sm:$0xf] %vm1796, %v3827
      %3904 = vst.msk [vmem:[#allocation2 + $0x38] sm:$0xf] %vm1796, %v3829
      %3905 = vst.msk [vmem:[#allocation2 + $0x3c] sm:$0xf] %vm1796, %v3831
      %3906 = vst.msk [vmem:[#allocation2 + $0x40] sm:$0xf] %vm1796, %v3833
      %3907 = vst.msk [vmem:[#allocation2 + $0x44] sm:$0xf] %vm1796, %v3835
      %3908 = vst.msk [vmem:[#allocation2 + $0x48] sm:$0xf] %vm1796, %v3837
      %3909 = vst.msk [vmem:[#allocation2 + $0x4c] sm:$0xf] %vm1796, %v3839
      %3910 = vst.msk [vmem:[#allocation2 + $0x50] sm:$0xf] %vm1796, %v3841
      %3911 = vst.msk [vmem:[#allocation2 + $0x54] sm:$0xf] %vm1796, %v3843
      %3912 = vst.msk [vmem:[#allocation2 + $0x58] sm:$0xf] %vm1796, %v3845
      %3913 = vst.msk [vmem:[#allocation2 + $0x5c] sm:$0xf] %vm1796, %v3847
      %3914 = vst.msk [vmem:[#allocation2 + $0x60] sm:$0xf] %vm1796, %v3849
      %3915 = vst.msk [vmem:[#allocation2 + $0x64] sm:$0xf] %vm1796, %v3851
      %3916 = vst.msk [vmem:[#allocation2 + $0x68] sm:$0xf] %vm1796, %v3853
      %3917 = vst.msk [vmem:[#allocation2 + $0x6c] sm:$0xf] %vm1796, %v3855
      %3918 = vst.msk [vmem:[#allocation2 + $0x70] sm:$0xf] %vm1796, %v3857
      %3919 = vst.msk [vmem:[#allocation2 + $0x74] sm:$0xf] %vm1796, %v3859
      %3920 = vst.msk [vmem:[#allocation2 + $0x78] sm:$0xf] %vm1796, %v1761
      %3921 = vst.msk [vmem:[#allocation2 + $0x7c] sm:$0xf] %vm1796, %v1763
      %3922 = vrot.lane.b32.xlu0 %v3114, 32
      %v3923 = vpop.permute.xlu0 %3922
      %3924 = vrot.lane.b32.xlu0 %v3115, 32
      %v3925 = vpop.permute.xlu0 %3924
      %3926 = vrot.lane.b32.xlu0 %v3116, 32
      %v3927 = vpop.permute.xlu0 %3926
      %3928 = vrot.lane.b32.xlu0 %v3117, 32
      %v3929 = vpop.permute.xlu0 %3928
      %3930 = vrot.lane.b32.xlu0 %v3118, 32
      %v3931 = vpop.permute.xlu0 %3930
      %3932 = vrot.lane.b32.xlu0 %v3119, 32
      %v3933 = vpop.permute.xlu0 %3932
      %3934 = vrot.lane.b32.xlu0 %v3120, 32
      %v3935 = vpop.permute.xlu0 %3934
      %3936 = vrot.lane.b32.xlu0 %v3121, 32
      %v3937 = vpop.permute.xlu0 %3936
      %3938 = vrot.lane.b32.xlu0 %v3122, 32
      %v3939 = vpop.permute.xlu0 %3938
      %3940 = vrot.lane.b32.xlu0 %v3123, 32
      %v3941 = vpop.permute.xlu0 %3940
      %3942 = vrot.lane.b32.xlu0 %v3124, 32
      %v3943 = vpop.permute.xlu0 %3942
      %3944 = vrot.lane.b32.xlu0 %v3125, 32
      %v3945 = vpop.permute.xlu0 %3944
      %3946 = vrot.lane.b32.xlu0 %v3126, 32
      %v3947 = vpop.permute.xlu0 %3946
      %3948 = vrot.lane.b32.xlu0 %v3127, 32
      %v3949 = vpop.permute.xlu0 %3948
      %3950 = vrot.lane.b32.xlu0 %v3128, 32
      %v3951 = vpop.permute.xlu0 %3950
      %3952 = vrot.lane.b32.xlu0 %v3129, 32
      %v3953 = vpop.permute.xlu0 %3952
      %3954 = vrot.lane.b32.xlu0 %v3130, 32
      %v3955 = vpop.permute.xlu0 %3954
      %3956 = vrot.lane.b32.xlu0 %v3131, 32
      %v3957 = vpop.permute.xlu0 %3956
      %3958 = vrot.lane.b32.xlu0 %v3132, 32
      %v3959 = vpop.permute.xlu0 %3958
      %3960 = vrot.lane.b32.xlu0 %v3133, 32
      %v3961 = vpop.permute.xlu0 %3960
      %3962 = vrot.lane.b32.xlu0 %v3134, 32
      %v3963 = vpop.permute.xlu0 %3962
      %3964 = vrot.lane.b32.xlu0 %v3135, 32
      %v3965 = vpop.permute.xlu0 %3964
      %3966 = vrot.lane.b32.xlu0 %v3136, 32
      %v3967 = vpop.permute.xlu0 %3966
      %3968 = vrot.lane.b32.xlu0 %v3137, 32
      %v3969 = vpop.permute.xlu0 %3968
      %3970 = vrot.lane.b32.xlu0 %v3138, 32
      %v3971 = vpop.permute.xlu0 %3970
      %3972 = vrot.lane.b32.xlu0 %v3139, 32
      %v3973 = vpop.permute.xlu0 %3972
      %3974 = vrot.lane.b32.xlu0 %v3140, 32
      %v3975 = vpop.permute.xlu0 %3974
      %3976 = vrot.lane.b32.xlu0 %v3141, 32
      %v3977 = vpop.permute.xlu0 %3976
      %3978 = vrot.lane.b32.xlu0 %v3548, 32
      %v3979 = vpop.permute.xlu0 %3978
      %3980 = vrot.lane.b32.xlu0 %v3549, 32
      %v3981 = vpop.permute.xlu0 %3980
      %4012 = vst.msk [vmem:[#allocation2] sm:$0xf] %vm1925, %v3923
      %4013 = vst.msk [vmem:[#allocation2 + $0x4] sm:$0xf] %vm1925, %v3925
      %4014 = vst.msk [vmem:[#allocation2 + $0x8] sm:$0xf] %vm1925, %v3927
      %4015 = vst.msk [vmem:[#allocation2 + $0xc] sm:$0xf] %vm1925, %v3929
      %4016 = vst.msk [vmem:[#allocation2 + $0x10] sm:$0xf] %vm1925, %v3931
      %4017 = vst.msk [vmem:[#allocation2 + $0x14] sm:$0xf] %vm1925, %v3933
      %4018 = vst.msk [vmem:[#allocation2 + $0x18] sm:$0xf] %vm1925, %v3935
      %4019 = vst.msk [vmem:[#allocation2 + $0x1c] sm:$0xf] %vm1925, %v3937
      %4020 = vst.msk [vmem:[#allocation2 + $0x20] sm:$0xf] %vm1925, %v3939
      %4021 = vst.msk [vmem:[#allocation2 + $0x24] sm:$0xf] %vm1925, %v3941
      %4022 = vst.msk [vmem:[#allocation2 + $0x28] sm:$0xf] %vm1925, %v3943
      %4023 = vst.msk [vmem:[#allocation2 + $0x2c] sm:$0xf] %vm1925, %v3945
      %4024 = vst.msk [vmem:[#allocation2 + $0x30] sm:$0xf] %vm1925, %v3947
      %4025 = vst.msk [vmem:[#allocation2 + $0x34] sm:$0xf] %vm1925, %v3949
      %4026 = vst.msk [vmem:[#allocation2 + $0x38] sm:$0xf] %vm1925, %v3951
      %4027 = vst.msk [vmem:[#allocation2 + $0x3c] sm:$0xf] %vm1925, %v3953
      %4028 = vst.msk [vmem:[#allocation2 + $0x40] sm:$0xf] %vm1925, %v3955
      %4029 = vst.msk [vmem:[#allocation2 + $0x44] sm:$0xf] %vm1925, %v3957
      %4030 = vst.msk [vmem:[#allocation2 + $0x48] sm:$0xf] %vm1925, %v3959
      %4031 = vst.msk [vmem:[#allocation2 + $0x4c] sm:$0xf] %vm1925, %v3961
      %4032 = vst.msk [vmem:[#allocation2 + $0x50] sm:$0xf] %vm1925, %v3963
      %4033 = vst.msk [vmem:[#allocation2 + $0x54] sm:$0xf] %vm1925, %v3965
      %4034 = vst.msk [vmem:[#allocation2 + $0x58] sm:$0xf] %vm1925, %v3967
      %4035 = vst.msk [vmem:[#allocation2 + $0x5c] sm:$0xf] %vm1925, %v3969
      %4036 = vst.msk [vmem:[#allocation2 + $0x60] sm:$0xf] %vm1925, %v3971
      %4037 = vst.msk [vmem:[#allocation2 + $0x64] sm:$0xf] %vm1925, %v3973
      %4038 = vst.msk [vmem:[#allocation2 + $0x68] sm:$0xf] %vm1925, %v3975
      %4039 = vst.msk [vmem:[#allocation2 + $0x6c] sm:$0xf] %vm1925, %v3977
      %4040 = vst.msk [vmem:[#allocation2 + $0x70] sm:$0xf] %vm1925, %v3979
      %4041 = vst.msk [vmem:[#allocation2 + $0x74] sm:$0xf] %vm1925, %v3981
      %4042 = vst.msk [vmem:[#allocation2 + $0x78] sm:$0xf] %vm1925, %v1890
      %4043 = vst.msk [vmem:[#allocation2 + $0x7c] sm:$0xf] %vm1925, %v1892
      %v4044 = vld [vmem:[#allocation2] sm:$0xf]
      %v4045 = vld [vmem:[#allocation2 + $0x4] sm:$0xf]
      %v4046 = vld [vmem:[#allocation2 + $0x8] sm:$0xf]
      %v4047 = vld [vmem:[#allocation2 + $0xc] sm:$0xf]
      %v4048 = vld [vmem:[#allocation2 + $0x10] sm:$0xf]
      %v4049 = vld [vmem:[#allocation2 + $0x14] sm:$0xf]
      %v4050 = vld [vmem:[#allocation2 + $0x18] sm:$0xf]
      %v4051 = vld [vmem:[#allocation2 + $0x1c] sm:$0xf]
      %v4052 = vld [vmem:[#allocation2 + $0x20] sm:$0xf]
      %v4053 = vld [vmem:[#allocation2 + $0x24] sm:$0xf]
      %v4054 = vld [vmem:[#allocation2 + $0x28] sm:$0xf]
      %v4055 = vld [vmem:[#allocation2 + $0x2c] sm:$0xf]
      %v4056 = vld [vmem:[#allocation2 + $0x30] sm:$0xf]
      %v4057 = vld [vmem:[#allocation2 + $0x34] sm:$0xf]
      %v4058 = vld [vmem:[#allocation2 + $0x38] sm:$0xf]
      %v4059 = vld [vmem:[#allocation2 + $0x3c] sm:$0xf]
      %v4060 = vld [vmem:[#allocation2 + $0x40] sm:$0xf]
      %v4061 = vld [vmem:[#allocation2 + $0x44] sm:$0xf]
      %v4062 = vld [vmem:[#allocation2 + $0x48] sm:$0xf]
      %v4063 = vld [vmem:[#allocation2 + $0x4c] sm:$0xf]
      %v4064 = vld [vmem:[#allocation2 + $0x50] sm:$0xf]
      %v4065 = vld [vmem:[#allocation2 + $0x54] sm:$0xf]
      %v4066 = vld [vmem:[#allocation2 + $0x58] sm:$0xf]
      %v4067 = vld [vmem:[#allocation2 + $0x5c] sm:$0xf]
      %v4068 = vld [vmem:[#allocation2 + $0x60] sm:$0xf]
      %v4069 = vld [vmem:[#allocation2 + $0x64] sm:$0xf]
      %v4070 = vld [vmem:[#allocation2 + $0x68] sm:$0xf]
      %v4071 = vld [vmem:[#allocation2 + $0x6c] sm:$0xf]
      %v4072 = vld [vmem:[#allocation2 + $0x70] sm:$0xf]
      %v4073 = vld [vmem:[#allocation2 + $0x74] sm:$0xf]
      %v4074 = vld [vmem:[#allocation2 + $0x78] sm:$0xf]
      %v4075 = vld [vmem:[#allocation2 + $0x7c] sm:$0xf]
      %v4076 = vld [vmem:[%s2] sm:$0xf]
      %v4077 = vld [vmem:[%s2 + $0x4] sm:$0xf]
      %v4078 = vld [vmem:[%s2 + $0x8] sm:$0xf]
      %v4079 = vld [vmem:[%s2 + $0xc] sm:$0xf]
      %v4080 = vld [vmem:[%s2 + $0x10] sm:$0x3]
      %v4113 = vunpack.c.l.b16 %v4044
      %v4114 = vunpack.c.l.b16 %v4045
      %v4115 = vunpack.c.l.b16 %v4046
      %v4116 = vunpack.c.l.b16 %v4047
      %v4117 = vunpack.c.l.b16 %v4048
      %v4118 = vunpack.c.l.b16 %v4049
      %v4119 = vunpack.c.l.b16 %v4050
      %v4120 = vunpack.c.l.b16 %v4051
      %v4121 = vunpack.c.l.b16 %v4052
      %v4122 = vunpack.c.l.b16 %v4053
      %v4123 = vunpack.c.l.b16 %v4054
      %v4124 = vunpack.c.l.b16 %v4055
      %v4125 = vunpack.c.l.b16 %v4056
      %v4126 = vunpack.c.l.b16 %v4057
      %v4127 = vunpack.c.l.b16 %v4058
      %v4128 = vunpack.c.l.b16 %v4059
      %v4129 = vunpack.c.l.b16 %v4060
      %v4130 = vunpack.c.l.b16 %v4061
      %v4131 = vunpack.c.l.b16 %v4062
      %v4132 = vunpack.c.l.b16 %v4063
      %v4133 = vunpack.c.l.b16 %v4064
      %v4134 = vunpack.c.l.b16 %v4065
      %v4135 = vunpack.c.l.b16 %v4066
      %v4136 = vunpack.c.l.b16 %v4067
      %v4137 = vunpack.c.l.b16 %v4068
      %v4138 = vunpack.c.l.b16 %v4069
      %v4139 = vunpack.c.l.b16 %v4070
      %v4140 = vunpack.c.l.b16 %v4071
      %v4141 = vunpack.c.l.b16 %v4072
      %v4142 = vunpack.c.l.b16 %v4073
      %v4143 = vunpack.c.l.b16 %v4074
      %v4144 = vunpack.c.l.b16 %v4075
      %v4145 = vpack.c.b16 %v4114, %v4113
      %v4146 = vpack.c.b16 %v4116, %v4115
      %v4147 = vpack.c.b16 %v4118, %v4117
      %v4148 = vpack.c.b16 %v4120, %v4119
      %v4149 = vpack.c.b16 %v4122, %v4121
      %v4150 = vpack.c.b16 %v4124, %v4123
      %v4151 = vpack.c.b16 %v4126, %v4125
      %v4152 = vpack.c.b16 %v4128, %v4127
      %v4153 = vpack.c.b16 %v4130, %v4129
      %v4154 = vpack.c.b16 %v4132, %v4131
      %v4155 = vpack.c.b16 %v4134, %v4133
      %v4156 = vpack.c.b16 %v4136, %v4135
      %v4157 = vpack.c.b16 %v4138, %v4137
      %v4158 = vpack.c.b16 %v4140, %v4139
      %v4159 = vpack.c.b16 %v4142, %v4141
      %v4160 = vpack.c.b16 %v4144, %v4143
      %v4166 = vunpack.c.l.b16 %v4076
      %v4167 = vunpack.c.l.b16 %v4077
      %v4168 = vunpack.c.l.b16 %v4078
      %v4169 = vunpack.c.l.b16 %v4079
      %v4170 = vunpack.c.l.b16 %v4080
      %v4171 = vpack.c.b16 %v4167, %v4166
      %v4172 = vpack.c.b16 %v4169, %v4168
      %v4173 = vpack.c.b16 %v4170, %v4170
      %v4177 = vsel %vm2090, %v4145, 0
      %v4180 = vsel %vm2090, %v4146, 0
      %v4183 = vsel %vm2090, %v4147, 0
      %v4186 = vsel %vm2090, %v4148, 0
      %v4189 = vsel %vm2090, %v4149, 0
      %v4192 = vsel %vm2090, %v4150, 0
      %v4195 = vsel %vm2090, %v4151, 0
      %v4198 = vsel %vm2090, %v4152, 0
      %v4201 = vsel %vm2090, %v4153, 0
      %v4204 = vsel %vm2090, %v4154, 0
      %v4207 = vsel %vm2090, %v4155, 0
      %v4210 = vsel %vm2090, %v4156, 0
      %v4213 = vsel %vm2090, %v4157, 0
      %v4216 = vsel %vm2090, %v4158, 0
      %v4219 = vsel %vm2090, %v4159, 0
      %v4222 = vsel %vm2090, %v4160, 0
      %v4225 = vsel %vm2139, %v4173, 0
      %4227 = vmatprep.subr.bf16.mxu0 0
      %4228 = vmatpush1.bf16.msra.mxu0 0
      %4229 = vmatprep.subr.bf16.mxu0 0
      %4230 = vmatpush1.bf16.msra.mxu0 0
      %4231 = vmatprep.subr.bf16.mxu0 0
      %4232 = vmatpush1.bf16.msra.mxu0 0
      %4233 = vmatprep.subr.bf16.mxu0 0
      %4234 = vmatpush1.bf16.msra.mxu0 0
      %4235 = vmatprep.subr.bf16.mxu0 0
      %4236 = vmatpush1.bf16.msra.mxu0 0
      %4237 = vmatprep.subr.bf16.mxu0 0
      %4238 = vmatpush1.bf16.msra.mxu0 %v4225
      %4239 = vmatprep.subr.bf16.mxu0 0
      %4240 = vmatpush1.bf16.msra.mxu0 %v4172
      %4241 = vmatprep.subr.bf16.mxu0 0
      %4242 = vmatpush1.bf16.msra.mxu0 %v4171
      %4243 = vmatprep.subr.bf16.mxu0 0
      %4244 = vmatpush2.bf16.msra.mxu0 0
      %4245 = vmatprep.subr.bf16.mxu0 0
      %4246 = vmatpush2.bf16.msra.mxu0 0
      %4247 = vmatprep.subr.bf16.mxu0 0
      %4248 = vmatpush2.bf16.msra.mxu0 0
      %4249 = vmatprep.subr.bf16.mxu0 0
      %4250 = vmatpush2.bf16.msra.mxu0 0
      %4251 = vmatprep.subr.bf16.mxu0 0
      %4252 = vmatpush2.bf16.msra.mxu0 0
      %4253 = vmatprep.subr.bf16.mxu0 0
      %4254 = vmatpush2.bf16.msra.mxu0 0
      %4255 = vmatprep.subr.bf16.mxu0 0
      %4256 = vmatpush2.bf16.msra.mxu0 0
      %4257 = vmatprep.subr.bf16.mxu0 0
      %4258 = vmatpush2.bf16.msra.mxu0 0
      %4259 = vmatprep.mubr.bf16.mxu0 0
      %4260 = vmatmul.mubr.bf16.gmra.mxu0 %v4177
      %v4261 = vpop.f32.mrf.mxu0
      %v4262 = vadd.f32 0.0, %v4261
      %v4263 = vpop.f32.mrf.mxu0
      %v4264 = vpop.f32.mrf.mxu0
      %v4265 = vadd.f32 0.0, %v4264
      %v4266 = vpop.f32.mrf.mxu0
      %4267 = vmatprep.mubr.bf16.mxu0 0
      %4268 = vmatmul.mubr.bf16.gmra.mxu0 %v4180
      %v4269 = vpop.f32.mrf.mxu0
      %v4270 = vadd.f32 0.0, %v4269
      %v4271 = vpop.f32.mrf.mxu0
      %v4272 = vpop.f32.mrf.mxu0
      %v4273 = vadd.f32 0.0, %v4272
      %v4274 = vpop.f32.mrf.mxu0
      %4275 = vmatprep.mubr.bf16.mxu0 0
      %4276 = vmatmul.mubr.bf16.gmra.mxu0 %v4183
      %v4277 = vpop.f32.mrf.mxu0
      %v4278 = vadd.f32 0.0, %v4277
      %v4279 = vpop.f32.mrf.mxu0
      %v4280 = vpop.f32.mrf.mxu0
      %v4281 = vadd.f32 0.0, %v4280
      %v4282 = vpop.f32.mrf.mxu0
      %4283 = vmatprep.mubr.bf16.mxu0 0
      %4284 = vmatmul.mubr.bf16.gmra.mxu0 %v4186
      %v4285 = vpop.f32.mrf.mxu0
      %v4286 = vadd.f32 0.0, %v4285
      %v4287 = vpop.f32.mrf.mxu0
      %v4288 = vpop.f32.mrf.mxu0
      %v4289 = vadd.f32 0.0, %v4288
      %v4290 = vpop.f32.mrf.mxu0
      %4291 = vmatprep.mubr.bf16.mxu0 0
      %4292 = vmatmul.mubr.bf16.gmra.mxu0 %v4189
      %v4293 = vpop.f32.mrf.mxu0
      %v4294 = vadd.f32 0.0, %v4293
      %v4295 = vpop.f32.mrf.mxu0
      %v4296 = vpop.f32.mrf.mxu0
      %v4297 = vadd.f32 0.0, %v4296
      %v4298 = vpop.f32.mrf.mxu0
      %4299 = vmatprep.mubr.bf16.mxu0 0
      %4300 = vmatmul.mubr.bf16.gmra.mxu0 %v4192
      %v4301 = vpop.f32.mrf.mxu0
      %v4302 = vadd.f32 0.0, %v4301
      %v4303 = vpop.f32.mrf.mxu0
      %v4304 = vpop.f32.mrf.mxu0
      %v4305 = vadd.f32 0.0, %v4304
      %v4306 = vpop.f32.mrf.mxu0
      %4307 = vmatprep.mubr.bf16.mxu0 0
      %4308 = vmatmul.mubr.bf16.gmra.mxu0 %v4195
      %v4309 = vpop.f32.mrf.mxu0
      %v4310 = vadd.f32 0.0, %v4309
      %v4311 = vpop.f32.mrf.mxu0
      %v4312 = vpop.f32.mrf.mxu0
      %v4313 = vadd.f32 0.0, %v4312
      %v4314 = vpop.f32.mrf.mxu0
      %4315 = vmatprep.mubr.bf16.mxu0 0
      %4316 = vmatmul.mubr.bf16.gmra.mxu0 %v4198
      %v4317 = vpop.f32.mrf.mxu0
      %v4318 = vadd.f32 0.0, %v4317
      %v4319 = vpop.f32.mrf.mxu0
      %v4320 = vpop.f32.mrf.mxu0
      %v4321 = vadd.f32 0.0, %v4320
      %v4322 = vpop.f32.mrf.mxu0
      %4323 = vmatprep.mubr.bf16.mxu0 0
      %4324 = vmatmul.mubr.bf16.gmra.mxu0 %v4201
      %v4325 = vpop.f32.mrf.mxu0
      %v4326 = vadd.f32 0.0, %v4325
      %v4327 = vpop.f32.mrf.mxu0
      %v4328 = vpop.f32.mrf.mxu0
      %v4329 = vadd.f32 0.0, %v4328
      %v4330 = vpop.f32.mrf.mxu0
      %4331 = vmatprep.mubr.bf16.mxu0 0
      %4332 = vmatmul.mubr.bf16.gmra.mxu0 %v4204
      %v4333 = vpop.f32.mrf.mxu0
      %v4334 = vadd.f32 0.0, %v4333
      %v4335 = vpop.f32.mrf.mxu0
      %v4336 = vpop.f32.mrf.mxu0
      %v4337 = vadd.f32 0.0, %v4336
      %v4338 = vpop.f32.mrf.mxu0
      %4339 = vmatprep.mubr.bf16.mxu0 0
      %4340 = vmatmul.mubr.bf16.gmra.mxu0 %v4207
      %v4341 = vpop.f32.mrf.mxu0
      %v4342 = vadd.f32 0.0, %v4341
      %v4343 = vpop.f32.mrf.mxu0
      %v4344 = vpop.f32.mrf.mxu0
      %v4345 = vadd.f32 0.0, %v4344
      %v4346 = vpop.f32.mrf.mxu0
      %4347 = vmatprep.mubr.bf16.mxu0 0
      %4348 = vmatmul.mubr.bf16.gmra.mxu0 %v4210
      %v4349 = vpop.f32.mrf.mxu0
      %v4350 = vadd.f32 0.0, %v4349
      %v4351 = vpop.f32.mrf.mxu0
      %v4352 = vpop.f32.mrf.mxu0
      %v4353 = vadd.f32 0.0, %v4352
      %v4354 = vpop.f32.mrf.mxu0
      %4355 = vmatprep.mubr.bf16.mxu0 0
      %4356 = vmatmul.mubr.bf16.gmra.mxu0 %v4213
      %v4357 = vpop.f32.mrf.mxu0
      %v4358 = vadd.f32 0.0, %v4357
      %v4359 = vpop.f32.mrf.mxu0
      %v4360 = vpop.f32.mrf.mxu0
      %v4361 = vadd.f32 0.0, %v4360
      %v4362 = vpop.f32.mrf.mxu0
      %4363 = vmatprep.mubr.bf16.mxu0 0
      %4364 = vmatmul.mubr.bf16.gmra.mxu0 %v4216
      %v4365 = vpop.f32.mrf.mxu0
      %v4366 = vadd.f32 0.0, %v4365
      %v4367 = vpop.f32.mrf.mxu0
      %v4368 = vpop.f32.mrf.mxu0
      %v4369 = vadd.f32 0.0, %v4368
      %v4370 = vpop.f32.mrf.mxu0
      %4371 = vmatprep.mubr.bf16.mxu0 0
      %4372 = vmatmul.mubr.bf16.gmra.mxu0 %v4219
      %v4373 = vpop.f32.mrf.mxu0
      %v4374 = vadd.f32 0.0, %v4373
      %v4375 = vpop.f32.mrf.mxu0
      %v4376 = vpop.f32.mrf.mxu0
      %v4377 = vadd.f32 0.0, %v4376
      %v4378 = vpop.f32.mrf.mxu0
      %4379 = vmatprep.mubr.bf16.mxu0 0
      %4380 = vmatmul.mubr.bf16.gmra.mxu0 %v4222
      %v4381 = vpop.f32.mrf.mxu0
      %v4382 = vadd.f32 0.0, %v4381
      %v4383 = vpop.f32.mrf.mxu0
      %v4384 = vpop.f32.mrf.mxu0
      %v4385 = vadd.f32 0.0, %v4384
      %v4386 = vpop.f32.mrf.mxu0
      %4387 = vdwg.mxu0
      %v4388 = vlaneseq
      %v4389 = vshrl.u32 %v4388, 7
      %v4390 = vsub.s32 5, %v4389
      %v4391 = vrot.slane %v231, %v4390
      %v4392 = vmul.f32 %v4262, %v4391
      %v4393 = vmul.f32 %v4265, %v4391
      %v4394 = vmul.f32 %v4270, %v4391
      %v4395 = vmul.f32 %v4273, %v4391
      %v4396 = vmul.f32 %v4278, %v4391
      %v4397 = vmul.f32 %v4281, %v4391
      %v4398 = vmul.f32 %v4286, %v4391
      %v4399 = vmul.f32 %v4289, %v4391
      %v4400 = vmul.f32 %v4294, %v4391
      %v4401 = vmul.f32 %v4297, %v4391
      %v4402 = vmul.f32 %v4302, %v4391
      %v4403 = vmul.f32 %v4305, %v4391
      %v4404 = vmul.f32 %v4310, %v4391
      %v4405 = vmul.f32 %v4313, %v4391
      %v4406 = vmul.f32 %v4318, %v4391
      %v4407 = vmul.f32 %v4321, %v4391
      %v4408 = vmul.f32 %v4326, %v4391
      %v4409 = vmul.f32 %v4329, %v4391
      %v4410 = vmul.f32 %v4334, %v4391
      %v4411 = vmul.f32 %v4337, %v4391
      %v4412 = vmul.f32 %v4342, %v4391
      %v4413 = vmul.f32 %v4345, %v4391
      %v4414 = vmul.f32 %v4350, %v4391
      %v4415 = vmul.f32 %v4353, %v4391
      %v4416 = vmul.f32 %v4358, %v4391
      %v4417 = vmul.f32 %v4361, %v4391
      %v4418 = vmul.f32 %v4366, %v4391
      %v4419 = vmul.f32 %v4369, %v4391
      %v4420 = vmul.f32 %v4374, %v4391
      %v4421 = vmul.f32 %v4377, %v4391
      %v4422 = vmul.f32 %v4382, %v4391
      %v4423 = vmul.f32 %v4385, %v4391
      %v4424 = vlaneseq
      %v4425 = vshrl.u32 %v4424, 7
      %v4426 = vsub.s32 6, %v4425
      %v4427 = vrot.slane %v231, %v4426
      %v4428 = vadd.f32 %v4392, %v4427
      %v4429 = vadd.f32 %v4393, %v4427
      %v4430 = vadd.f32 %v4394, %v4427
      %v4431 = vadd.f32 %v4395, %v4427
      %v4432 = vadd.f32 %v4396, %v4427
      %v4433 = vadd.f32 %v4397, %v4427
      %v4434 = vadd.f32 %v4398, %v4427
      %v4435 = vadd.f32 %v4399, %v4427
      %v4436 = vadd.f32 %v4400, %v4427
      %v4437 = vadd.f32 %v4401, %v4427
      %v4438 = vadd.f32 %v4402, %v4427
      %v4439 = vadd.f32 %v4403, %v4427
      %v4440 = vadd.f32 %v4404, %v4427
      %v4441 = vadd.f32 %v4405, %v4427
      %v4442 = vadd.f32 %v4406, %v4427
      %v4443 = vadd.f32 %v4407, %v4427
      %v4444 = vadd.f32 %v4408, %v4427
      %v4445 = vadd.f32 %v4409, %v4427
      %v4446 = vadd.f32 %v4410, %v4427
      %v4447 = vadd.f32 %v4411, %v4427
      %v4448 = vadd.f32 %v4412, %v4427
      %v4449 = vadd.f32 %v4413, %v4427
      %v4450 = vadd.f32 %v4414, %v4427
      %v4451 = vadd.f32 %v4415, %v4427
      %v4452 = vadd.f32 %v4416, %v4427
      %v4453 = vadd.f32 %v4417, %v4427
      %v4454 = vadd.f32 %v4418, %v4427
      %v4455 = vadd.f32 %v4419, %v4427
      %v4456 = vadd.f32 %v4420, %v4427
      %v4457 = vadd.f32 %v4421, %v4427
      %v4458 = vadd.f32 %v4422, %v4427
      %v4459 = vadd.f32 %v4423, %v4427
      %v4460 = vadd.f32 %v4428, %v199
      %v4461 = vadd.f32 %v4429, %v200
      %v4462 = vadd.f32 %v4430, %v201
      %v4463 = vadd.f32 %v4431, %v202
      %v4464 = vadd.f32 %v4432, %v203
      %v4465 = vadd.f32 %v4433, %v204
      %v4466 = vadd.f32 %v4434, %v205
      %v4467 = vadd.f32 %v4435, %v206
      %v4468 = vadd.f32 %v4436, %v207
      %v4469 = vadd.f32 %v4437, %v208
      %v4470 = vadd.f32 %v4438, %v209
      %v4471 = vadd.f32 %v4439, %v210
      %v4472 = vadd.f32 %v4440, %v211
      %v4473 = vadd.f32 %v4441, %v212
      %v4474 = vadd.f32 %v4442, %v213
      %v4475 = vadd.f32 %v4443, %v214
      %v4476 = vadd.f32 %v4444, %v215
      %v4477 = vadd.f32 %v4445, %v216
      %v4478 = vadd.f32 %v4446, %v217
      %v4479 = vadd.f32 %v4447, %v218
      %v4480 = vadd.f32 %v4448, %v219
      %v4481 = vadd.f32 %v4449, %v220
      %v4482 = vadd.f32 %v4450, %v221
      %v4483 = vadd.f32 %v4451, %v222
      %v4484 = vadd.f32 %v4452, %v223
      %v4485 = vadd.f32 %v4453, %v224
      %v4486 = vadd.f32 %v4454, %v225
      %v4487 = vadd.f32 %v4455, %v226
      %v4488 = vadd.f32 %v4456, %v227
      %v4489 = vadd.f32 %v4457, %v228
      %v4490 = vadd.f32 %v4458, %v229
      %v4491 = vadd.f32 %v4459, %v230
      %vm4492 = vcmask 31744
      %4493 = vst.msk [vmem:[%s197] sm:$0xff] %vm4492, %v4460
      %4494 = vst.msk [vmem:[%s197 + $0x8] sm:$0xff] %vm4492, %v4461
      %4495 = vst.msk [vmem:[%s197 + $0x10] sm:$0xff] %vm4492, %v4462
      %4496 = vst.msk [vmem:[%s197 + $0x18] sm:$0xff] %vm4492, %v4463
      %4497 = vst.msk [vmem:[%s197 + $0x20] sm:$0xff] %vm4492, %v4464
      %4498 = vst.msk [vmem:[%s197 + $0x28] sm:$0xff] %vm4492, %v4465
      %4499 = vst.msk [vmem:[%s197 + $0x30] sm:$0xff] %vm4492, %v4466
      %4500 = vst.msk [vmem:[%s197 + $0x38] sm:$0xff] %vm4492, %v4467
      %4501 = vst.msk [vmem:[%s197 + $0x40] sm:$0xff] %vm4492, %v4468
      %4502 = vst.msk [vmem:[%s197 + $0x48] sm:$0xff] %vm4492, %v4469
      %4503 = vst.msk [vmem:[%s197 + $0x50] sm:$0xff] %vm4492, %v4470
      %4504 = vst.msk [vmem:[%s197 + $0x58] sm:$0xff] %vm4492, %v4471
      %4505 = vst.msk [vmem:[%s197 + $0x60] sm:$0xff] %vm4492, %v4472
      %4506 = vst.msk [vmem:[%s197 + $0x68] sm:$0xff] %vm4492, %v4473
      %4507 = vst.msk [vmem:[%s197 + $0x70] sm:$0xff] %vm4492, %v4474
      %4508 = vst.msk [vmem:[%s197 + $0x78] sm:$0xff] %vm4492, %v4475
      %4509 = vst.msk [vmem:[%s197 + $0x80] sm:$0xff] %vm4492, %v4476
      %4510 = vst.msk [vmem:[%s197 + $0x88] sm:$0xff] %vm4492, %v4477
      %4511 = vst.msk [vmem:[%s197 + $0x90] sm:$0xff] %vm4492, %v4478
      %4512 = vst.msk [vmem:[%s197 + $0x98] sm:$0xff] %vm4492, %v4479
      %4513 = vst.msk [vmem:[%s197 + $0xa0] sm:$0xff] %vm4492, %v4480
      %4514 = vst.msk [vmem:[%s197 + $0xa8] sm:$0xff] %vm4492, %v4481
      %4515 = vst.msk [vmem:[%s197 + $0xb0] sm:$0xff] %vm4492, %v4482
      %4516 = vst.msk [vmem:[%s197 + $0xb8] sm:$0xff] %vm4492, %v4483
      %4517 = vst.msk [vmem:[%s197 + $0xc0] sm:$0xff] %vm4492, %v4484
      %4518 = vst.msk [vmem:[%s197 + $0xc8] sm:$0xff] %vm4492, %v4485
      %4519 = vst.msk [vmem:[%s197 + $0xd0] sm:$0xff] %vm4492, %v4486
      %4520 = vst.msk [vmem:[%s197 + $0xd8] sm:$0xff] %vm4492, %v4487
      %4521 = vst.msk [vmem:[%s197 + $0xe0] sm:$0xff] %vm4492, %v4488
      %4522 = vst.msk [vmem:[%s197 + $0xe8] sm:$0xff] %vm4492, %v4489
      %4523 = vst.msk [vmem:[%s197 + $0xf0] sm:$0xff] %vm4492, %v4490
      %4524 = vst.msk [vmem:[%s197 + $0xf8] sm:$0xff] %vm4492, %v4491
      %p4525 = scmp.lt.s32.totalorder %s15, 1
      %s4526 = scalar_select %p4525, %s15, 1
      %s4527 = smul.addr %s4526, 32
      %s4528 = smul.addr %s4527, 8
      %s4529 = scalar_lea.vmem %s4, %s4528
      // Predicated region
      $region37: #{tpu_custom_call.1} parent=35 // pred_check
        %p4530 = pneg %p122
      $region38: #{tpu_custom_call.1} parent=35 // pred_check_branch
        %4532 = sbr.rel (%p4530) target = $region40
      $region39: #{tpu_custom_call.1} parent=35 // pred_region
        _
      $region40: #{tpu_custom_call.1} parent=35 // pred_fallthru
        _
    $region36: #{tpu_custom_call.1} parent=5 // pred_fallthru
      _
    %p4533 = scmp.le.s32.totalorder 2, %s10
    // Predicated region
    $region41: #{tpu_custom_call.1} parent=5 // pred_check
      %p4534 = pneg %p4533
    $region42: #{tpu_custom_call.1} parent=5 // pred_check_branch
      %4536 = sbr.rel (%p4534) target = $region44
    $region43: #{tpu_custom_call.1} parent=5 // pred_region
      %s4537 = ssub.s32 %s10, 2
      // Predicated region
      $region45: #{tpu_custom_call.1} parent=43 // pred_check
        %p4538 = pneg %p128
      $region46: #{tpu_custom_call.1} parent=43 // pred_check_branch
        %4540 = sbr.rel (%p4538) target = $region48
      $region47: #{tpu_custom_call.1} parent=43 // pred_region
        %p4541 = scmp.lt.s32.totalorder %s16, 1
        %s4542 = scalar_select %p4541, %s16, 1
        %s4543 = smul.addr %s4542, 32
        %s4544 = smul.addr %s4543, 8
        %s4545 = scalar_lea.vmem %s4, %s4544
      $region48: #{tpu_custom_call.1} parent=43 // pred_fallthru
        _
    $region44: #{tpu_custom_call.1} parent=5 // pred_fallthru
      _
  $region6: #{tpu_custom_call.1} parent=0 // loop_footer
    %s14 = sadd.s32 1, %s10
  $region7: #{tpu_custom_call.1} parent=0 // loop_footer_branch
    %9 = sbr.rel target = $region3
  $region8: #{tpu_custom_call.1} parent=0 // loop_exit
    _

</llo_original>
